<compile_context>
chip_gen: v7x
topology: tpu7x:2x2x1
jax: 0.10.0
libtpu: 0.0.40
codegen_flags: <defaults>
</compile_context>

<pallas_src>
import functools

import jax
import jax.numpy as jnp
from jax.experimental import pallas as pl
from jax.experimental.pallas import tpu as pltpu

# ---------------- config (scaled-down "bert-base") ----------------
VOCAB = 64
HIDDEN = 128            # bert-base: 768
N_LAYERS = 2            # bert-base: 12
N_HEADS = 2             # bert-base: 12
HEAD_DIM = HIDDEN // N_HEADS
FFN_DIM = 4 * HIDDEN
MAX_POS = 32
OUTPUT_SIZE = 4         # otuput_size=4 in the module
FC_PAD = 128            # classifier cols padded to a lane-dense width (sliced in wrapper)
LN_EPS = 1e-12          # HF BERT layer_norm_eps
MASK_PAD = 128          # attention-mask bias padded to a lane-dense row


def _row_tile(m):
    """Largest 8-multiple row tile (<=256) dividing m that still leaves >=2 grid steps
    (keeps v7x's second TensorCore busy); otherwise the full extent."""
    for t in (256, 128, 64, 32, 16, 8):
        if m % t == 0 and m // t >= 2:
            return t
    return m


# ---------------- embedding LayerNorm (tiled over rows) ----------------
def _ln_kernel(x_ref, g_ref, b_ref, o_ref, *, eps):
    x = x_ref[...].astype(jnp.float32)
    mu = jnp.mean(x, axis=-1, keepdims=True)
    var = jnp.mean(jnp.square(x - mu), axis=-1, keepdims=True)
    y = (x - mu) * jax.lax.rsqrt(var + eps)
    o_ref[...] = (y * g_ref[...] + b_ref[...]).astype(o_ref.dtype)


def layernorm(x, gamma, beta, eps=LN_EPS, out_dtype=jnp.bfloat16):
    M, H = x.shape
    tm = _row_tile(M)
    return pl.pallas_call(
        functools.partial(_ln_kernel, eps=eps),
        out_shape=jax.ShapeDtypeStruct((M, H), out_dtype),
        grid=(M // tm,),
        in_specs=[
            pl.BlockSpec((tm, H), lambda i: (i, 0)),
            pl.BlockSpec((1, H), lambda i: (0, 0)),
            pl.BlockSpec((1, H), lambda i: (0, 0)),
        ],
        out_specs=pl.BlockSpec((tm, H), lambda i: (i, 0)),
        compiler_params=pltpu.CompilerParams(dimension_semantics=("parallel",)),
    )(x, gamma.reshape(1, H), beta.reshape(1, H))


# ---------------- fused encoder layer (QKV + attention + out-proj/LN1 + FFN/LN2) ----------------
def _ln_rows(y, g, b, eps):
    mu = jnp.mean(y, axis=-1, keepdims=True)
    var = jnp.mean(jnp.square(y - mu), axis=-1, keepdims=True)
    return (y - mu) * jax.lax.rsqrt(var + eps) * g + b


def _layer_compute(x, bias, w_qkv, b_qkv, wo, bo, g1, be1, w1, b1, w2, b2, g2, be2,
                   *, n_heads, head_dim, hidden, eps):
    """x: (S, H) bf16, bias: (1, MASK_PAD) f32 additive key mask. Returns (S, H) f32."""
    seq = x.shape[0]
    xf = x.astype(jnp.float32)

    # fused QKV projection: single MXU shot, result stays in VMEM
    qkv = jnp.dot(x, w_qkv, preferred_element_type=jnp.float32) + b_qkv      # (S, 3H) f32
    qkv = qkv.astype(x.dtype)
    q = qkv[:, :hidden]                  # 128-lane-aligned slices: no relayout
    k = qkv[:, hidden:2 * hidden]
    v = qkv[:, 2 * hidden:]

    # multi-head attention via lane masks: K/V lanes outside head h are zeroed, so
    # full-width contractions give the per-head scores and deposit each head's context
    # into its own lanes (no 64-lane slicing, no concatenate).  1/sqrt(d) is already
    # folded into the Q columns of w_qkv.
    lane = jax.lax.broadcasted_iota(jnp.int32, (1, hidden), 1)
    ctx = jnp.zeros((seq, hidden), jnp.float32)
    for h in range(n_heads):             # tiny static loop; use fori/flash tiling at real sizes
        hm = ((lane >= h * head_dim) & (lane < (h + 1) * head_dim)).astype(x.dtype)
        scores = jax.lax.dot_general(q, k * hm, (((1,), (1,)), ((), ())),
                                     preferred_element_type=jnp.float32)     # (S, S) f32
        scores = scores + bias[:, :seq]
        scores = scores - jnp.max(scores, axis=-1, keepdims=True)
        p = jnp.exp(scores)
        inv = pl.reciprocal(jnp.sum(p, axis=-1, keepdims=True), approx=True)
        ctx = ctx + jnp.dot(p.astype(x.dtype), v * hm,
                            preferred_element_type=jnp.float32) * inv        # (S, H)

    # attention output projection + residual + LayerNorm1
    y = jnp.dot(ctx.astype(x.dtype), wo, preferred_element_type=jnp.float32) + bo + xf
    y = _ln_rows(y, g1, be1, eps)

    # FFN: up-proj + gelu, down-proj + residual + LayerNorm2 (intermediate stays in VMEM)
    # TODO(synk): HF BERT uses erf-gelu; tanh-approx gelu used for Mosaic-safe lowering.
    hmid = jnp.dot(y.astype(x.dtype), w1, preferred_element_type=jnp.float32) + b1
    hmid = jax.nn.gelu(hmid, approximate=True)
    z = jnp.dot(hmid.astype(x.dtype), w2, preferred_element_type=jnp.float32) + b2 + y
    return _ln_rows(z, g2, be2, eps)


def _encoder_layer_kernel(x_ref, bias_ref, wqkv_ref, bqkv_ref, wo_ref, bo_ref,
                          g1_ref, be1_ref, w1_ref, b1_ref, w2_ref, b2_ref,
                          g2_ref, be2_ref, o_ref, *, n_heads, head_dim, hidden, eps):
    z = _layer_compute(x_ref[0], bias_ref[0], wqkv_ref[...], bqkv_ref[...],
                       wo_ref[...], bo_ref[...], g1_ref[...], be1_ref[...],
                       w1_ref[...], b1_ref[...], w2_ref[...], b2_ref[...],
                       g2_ref[...], be2_ref[...],
                       n_heads=n_heads, head_dim=head_dim, hidden=hidden, eps=eps)
    o_ref[0] = z.astype(o_ref.dtype)


def _encoder_layer_cls_kernel(x_ref, bias_ref, wqkv_ref, bqkv_ref, wo_ref, bo_ref,
                              g1_ref, be1_ref, w1_ref, b1_ref, w2_ref, b2_ref,
                              g2_ref, be2_ref, fcw_ref, fcb_ref, o_ref,
                              *, n_heads, head_dim, hidden, eps):
    z = _layer_compute(x_ref[0], bias_ref[0], wqkv_ref[...], bqkv_ref[...],
                       wo_ref[...], bo_ref[...], g1_ref[...], be1_ref[...],
                       w1_ref[...], b1_ref[...], w2_ref[...], b2_ref[...],
                       g2_ref[...], be2_ref[...],
                       n_heads=n_heads, head_dim=head_dim, hidden=hidden, eps=eps)
    # fused classifier on the [CLS] row of this batch element (no separate launch)
    cls = z[0:1, :].astype(jnp.bfloat16)                                      # (1, H)
    logits = jnp.dot(cls, fcw_ref[...], preferred_element_type=jnp.float32) + fcb_ref[...]
    o_ref[0] = logits                                                         # (1, FC_PAD) f32


def encoder_layer(x, mask_bias, lp, fc=None):
    """x: (B, S, H) bf16; mask_bias: (B, 1, MASK_PAD) f32.
    Returns the next hidden state (B, S, H) bf16, or — when fc=(fc_w, fc_b) is given
    (last layer) — the padded CLS logits (B, 1, FC_PAD) f32."""
    B, S, H = x.shape
    common = dict(n_heads=N_HEADS, head_dim=HEAD_DIM, hidden=H, eps=LN_EPS)
    in_specs = [
        pl.BlockSpec((1, S, H), lambda b: (b, 0, 0)),
        pl.BlockSpec((1, 1, MASK_PAD), lambda b: (b, 0, 0)),
        pl.BlockSpec((H, 3 * H), lambda b: (0, 0)),
        pl.BlockSpec((1, 3 * H), lambda b: (0, 0)),
        pl.BlockSpec((H, H), lambda b: (0, 0)),
        pl.BlockSpec((1, H), lambda b: (0, 0)),
        pl.BlockSpec((1, H), lambda b: (0, 0)),
        pl.BlockSpec((1, H), lambda b: (0, 0)),
        pl.BlockSpec((H, FFN_DIM), lambda b: (0, 0)),
        pl.BlockSpec((1, FFN_DIM), lambda b: (0, 0)),
        pl.BlockSpec((FFN_DIM, H), lambda b: (0, 0)),
        pl.BlockSpec((1, H), lambda b: (0, 0)),
        pl.BlockSpec((1, H), lambda b: (0, 0)),
        pl.BlockSpec((1, H), lambda b: (0, 0)),
    ]
    args = [x, mask_bias,
            lp["w_qkv"], lp["b_qkv"].reshape(1, -1),
            lp["wo"], lp["bo"].reshape(1, -1),
            lp["ln1_g"].reshape(1, -1), lp["ln1_b"].reshape(1, -1),
            lp["w1"], lp["b1"].reshape(1, -1),
            lp["w2"], lp["b2"].reshape(1, -1),
            lp["ln2_g"].reshape(1, -1), lp["ln2_b"].reshape(1, -1)]
    if fc is None:
        kernel = functools.partial(_encoder_layer_kernel, **common)
        out_shape = jax.ShapeDtypeStruct((B, S, H), jnp.bfloat16)
        out_specs = pl.BlockSpec((1, S, H), lambda b: (b, 0, 0))
    else:
        fc_w, fc_b = fc
        kernel = functools.partial(_encoder_layer_cls_kernel, **common)
        in_specs += [pl.BlockSpec((H, FC_PAD), lambda b: (0, 0)),
                     pl.BlockSpec((1, FC_PAD), lambda b: (0, 0))]
        args += [fc_w, fc_b.reshape(1, -1)]
        out_shape = jax.ShapeDtypeStruct((B, 1, FC_PAD), jnp.float32)
        out_specs = pl.BlockSpec((1, 1, FC_PAD), lambda b: (b, 0, 0))
    return pl.pallas_call(
        kernel,
        out_shape=out_shape,
        grid=(B,),
        in_specs=in_specs,
        out_specs=out_specs,
        compiler_params=pltpu.CompilerParams(dimension_semantics=("parallel",)),
    )(*args)


# ---------------- deterministic synthetic parameters ----------------
def init_params(key):
    ks = iter(jax.random.split(key, 64))

    def nrm(shape, std=0.02, dtype=jnp.float32):
        return (jax.random.normal(next(ks), shape, dtype=jnp.float32) * std).astype(dtype)

    params = {
        "word_emb": nrm((VOCAB, HIDDEN)),
        "pos_emb": nrm((MAX_POS, HIDDEN)),
        "type_emb": nrm((2, HIDDEN)),
        "emb_ln_g": jnp.ones((HIDDEN,), jnp.float32),
        "emb_ln_b": jnp.zeros((HIDDEN,), jnp.float32),
        "layers": [],
    }
    # classifier (H, 4) padded to (H, FC_PAD) zero columns for a lane-dense in-kernel
    # matmul/store; sliced back to 4 in the wrapper.
    fc_w = nrm((HIDDEN, OUTPUT_SIZE))
    params["fc_w"] = jnp.pad(fc_w, ((0, 0), (0, FC_PAD - OUTPUT_SIZE))).astype(jnp.bfloat16)
    params["fc_b"] = jnp.zeros((FC_PAD,), jnp.float32)

    scale = 1.0 / (HEAD_DIM ** 0.5)
    for _ in range(N_LAYERS):
        wq, wk, wv = nrm((HIDDEN, HIDDEN)), nrm((HIDDEN, HIDDEN)), nrm((HIDDEN, HIDDEN))
        # fold 1/sqrt(head_dim) into the Q columns at weight-prep time (free, host side)
        w_qkv = jnp.concatenate([wq * scale, wk, wv], axis=1).astype(jnp.bfloat16)
        params["layers"].append({
            "w_qkv": w_qkv,
            "b_qkv": jnp.zeros((3 * HIDDEN,), jnp.float32),
            "wo": nrm((HIDDEN, HIDDEN), dtype=jnp.bfloat16),
            "bo": jnp.zeros((HIDDEN,), jnp.float32),
            "ln1_g": jnp.ones((HIDDEN,), jnp.float32),
            "ln1_b": jnp.zeros((HIDDEN,), jnp.float32),
            "w1": nrm((HIDDEN, FFN_DIM), dtype=jnp.bfloat16),
            "b1": jnp.zeros((FFN_DIM,), jnp.float32),
            "w2": nrm((FFN_DIM, HIDDEN), dtype=jnp.bfloat16),
            "b2": jnp.zeros((HIDDEN,), jnp.float32),
            "ln2_g": jnp.ones((HIDDEN,), jnp.float32),
            "ln2_b": jnp.zeros((HIDDEN,), jnp.float32),
        })
    return params


# ---------------- forward (mirrors BERTClass.forward) ----------------
def bert_class_forward(params, ids):
    B, S = ids.shape
    assert S <= MAX_POS, "sequence length exceeds position-embedding table"
    assert S <= MASK_PAD
    seg_ids = jnp.zeros_like(ids)                   # token_type_ids = zeros_like(ids)
    attention_mask = ids > 0                        # attention_mask = ids > 0

    # BERT embeddings: word + position + token_type, then LayerNorm.
    # (gather is glue in plain JAX; the LN reduction runs in the Pallas kernel)
    word = jnp.take(params["word_emb"], ids, axis=0)                # (B, S, H)
    pos = params["pos_emb"][:S][None, :, :]                         # (1, S, H)
    ttype = jnp.take(params["type_emb"], seg_ids, axis=0)           # (B, S, H)
    emb = (word + pos + ttype).reshape(B * S, HIDDEN)
    x = layernorm(emb, params["emb_ln_g"], params["emb_ln_b"])      # (B*S, H) bf16
    x = x.reshape(B, S, HIDDEN)

    # additive attention-mask bias, f32, padded to a lane-dense 128-wide row: (B, 1, 128)
    bias = jnp.where(attention_mask, 0.0, -1e9).astype(jnp.float32)             # (B, S)
    bias = jnp.pad(bias, ((0, 0), (0, MASK_PAD - S)), constant_values=-1e9)
    bias = bias.reshape(B, 1, MASK_PAD)

    # one fused pallas_call per encoder layer; the last one also emits the CLS logits
    logits_padded = None
    n_layers = len(params["layers"])
    for li, lyr in enumerate(params["layers"]):
        if li < n_layers - 1:
            x = encoder_layer(x, bias, lyr)
        else:
            logits_padded = encoder_layer(x, bias, lyr,
                                          fc=(params["fc_w"], params["fc_b"]))

    # dropout layers are identity in eval mode (drop_rate is unused by the module anyway)
    return logits_padded[:, 0, :OUTPUT_SIZE]                         # self.fc(cls.view(-1, H))


if __name__ == "__main__":
    key = jax.random.PRNGKey(0)
    pkey, ikey = jax.random.split(key)
    params = init_params(pkey)

    B, S = 2, 8
    ids = jax.random.randint(ikey, (B, S), 0, VOCAB, dtype=jnp.int32)
    ids = ids.at[:, 0].set(2)   # CLS-like nonzero first token; any 0-id positions get masked

    logits = jax.jit(bert_class_forward)(params, ids)
    logits = jax.block_until_ready(logits)

    assert logits.shape == (B, OUTPUT_SIZE), logits.shape
    assert logits.dtype == jnp.float32
    print("KERNEL_OK")
</pallas_src>

<mosaic_0001>
module attributes {stable_mosaic.version = 11 : i64} {
  func.func @_ln_kernel(%arg0: i32, %arg1: memref<8x128xf32, #tpu.memory_space<vmem>>, %arg2: memref<1x128xf32, #tpu.memory_space<vmem>>, %arg3: memref<1x128xf32, #tpu.memory_space<vmem>>, %arg4: memref<8x128xbf16, #tpu.memory_space<vmem>>) attributes {dimension_semantics = [#tpu.dimension_semantics<parallel>], iteration_bounds = array<i64: 2>, scalar_prefetch = 0 : i64, scratch_operands = 0 : i64, tpu.core_type = #tpu.core_type<tc>, window_params = [{transform_indices = @transform_0, window_bounds = array<i64: 8, 128>}, {pipeline_mode = #tpu.pipeline_mode<synchronous>, transform_indices = @transform_1, window_bounds = array<i64: 1, 128>}, {pipeline_mode = #tpu.pipeline_mode<synchronous>, transform_indices = @transform_2, window_bounds = array<i64: 1, 128>}, {transform_indices = @transform_3, window_bounds = array<i64: 8, 128>}]} {
    %c0 = arith.constant 0 : index
    %c0_0 = arith.constant 0 : index
    %0 = vector.load %arg1[%c0, %c0_0] : memref<8x128xf32, #tpu.memory_space<vmem>>, vector<8x128xf32>
    %cst = arith.constant dense<0.000000e+00> : vector<8xf32>
    %1 = vector.multi_reduction <add>, %0, %cst [1] : vector<8x128xf32> to vector<8xf32>
    %2 = vector.shape_cast %1 : vector<8xf32> to vector<8x1xf32>
    %cst_1 = arith.constant 1.280000e+02 : f32
    %3 = vector.broadcast %cst_1 : f32 to vector<8x1xf32>
    %4 = arith.divf %2, %3 : vector<8x1xf32>
    %5 = vector.broadcast %4 : vector<8x1xf32> to vector<8x128xf32>
    %6 = arith.subf %0, %5 : vector<8x128xf32>
    %7 = arith.mulf %6, %6 : vector<8x128xf32>
    %cst_2 = arith.constant dense<0.000000e+00> : vector<8xf32>
    %8 = vector.multi_reduction <add>, %7, %cst_2 [1] : vector<8x128xf32> to vector<8xf32>
    %9 = vector.shape_cast %8 : vector<8xf32> to vector<8x1xf32>
    %cst_3 = arith.constant 1.280000e+02 : f32
    %10 = vector.broadcast %cst_3 : f32 to vector<8x1xf32>
    %11 = arith.divf %9, %10 : vector<8x1xf32>
    %12 = vector.broadcast %4 : vector<8x1xf32> to vector<8x128xf32>
    %13 = arith.subf %0, %12 : vector<8x128xf32>
    %cst_4 = arith.constant 9.99999996E-13 : f32
    %14 = vector.broadcast %cst_4 : f32 to vector<8x1xf32>
    %15 = arith.addf %11, %14 : vector<8x1xf32>
    %16 = math.rsqrt %15 : vector<8x1xf32>
    %17 = vector.broadcast %16 : vector<8x1xf32> to vector<8x128xf32>
    %18 = arith.mulf %13, %17 : vector<8x128xf32>
    %c0_5 = arith.constant 0 : index
    %c0_6 = arith.constant 0 : index
    %19 = vector.load %arg2[%c0_5, %c0_6] : memref<1x128xf32, #tpu.memory_space<vmem>>, vector<1x128xf32>
    %20 = vector.broadcast %19 : vector<1x128xf32> to vector<8x128xf32>
    %21 = arith.mulf %18, %20 : vector<8x128xf32>
    %c0_7 = arith.constant 0 : index
    %c0_8 = arith.constant 0 : index
    %22 = vector.load %arg3[%c0_7, %c0_8] : memref<1x128xf32, #tpu.memory_space<vmem>>, vector<1x128xf32>
    %23 = vector.broadcast %22 : vector<1x128xf32> to vector<8x128xf32>
    %24 = arith.addf %21, %23 : vector<8x128xf32>
    %25 = arith.truncf %24 : vector<8x128xf32> to vector<8x128xbf16>
    %c0_9 = arith.constant 0 : index
    %c0_10 = arith.constant 0 : index
    %26 = vector.load %arg4[%c0_9, %c0_10] : memref<8x128xbf16, #tpu.memory_space<vmem>>, vector<8x128xbf16>
    tpu.vector_store %arg4[%c0_9, %c0_10], %25 {strides = array<i32>} : memref<8x128xbf16, #tpu.memory_space<vmem>>, vector<8x128xbf16>,
    return
  }
  func.func @transform_0(%arg0: i32) -> (i32, i32) {
    %c0_i32 = arith.constant 0 : i32
    %c0_i32_0 = arith.constant 0 : i32
    return %arg0, %c0_i32 : i32, i32
  }
  func.func @transform_1(%arg0: i32) -> (i32, i32) {
    %c0_i32 = arith.constant 0 : i32
    %c0_i32_0 = arith.constant 0 : i32
    %c0_i32_1 = arith.constant 0 : i32
    return %c0_i32, %c0_i32_0 : i32, i32
  }
  func.func @transform_2(%arg0: i32) -> (i32, i32) {
    %c0_i32 = arith.constant 0 : i32
    %c0_i32_0 = arith.constant 0 : i32
    %c0_i32_1 = arith.constant 0 : i32
    return %c0_i32, %c0_i32_0 : i32, i32
  }
  func.func @transform_3(%arg0: i32) -> (i32, i32) {
    %c0_i32 = arith.constant 0 : i32
    %c0_i32_0 = arith.constant 0 : i32
    return %arg0, %c0_i32 : i32, i32
  }
}

module attributes {stable_mosaic.version = 11 : i64} {
  func.func @_encoder_layer_kernel(%arg0: i32, %arg1: memref<1x8x128xbf16, #tpu.memory_space<vmem>>, %arg2: memref<1x1x128xf32, #tpu.memory_space<vmem>>, %arg3: memref<128x384xbf16, #tpu.memory_space<vmem>>, %arg4: memref<1x384xf32, #tpu.memory_space<vmem>>, %arg5: memref<128x128xbf16, #tpu.memory_space<vmem>>, %arg6: memref<1x128xf32, #tpu.memory_space<vmem>>, %arg7: memref<1x128xf32, #tpu.memory_space<vmem>>, %arg8: memref<1x128xf32, #tpu.memory_space<vmem>>, %arg9: memref<128x512xbf16, #tpu.memory_space<vmem>>, %arg10: memref<1x512xf32, #tpu.memory_space<vmem>>, %arg11: memref<512x128xbf16, #tpu.memory_space<vmem>>, %arg12: memref<1x128xf32, #tpu.memory_space<vmem>>, %arg13: memref<1x128xf32, #tpu.memory_space<vmem>>, %arg14: memref<1x128xf32, #tpu.memory_space<vmem>>, %arg15: memref<1x8x128xbf16, #tpu.memory_space<vmem>>) attributes {dimension_semantics = [#tpu.dimension_semantics<parallel>], iteration_bounds = array<i64: 2>, scalar_prefetch = 0 : i64, scratch_operands = 0 : i64, tpu.core_type = #tpu.core_type<tc>, window_params = [{transform_indices = @transform_0, window_bounds = array<i64: 1, 8, 128>}, {transform_indices = @transform_1, window_bounds = array<i64: 1, 1, 128>}, {pipeline_mode = #tpu.pipeline_mode<synchronous>, transform_indices = @transform_2, window_bounds = array<i64: 128, 384>}, {pipeline_mode = #tpu.pipeline_mode<synchronous>, transform_indices = @transform_3, window_bounds = array<i64: 1, 384>}, {pipeline_mode = #tpu.pipeline_mode<synchronous>, transform_indices = @transform_4, window_bounds = array<i64: 128, 128>}, {pipeline_mode = #tpu.pipeline_mode<synchronous>, transform_indices = @transform_5, window_bounds = array<i64: 1, 128>}, {pipeline_mode = #tpu.pipeline_mode<synchronous>, transform_indices = @transform_6, window_bounds = array<i64: 1, 128>}, {pipeline_mode = #tpu.pipeline_mode<synchronous>, transform_indices = @transform_7, window_bounds = array<i64: 1, 128>}, {pipeline_mode = #tpu.pipeline_mode<synchronous>, transform_indices = @transform_8, window_bounds = array<i64: 128, 512>}, {pipeline_mode = #tpu.pipeline_mode<synchronous>, transform_indices = @transform_9, window_bounds = array<i64: 1, 512>}, {pipeline_mode = #tpu.pipeline_mode<synchronous>, transform_indices = @transform_10, window_bounds = array<i64: 512, 128>}, {pipeline_mode = #tpu.pipeline_mode<synchronous>, transform_indices = @transform_11, window_bounds = array<i64: 1, 128>}, {pipeline_mode = #tpu.pipeline_mode<synchronous>, transform_indices = @transform_12, window_bounds = array<i64: 1, 128>}, {pipeline_mode = #tpu.pipeline_mode<synchronous>, transform_indices = @transform_13, window_bounds = array<i64: 1, 128>}, {transform_indices = @transform_14, window_bounds = array<i64: 1, 8, 128>}]} {
    %c0 = arith.constant 0 : index
    %c0_0 = arith.constant 0 : index
    %c0_1 = arith.constant 0 : index
    %0 = vector.load %arg1[%c0, %c0_0, %c0_1] : memref<1x8x128xbf16, #tpu.memory_space<vmem>>, vector<1x8x128xbf16>
    %1 = vector.shape_cast %0 : vector<1x8x128xbf16> to vector<8x128xbf16>
    %c0_2 = arith.constant 0 : index
    %c0_3 = arith.constant 0 : index
    %c0_4 = arith.constant 0 : index
    %2 = vector.load %arg2[%c0_2, %c0_3, %c0_4] : memref<1x1x128xf32, #tpu.memory_space<vmem>>, vector<1x1x128xf32>
    %3 = vector.shape_cast %2 : vector<1x1x128xf32> to vector<1x128xf32>
    %c0_5 = arith.constant 0 : index
    %c0_6 = arith.constant 0 : index
    %4 = vector.load %arg3[%c0_5, %c0_6] : memref<128x384xbf16, #tpu.memory_space<vmem>>, vector<128x384xbf16>
    %c0_7 = arith.constant 0 : index
    %c0_8 = arith.constant 0 : index
    %5 = vector.load %arg4[%c0_7, %c0_8] : memref<1x384xf32, #tpu.memory_space<vmem>>, vector<1x384xf32>
    %c0_9 = arith.constant 0 : index
    %c0_10 = arith.constant 0 : index
    %6 = vector.load %arg5[%c0_9, %c0_10] : memref<128x128xbf16, #tpu.memory_space<vmem>>, vector<128x128xbf16>
    %c0_11 = arith.constant 0 : index
    %c0_12 = arith.constant 0 : index
    %7 = vector.load %arg6[%c0_11, %c0_12] : memref<1x128xf32, #tpu.memory_space<vmem>>, vector<1x128xf32>
    %c0_13 = arith.constant 0 : index
    %c0_14 = arith.constant 0 : index
    %8 = vector.load %arg7[%c0_13, %c0_14] : memref<1x128xf32, #tpu.memory_space<vmem>>, vector<1x128xf32>
    %c0_15 = arith.constant 0 : index
    %c0_16 = arith.constant 0 : index
    %9 = vector.load %arg8[%c0_15, %c0_16] : memref<1x128xf32, #tpu.memory_space<vmem>>, vector<1x128xf32>
    %c0_17 = arith.constant 0 : index
    %c0_18 = arith.constant 0 : index
    %10 = vector.load %arg9[%c0_17, %c0_18] : memref<128x512xbf16, #tpu.memory_space<vmem>>, vector<128x512xbf16>
    %c0_19 = arith.constant 0 : index
    %c0_20 = arith.constant 0 : index
    %11 = vector.load %arg10[%c0_19, %c0_20] : memref<1x512xf32, #tpu.memory_space<vmem>>, vector<1x512xf32>
    %c0_21 = arith.constant 0 : index
    %c0_22 = arith.constant 0 : index
    %12 = vector.load %arg11[%c0_21, %c0_22] : memref<512x128xbf16, #tpu.memory_space<vmem>>, vector<512x128xbf16>
    %c0_23 = arith.constant 0 : index
    %c0_24 = arith.constant 0 : index
    %13 = vector.load %arg12[%c0_23, %c0_24] : memref<1x128xf32, #tpu.memory_space<vmem>>, vector<1x128xf32>
    %c0_25 = arith.constant 0 : index
    %c0_26 = arith.constant 0 : index
    %14 = vector.load %arg13[%c0_25, %c0_26] : memref<1x128xf32, #tpu.memory_space<vmem>>, vector<1x128xf32>
    %c0_27 = arith.constant 0 : index
    %c0_28 = arith.constant 0 : index
    %15 = vector.load %arg14[%c0_27, %c0_28] : memref<1x128xf32, #tpu.memory_space<vmem>>, vector<1x128xf32>
    %16 = arith.extf %1 : vector<8x128xbf16> to vector<8x128xf32>
    %cst = arith.constant dense<0.000000e+00> : vector<8x384xf32>
    %17 = tpu.matmul %1, %4, %cst {dimension_numbers = #tpu.dot_dimension_numbers<[1], [0], [0], [1], [0, 0, 1, 1], [], []>} : vector<8x128xbf16>, vector<128x384xbf16>, vector<8x384xf32> -> vector<8x384xf32>
    %18 = vector.broadcast %5 : vector<1x384xf32> to vector<8x384xf32>
    %19 = arith.addf %17, %18 : vector<8x384xf32>
    %20 = arith.truncf %19 : vector<8x384xf32> to vector<8x384xbf16>
    %21 = vector.extract_strided_slice %20 {offsets = [0, 0], sizes = [8, 128], strides = [1, 1]} : vector<8x384xbf16> to vector<8x128xbf16>
    %22 = vector.extract_strided_slice %20 {offsets = [0, 128], sizes = [8, 128], strides = [1, 1]} : vector<8x384xbf16> to vector<8x128xbf16>
    %23 = vector.extract_strided_slice %20 {offsets = [0, 256], sizes = [8, 128], strides = [1, 1]} : vector<8x384xbf16> to vector<8x128xbf16>
    %24 = tpu.iota {dimensions = array<i32: 1>} : vector<1x128xi32>
    %cst_29 = arith.constant 0.000000e+00 : f32
    %25 = vector.broadcast %cst_29 : f32 to vector<8x128xf32>
    %c0_i32 = arith.constant 0 : i32
    %26 = vector.broadcast %c0_i32 : i32 to vector<1x128xi32>
    %27 = arith.cmpi sge, %24, %26 : vector<1x128xi32>
    %c64_i32 = arith.constant 64 : i32
    %28 = vector.broadcast %c64_i32 : i32 to vector<1x128xi32>
    %29 = arith.cmpi slt, %24, %28 : vector<1x128xi32>
    %30 = arith.andi %27, %29 : vector<1x128xi1>
    %31 = arith.extui %30 : vector<1x128xi1> to vector<1x128xi32>
    %32 = arith.sitofp %31 : vector<1x128xi32> to vector<1x128xf32>
    %33 = arith.truncf %32 : vector<1x128xf32> to vector<1x128xbf16>
    %34 = vector.broadcast %33 : vector<1x128xbf16> to vector<8x128xbf16>
    %35 = arith.mulf %22, %34 : vector<8x128xbf16>
    %cst_30 = arith.constant dense<0.000000e+00> : vector<8x8xf32>
    %36 = tpu.matmul %21, %35, %cst_30 {dimension_numbers = #tpu.dot_dimension_numbers<[1], [1], [0], [0], [0, 0, 1, 0], [], []>} : vector<8x128xbf16>, vector<8x128xbf16>, vector<8x8xf32> -> vector<8x8xf32>
    %37 = vector.extract_strided_slice %3 {offsets = [0, 0], sizes = [1, 8], strides = [1, 1]} : vector<1x128xf32> to vector<1x8xf32>
    %38 = vector.broadcast %37 : vector<1x8xf32> to vector<8x8xf32>
    %39 = arith.addf %36, %38 : vector<8x8xf32>
    %cst_31 = arith.constant dense<0xFF800000> : vector<8xf32>
    %40 = vector.multi_reduction <maximumf>, %39, %cst_31 [1] : vector<8x8xf32> to vector<8xf32>
    %41 = vector.shape_cast %40 : vector<8xf32> to vector<8x1xf32>
    %42 = vector.broadcast %41 : vector<8x1xf32> to vector<8x8xf32>
    %43 = arith.subf %39, %42 : vector<8x8xf32>
    %44 = math.exp %43 : vector<8x8xf32>
    %cst_32 = arith.constant dense<0.000000e+00> : vector<8xf32>
    %45 = vector.multi_reduction <add>, %44, %cst_32 [1] : vector<8x8xf32> to vector<8xf32>
    %46 = vector.shape_cast %45 : vector<8xf32> to vector<8x1xf32>
    %47 = tpu.reciprocal %46 {approx = true} : vector<8x1xf32> -> vector<8x1xf32>
    %48 = arith.truncf %44 : vector<8x8xf32> to vector<8x8xbf16>
    %49 = vector.broadcast %33 : vector<1x128xbf16> to vector<8x128xbf16>
    %50 = arith.mulf %23, %49 : vector<8x128xbf16>
    %cst_33 = arith.constant dense<0.000000e+00> : vector<8x128xf32>
    %51 = tpu.matmul %48, %50, %cst_33 {dimension_numbers = #tpu.dot_dimension_numbers<[1], [0], [0], [1], [0, 0, 1, 1], [], []>} : vector<8x8xbf16>, vector<8x128xbf16>, vector<8x128xf32> -> vector<8x128xf32>
    %52 = vector.broadcast %47 : vector<8x1xf32> to vector<8x128xf32>
    %53 = arith.mulf %51, %52 : vector<8x128xf32>
    %54 = arith.addf %25, %53 : vector<8x128xf32>
    %c64_i32_34 = arith.constant 64 : i32
    %55 = vector.broadcast %c64_i32_34 : i32 to vector<1x128xi32>
    %56 = arith.cmpi sge, %24, %55 : vector<1x128xi32>
    %c128_i32 = arith.constant 128 : i32
    %57 = vector.broadcast %c128_i32 : i32 to vector<1x128xi32>
    %58 = arith.cmpi slt, %24, %57 : vector<1x128xi32>
    %59 = arith.andi %56, %58 : vector<1x128xi1>
    %60 = arith.extui %59 : vector<1x128xi1> to vector<1x128xi32>
    %61 = arith.sitofp %60 : vector<1x128xi32> to vector<1x128xf32>
    %62 = arith.truncf %61 : vector<1x128xf32> to vector<1x128xbf16>
    %63 = vector.broadcast %62 : vector<1x128xbf16> to vector<8x128xbf16>
    %64 = arith.mulf %22, %63 : vector<8x128xbf16>
    %cst_35 = arith.constant dense<0.000000e+00> : vector<8x8xf32>
    %65 = tpu.matmul %21, %64, %cst_35 {dimension_numbers = #tpu.dot_dimension_numbers<[1], [1], [0], [0], [0, 0, 1, 0], [], []>} : vector<8x128xbf16>, vector<8x128xbf16>, vector<8x8xf32> -> vector<8x8xf32>
    %66 = vector.extract_strided_slice %3 {offsets = [0, 0], sizes = [1, 8], strides = [1, 1]} : vector<1x128xf32> to vector<1x8xf32>
    %67 = vector.broadcast %66 : vector<1x8xf32> to vector<8x8xf32>
    %68 = arith.addf %65, %67 : vector<8x8xf32>
    %cst_36 = arith.constant dense<0xFF800000> : vector<8xf32>
    %69 = vector.multi_reduction <maximumf>, %68, %cst_36 [1] : vector<8x8xf32> to vector<8xf32>
    %70 = vector.shape_cast %69 : vector<8xf32> to vector<8x1xf32>
    %71 = vector.broadcast %70 : vector<8x1xf32> to vector<8x8xf32>
    %72 = arith.subf %68, %71 : vector<8x8xf32>
    %73 = math.exp %72 : vector<8x8xf32>
    %cst_37 = arith.constant dense<0.000000e+00> : vector<8xf32>
    %74 = vector.multi_reduction <add>, %73, %cst_37 [1] : vector<8x8xf32> to vector<8xf32>
    %75 = vector.shape_cast %74 : vector<8xf32> to vector<8x1xf32>
    %76 = tpu.reciprocal %75 {approx = true} : vector<8x1xf32> -> vector<8x1xf32>
    %77 = arith.truncf %73 : vector<8x8xf32> to vector<8x8xbf16>
    %78 = vector.broadcast %62 : vector<1x128xbf16> to vector<8x128xbf16>
    %79 = arith.mulf %23, %78 : vector<8x128xbf16>
    %cst_38 = arith.constant dense<0.000000e+00> : vector<8x128xf32>
    %80 = tpu.matmul %77, %79, %cst_38 {dimension_numbers = #tpu.dot_dimension_numbers<[1], [0], [0], [1], [0, 0, 1, 1], [], []>} : vector<8x8xbf16>, vector<8x128xbf16>, vector<8x128xf32> -> vector<8x128xf32>
    %81 = vector.broadcast %76 : vector<8x1xf32> to vector<8x128xf32>
    %82 = arith.mulf %80, %81 : vector<8x128xf32>
    %83 = arith.addf %54, %82 : vector<8x128xf32>
    %84 = arith.truncf %83 : vector<8x128xf32> to vector<8x128xbf16>
    %cst_39 = arith.constant dense<0.000000e+00> : vector<8x128xf32>
    %85 = tpu.matmul %84, %6, %cst_39 {dimension_numbers = #tpu.dot_dimension_numbers<[1], [0], [0], [1], [0, 0, 1, 1], [], []>} : vector<8x128xbf16>, vector<128x128xbf16>, vector<8x128xf32> -> vector<8x128xf32>
    %86 = vector.broadcast %7 : vector<1x128xf32> to vector<8x128xf32>
    %87 = arith.addf %85, %86 : vector<8x128xf32>
    %88 = arith.addf %87, %16 : vector<8x128xf32>
    %cst_40 = arith.constant dense<0.000000e+00> : vector<8xf32>
    %89 = vector.multi_reduction <add>, %88, %cst_40 [1] : vector<8x128xf32> to vector<8xf32>
    %90 = vector.shape_cast %89 : vector<8xf32> to vector<8x1xf32>
    %cst_41 = arith.constant 1.280000e+02 : f32
    %91 = vector.broadcast %cst_41 : f32 to vector<8x1xf32>
    %92 = arith.divf %90, %91 : vector<8x1xf32>
    %93 = vector.broadcast %92 : vector<8x1xf32> to vector<8x128xf32>
    %94 = arith.subf %88, %93 : vector<8x128xf32>
    %95 = arith.mulf %94, %94 : vector<8x128xf32>
    %cst_42 = arith.constant dense<0.000000e+00> : vector<8xf32>
    %96 = vector.multi_reduction <add>, %95, %cst_42 [1] : vector<8x128xf32> to vector<8xf32>
    %97 = vector.shape_cast %96 : vector<8xf32> to vector<8x1xf32>
    %cst_43 = arith.constant 1.280000e+02 : f32
    %98 = vector.broadcast %cst_43 : f32 to vector<8x1xf32>
    %99 = arith.divf %97, %98 : vector<8x1xf32>
    %100 = vector.broadcast %92 : vector<8x1xf32> to vector<8x128xf32>
    %101 = arith.subf %88, %100 : vector<8x128xf32>
    %cst_44 = arith.constant 9.99999996E-13 : f32
    %102 = vector.broadcast %cst_44 : f32 to vector<8x1xf32>
    %103 = arith.addf %99, %102 : vector<8x1xf32>
    %104 = math.rsqrt %103 : vector<8x1xf32>
    %105 = vector.broadcast %104 : vector<8x1xf32> to vector<8x128xf32>
    %106 = arith.mulf %101, %105 : vector<8x128xf32>
    %107 = vector.broadcast %8 : vector<1x128xf32> to vector<8x128xf32>
    %108 = arith.mulf %106, %107 : vector<8x128xf32>
    %109 = vector.broadcast %9 : vector<1x128xf32> to vector<8x128xf32>
    %110 = arith.addf %108, %109 : vector<8x128xf32>
    %111 = arith.truncf %110 : vector<8x128xf32> to vector<8x128xbf16>
    %cst_45 = arith.constant dense<0.000000e+00> : vector<8x512xf32>
    %112 = tpu.matmul %111, %10, %cst_45 {dimension_numbers = #tpu.dot_dimension_numbers<[1], [0], [0], [1], [0, 0, 1, 1], [], []>} : vector<8x128xbf16>, vector<128x512xbf16>, vector<8x512xf32> -> vector<8x512xf32>
    %113 = vector.broadcast %11 : vector<1x512xf32> to vector<8x512xf32>
    %114 = arith.addf %112, %113 : vector<8x512xf32>
    %115 = arith.mulf %114, %114 : vector<8x512xf32>
    %116 = arith.mulf %114, %115 : vector<8x512xf32>
    %cst_46 = arith.constant 4.471500e-02 : f32
    %117 = vector.broadcast %cst_46 : f32 to vector<8x512xf32>
    %118 = arith.mulf %117, %116 : vector<8x512xf32>
    %119 = arith.addf %114, %118 : vector<8x512xf32>
    %cst_47 = arith.constant 0.797884583 : f32
    %120 = vector.broadcast %cst_47 : f32 to vector<8x512xf32>
    %121 = arith.mulf %120, %119 : vector<8x512xf32>
    %122 = math.tanh %121 : vector<8x512xf32>
    %cst_48 = arith.constant 1.000000e+00 : f32
    %123 = vector.broadcast %cst_48 : f32 to vector<8x512xf32>
    %124 = arith.addf %123, %122 : vector<8x512xf32>
    %cst_49 = arith.constant 5.000000e-01 : f32
    %125 = vector.broadcast %cst_49 : f32 to vector<8x512xf32>
    %126 = arith.mulf %125, %124 : vector<8x512xf32>
    %127 = arith.mulf %114, %126 : vector<8x512xf32>
    %128 = arith.truncf %127 : vector<8x512xf32> to vector<8x512xbf16>
    %cst_50 = arith.constant dense<0.000000e+00> : vector<8x128xf32>
    %129 = tpu.matmul %128, %12, %cst_50 {dimension_numbers = #tpu.dot_dimension_numbers<[1], [0], [0], [1], [0, 0, 1, 1], [], []>} : vector<8x512xbf16>, vector<512x128xbf16>, vector<8x128xf32> -> vector<8x128xf32>
    %130 = vector.broadcast %13 : vector<1x128xf32> to vector<8x128xf32>
    %131 = arith.addf %129, %130 : vector<8x128xf32>
    %132 = arith.addf %131, %110 : vector<8x128xf32>
    %cst_51 = arith.constant dense<0.000000e+00> : vector<8xf32>
    %133 = vector.multi_reduction <add>, %132, %cst_51 [1] : vector<8x128xf32> to vector<8xf32>
    %134 = vector.shape_cast %133 : vector<8xf32> to vector<8x1xf32>
    %cst_52 = arith.constant 1.280000e+02 : f32
    %135 = vector.broadcast %cst_52 : f32 to vector<8x1xf32>
    %136 = arith.divf %134, %135 : vector<8x1xf32>
    %137 = vector.broadcast %136 : vector<8x1xf32> to vector<8x128xf32>
    %138 = arith.subf %132, %137 : vector<8x128xf32>
    %139 = arith.mulf %138, %138 : vector<8x128xf32>
    %cst_53 = arith.constant dense<0.000000e+00> : vector<8xf32>
    %140 = vector.multi_reduction <add>, %139, %cst_53 [1] : vector<8x128xf32> to vector<8xf32>
    %141 = vector.shape_cast %140 : vector<8xf32> to vector<8x1xf32>
    %cst_54 = arith.constant 1.280000e+02 : f32
    %142 = vector.broadcast %cst_54 : f32 to vector<8x1xf32>
    %143 = arith.divf %141, %142 : vector<8x1xf32>
    %144 = vector.broadcast %136 : vector<8x1xf32> to vector<8x128xf32>
    %145 = arith.subf %132, %144 : vector<8x128xf32>
    %cst_55 = arith.constant 9.99999996E-13 : f32
    %146 = vector.broadcast %cst_55 : f32 to vector<8x1xf32>
    %147 = arith.addf %143, %146 : vector<8x1xf32>
    %148 = math.rsqrt %147 : vector<8x1xf32>
    %149 = vector.broadcast %148 : vector<8x1xf32> to vector<8x128xf32>
    %150 = arith.mulf %145, %149 : vector<8x128xf32>
    %151 = vector.broadcast %14 : vector<1x128xf32> to vector<8x128xf32>
    %152 = arith.mulf %150, %151 : vector<8x128xf32>
    %153 = vector.broadcast %15 : vector<1x128xf32> to vector<8x128xf32>
    %154 = arith.addf %152, %153 : vector<8x128xf32>
    %155 = arith.truncf %154 : vector<8x128xf32> to vector<8x128xbf16>
    %c0_56 = arith.constant 0 : index
    %c0_57 = arith.constant 0 : index
    %c0_58 = arith.constant 0 : index
    %156 = vector.load %arg15[%c0_56, %c0_57, %c0_58] : memref<1x8x128xbf16, #tpu.memory_space<vmem>>, vector<1x8x128xbf16>
    %157 = vector.shape_cast %156 : vector<1x8x128xbf16> to vector<8x128xbf16>
    %158 = vector.shape_cast %155 : vector<8x128xbf16> to vector<1x8x128xbf16>
    tpu.vector_store %arg15[%c0_56, %c0_57, %c0_58], %158 {strides = array<i32>} : memref<1x8x128xbf16, #tpu.memory_space<vmem>>, vector<1x8x128xbf16>,
    return
  }
  func.func @transform_0(%arg0: i32) -> (i32, i32, i32) {
    %c0_i32 = arith.constant 0 : i32
    %c0_i32_0 = arith.constant 0 : i32
    %c0_i32_1 = arith.constant 0 : i32
    return %arg0, %c0_i32, %c0_i32_0 : i32, i32, i32
  }
  func.func @transform_1(%arg0: i32) -> (i32, i32, i32) {
    %c0_i32 = arith.constant 0 : i32
    %c0_i32_0 = arith.constant 0 : i32
    %c0_i32_1 = arith.constant 0 : i32
    return %arg0, %c0_i32, %c0_i32_0 : i32, i32, i32
  }
  func.func @transform_2(%arg0: i32) -> (i32, i32) {
    %c0_i32 = arith.constant 0 : i32
    %c0_i32_0 = arith.constant 0 : i32
    %c0_i32_1 = arith.constant 0 : i32
    return %c0_i32, %c0_i32_0 : i32, i32
  }
  func.func @transform_3(%arg0: i32) -> (i32, i32) {
    %c0_i32 = arith.constant 0 : i32
    %c0_i32_0 = arith.constant 0 : i32
    %c0_i32_1 = arith.constant 0 : i32
    return %c0_i32, %c0_i32_0 : i32, i32
  }
  func.func @transform_4(%arg0: i32) -> (i32, i32) {
    %c0_i32 = arith.constant 0 : i32
    %c0_i32_0 = arith.constant 0 : i32
    %c0_i32_1 = arith.constant 0 : i32
    return %c0_i32, %c0_i32_0 : i32, i32
  }
  func.func @transform_5(%arg0: i32) -> (i32, i32) {
    %c0_i32 = arith.constant 0 : i32
    %c0_i32_0 = arith.constant 0 : i32
    %c0_i32_1 = arith.constant 0 : i32
    return %c0_i32, %c0_i32_0 : i32, i32
  }
  func.func @transform_6(%arg0: i32) -> (i32, i32) {
    %c0_i32 = arith.constant 0 : i32
    %c0_i32_0 = arith.constant 0 : i32
    %c0_i32_1 = arith.constant 0 : i32
    return %c0_i32, %c0_i32_0 : i32, i32
  }
  func.func @transform_7(%arg0: i32) -> (i32, i32) {
    %c0_i32 = arith.constant 0 : i32
    %c0_i32_0 = arith.constant 0 : i32
    %c0_i32_1 = arith.constant 0 : i32
    return %c0_i32, %c0_i32_0 : i32, i32
  }
  func.func @transform_8(%arg0: i32) -> (i32, i32) {
    %c0_i32 = arith.constant 0 : i32
    %c0_i32_0 = arith.constant 0 : i32
    %c0_i32_1 = arith.constant 0 : i32
    return %c0_i32, %c0_i32_0 : i32, i32
  }
  func.func @transform_9(%arg0: i32) -> (i32, i32) {
    %c0_i32 = arith.constant 0 : i32
    %c0_i32_0 = arith.constant 0 : i32
    %c0_i32_1 = arith.constant 0 : i32
    return %c0_i32, %c0_i32_0 : i32, i32
  }
  func.func @transform_10(%arg0: i32) -> (i32, i32) {
    %c0_i32 = arith.constant 0 : i32
    %c0_i32_0 = arith.constant 0 : i32
    %c0_i32_1 = arith.constant 0 : i32
    return %c0_i32, %c0_i32_0 : i32, i32
  }
  func.func @transform_11(%arg0: i32) -> (i32, i32) {
    %c0_i32 = arith.constant 0 : i32
    %c0_i32_0 = arith.constant 0 : i32
    %c0_i32_1 = arith.constant 0 : i32
    return %c0_i32, %c0_i32_0 : i32, i32
  }
  func.func @transform_12(%arg0: i32) -> (i32, i32) {
    %c0_i32 = arith.constant 0 : i32
    %c0_i32_0 = arith.constant 0 : i32
    %c0_i32_1 = arith.constant 0 : i32
    return %c0_i32, %c0_i32_0 : i32, i32
  }
  func.func @transform_13(%arg0: i32) -> (i32, i32) {
    %c0_i32 = arith.constant 0 : i32
    %c0_i32_0 = arith.constant 0 : i32
    %c0_i32_1 = arith.constant 0 : i32
    return %c0_i32, %c0_i32_0 : i32, i32
  }
  func.func @transform_14(%arg0: i32) -> (i32, i32, i32) {
    %c0_i32 = arith.constant 0 : i32
    %c0_i32_0 = arith.constant 0 : i32
    %c0_i32_1 = arith.constant 0 : i32
    return %arg0, %c0_i32, %c0_i32_0 : i32, i32, i32
  }
}

module attributes {stable_mosaic.version = 11 : i64} {
  func.func @_encoder_layer_cls_kernel(%arg0: i32, %arg1: memref<1x8x128xbf16, #tpu.memory_space<vmem>>, %arg2: memref<1x1x128xf32, #tpu.memory_space<vmem>>, %arg3: memref<128x384xbf16, #tpu.memory_space<vmem>>, %arg4: memref<1x384xf32, #tpu.memory_space<vmem>>, %arg5: memref<128x128xbf16, #tpu.memory_space<vmem>>, %arg6: memref<1x128xf32, #tpu.memory_space<vmem>>, %arg7: memref<1x128xf32, #tpu.memory_space<vmem>>, %arg8: memref<1x128xf32, #tpu.memory_space<vmem>>, %arg9: memref<128x512xbf16, #tpu.memory_space<vmem>>, %arg10: memref<1x512xf32, #tpu.memory_space<vmem>>, %arg11: memref<512x128xbf16, #tpu.memory_space<vmem>>, %arg12: memref<1x128xf32, #tpu.memory_space<vmem>>, %arg13: memref<1x128xf32, #tpu.memory_space<vmem>>, %arg14: memref<1x128xf32, #tpu.memory_space<vmem>>, %arg15: memref<128x128xbf16, #tpu.memory_space<vmem>>, %arg16: memref<1x128xf32, #tpu.memory_space<vmem>>, %arg17: memref<1x1x128xf32, #tpu.memory_space<vmem>>) attributes {dimension_semantics = [#tpu.dimension_semantics<parallel>], iteration_bounds = array<i64: 2>, scalar_prefetch = 0 : i64, scratch_operands = 0 : i64, tpu.core_type = #tpu.core_type<tc>, window_params = [{transform_indices = @transform_0, window_bounds = array<i64: 1, 8, 128>}, {transform_indices = @transform_1, window_bounds = array<i64: 1, 1, 128>}, {pipeline_mode = #tpu.pipeline_mode<synchronous>, transform_indices = @transform_2, window_bounds = array<i64: 128, 384>}, {pipeline_mode = #tpu.pipeline_mode<synchronous>, transform_indices = @transform_3, window_bounds = array<i64: 1, 384>}, {pipeline_mode = #tpu.pipeline_mode<synchronous>, transform_indices = @transform_4, window_bounds = array<i64: 128, 128>}, {pipeline_mode = #tpu.pipeline_mode<synchronous>, transform_indices = @transform_5, window_bounds = array<i64: 1, 128>}, {pipeline_mode = #tpu.pipeline_mode<synchronous>, transform_indices = @transform_6, window_bounds = array<i64: 1, 128>}, {pipeline_mode = #tpu.pipeline_mode<synchronous>, transform_indices = @transform_7, window_bounds = array<i64: 1, 128>}, {pipeline_mode = #tpu.pipeline_mode<synchronous>, transform_indices = @transform_8, window_bounds = array<i64: 128, 512>}, {pipeline_mode = #tpu.pipeline_mode<synchronous>, transform_indices = @transform_9, window_bounds = array<i64: 1, 512>}, {pipeline_mode = #tpu.pipeline_mode<synchronous>, transform_indices = @transform_10, window_bounds = array<i64: 512, 128>}, {pipeline_mode = #tpu.pipeline_mode<synchronous>, transform_indices = @transform_11, window_bounds = array<i64: 1, 128>}, {pipeline_mode = #tpu.pipeline_mode<synchronous>, transform_indices = @transform_12, window_bounds = array<i64: 1, 128>}, {pipeline_mode = #tpu.pipeline_mode<synchronous>, transform_indices = @transform_13, window_bounds = array<i64: 1, 128>}, {pipeline_mode = #tpu.pipeline_mode<synchronous>, transform_indices = @transform_14, window_bounds = array<i64: 128, 128>}, {pipeline_mode = #tpu.pipeline_mode<synchronous>, transform_indices = @transform_15, window_bounds = array<i64: 1, 128>}, {transform_indices = @transform_16, window_bounds = array<i64: 1, 1, 128>}]} {
    %c0 = arith.constant 0 : index
    %c0_0 = arith.constant 0 : index
    %c0_1 = arith.constant 0 : index
    %0 = vector.load %arg1[%c0, %c0_0, %c0_1] : memref<1x8x128xbf16, #tpu.memory_space<vmem>>, vector<1x8x128xbf16>
    %1 = vector.shape_cast %0 : vector<1x8x128xbf16> to vector<8x128xbf16>
    %c0_2 = arith.constant 0 : index
    %c0_3 = arith.constant 0 : index
    %c0_4 = arith.constant 0 : index
    %2 = vector.load %arg2[%c0_2, %c0_3, %c0_4] : memref<1x1x128xf32, #tpu.memory_space<vmem>>, vector<1x1x128xf32>
    %3 = vector.shape_cast %2 : vector<1x1x128xf32> to vector<1x128xf32>
    %c0_5 = arith.constant 0 : index
    %c0_6 = arith.constant 0 : index
    %4 = vector.load %arg3[%c0_5, %c0_6] : memref<128x384xbf16, #tpu.memory_space<vmem>>, vector<128x384xbf16>
    %c0_7 = arith.constant 0 : index
    %c0_8 = arith.constant 0 : index
    %5 = vector.load %arg4[%c0_7, %c0_8] : memref<1x384xf32, #tpu.memory_space<vmem>>, vector<1x384xf32>
    %c0_9 = arith.constant 0 : index
    %c0_10 = arith.constant 0 : index
    %6 = vector.load %arg5[%c0_9, %c0_10] : memref<128x128xbf16, #tpu.memory_space<vmem>>, vector<128x128xbf16>
    %c0_11 = arith.constant 0 : index
    %c0_12 = arith.constant 0 : index
    %7 = vector.load %arg6[%c0_11, %c0_12] : memref<1x128xf32, #tpu.memory_space<vmem>>, vector<1x128xf32>
    %c0_13 = arith.constant 0 : index
    %c0_14 = arith.constant 0 : index
    %8 = vector.load %arg7[%c0_13, %c0_14] : memref<1x128xf32, #tpu.memory_space<vmem>>, vector<1x128xf32>
    %c0_15 = arith.constant 0 : index
    %c0_16 = arith.constant 0 : index
    %9 = vector.load %arg8[%c0_15, %c0_16] : memref<1x128xf32, #tpu.memory_space<vmem>>, vector<1x128xf32>
    %c0_17 = arith.constant 0 : index
    %c0_18 = arith.constant 0 : index
    %10 = vector.load %arg9[%c0_17, %c0_18] : memref<128x512xbf16, #tpu.memory_space<vmem>>, vector<128x512xbf16>
    %c0_19 = arith.constant 0 : index
    %c0_20 = arith.constant 0 : index
    %11 = vector.load %arg10[%c0_19, %c0_20] : memref<1x512xf32, #tpu.memory_space<vmem>>, vector<1x512xf32>
    %c0_21 = arith.constant 0 : index
    %c0_22 = arith.constant 0 : index
    %12 = vector.load %arg11[%c0_21, %c0_22] : memref<512x128xbf16, #tpu.memory_space<vmem>>, vector<512x128xbf16>
    %c0_23 = arith.constant 0 : index
    %c0_24 = arith.constant 0 : index
    %13 = vector.load %arg12[%c0_23, %c0_24] : memref<1x128xf32, #tpu.memory_space<vmem>>, vector<1x128xf32>
    %c0_25 = arith.constant 0 : index
    %c0_26 = arith.constant 0 : index
    %14 = vector.load %arg13[%c0_25, %c0_26] : memref<1x128xf32, #tpu.memory_space<vmem>>, vector<1x128xf32>
    %c0_27 = arith.constant 0 : index
    %c0_28 = arith.constant 0 : index
    %15 = vector.load %arg14[%c0_27, %c0_28] : memref<1x128xf32, #tpu.memory_space<vmem>>, vector<1x128xf32>
    %16 = arith.extf %1 : vector<8x128xbf16> to vector<8x128xf32>
    %cst = arith.constant dense<0.000000e+00> : vector<8x384xf32>
    %17 = tpu.matmul %1, %4, %cst {dimension_numbers = #tpu.dot_dimension_numbers<[1], [0], [0], [1], [0, 0, 1, 1], [], []>} : vector<8x128xbf16>, vector<128x384xbf16>, vector<8x384xf32> -> vector<8x384xf32>
    %18 = vector.broadcast %5 : vector<1x384xf32> to vector<8x384xf32>
    %19 = arith.addf %17, %18 : vector<8x384xf32>
    %20 = arith.truncf %19 : vector<8x384xf32> to vector<8x384xbf16>
    %21 = vector.extract_strided_slice %20 {offsets = [0, 0], sizes = [8, 128], strides = [1, 1]} : vector<8x384xbf16> to vector<8x128xbf16>
    %22 = vector.extract_strided_slice %20 {offsets = [0, 128], sizes = [8, 128], strides = [1, 1]} : vector<8x384xbf16> to vector<8x128xbf16>
    %23 = vector.extract_strided_slice %20 {offsets = [0, 256], sizes = [8, 128], strides = [1, 1]} : vector<8x384xbf16> to vector<8x128xbf16>
    %24 = tpu.iota {dimensions = array<i32: 1>} : vector<1x128xi32>
    %cst_29 = arith.constant 0.000000e+00 : f32
    %25 = vector.broadcast %cst_29 : f32 to vector<8x128xf32>
    %c0_i32 = arith.constant 0 : i32
    %26 = vector.broadcast %c0_i32 : i32 to vector<1x128xi32>
    %27 = arith.cmpi sge, %24, %26 : vector<1x128xi32>
    %c64_i32 = arith.constant 64 : i32
    %28 = vector.broadcast %c64_i32 : i32 to vector<1x128xi32>
    %29 = arith.cmpi slt, %24, %28 : vector<1x128xi32>
    %30 = arith.andi %27, %29 : vector<1x128xi1>
    %31 = arith.extui %30 : vector<1x128xi1> to vector<1x128xi32>
    %32 = arith.sitofp %31 : vector<1x128xi32> to vector<1x128xf32>
    %33 = arith.truncf %32 : vector<1x128xf32> to vector<1x128xbf16>
    %34 = vector.broadcast %33 : vector<1x128xbf16> to vector<8x128xbf16>
    %35 = arith.mulf %22, %34 : vector<8x128xbf16>
    %cst_30 = arith.constant dense<0.000000e+00> : vector<8x8xf32>
    %36 = tpu.matmul %21, %35, %cst_30 {dimension_numbers = #tpu.dot_dimension_numbers<[1], [1], [0], [0], [0, 0, 1, 0], [], []>} : vector<8x128xbf16>, vector<8x128xbf16>, vector<8x8xf32> -> vector<8x8xf32>
    %37 = vector.extract_strided_slice %3 {offsets = [0, 0], sizes = [1, 8], strides = [1, 1]} : vector<1x128xf32> to vector<1x8xf32>
    %38 = vector.broadcast %37 : vector<1x8xf32> to vector<8x8xf32>
    %39 = arith.addf %36, %38 : vector<8x8xf32>
    %cst_31 = arith.constant dense<0xFF800000> : vector<8xf32>
    %40 = vector.multi_reduction <maximumf>, %39, %cst_31 [1] : vector<8x8xf32> to vector<8xf32>
    %41 = vector.shape_cast %40 : vector<8xf32> to vector<8x1xf32>
    %42 = vector.broadcast %41 : vector<8x1xf32> to vector<8x8xf32>
    %43 = arith.subf %39, %42 : vector<8x8xf32>
    %44 = math.exp %43 : vector<8x8xf32>
    %cst_32 = arith.constant dense<0.000000e+00> : vector<8xf32>
    %45 = vector.multi_reduction <add>, %44, %cst_32 [1] : vector<8x8xf32> to vector<8xf32>
    %46 = vector.shape_cast %45 : vector<8xf32> to vector<8x1xf32>
    %47 = tpu.reciprocal %46 {approx = true} : vector<8x1xf32> -> vector<8x1xf32>
    %48 = arith.truncf %44 : vector<8x8xf32> to vector<8x8xbf16>
    %49 = vector.broadcast %33 : vector<1x128xbf16> to vector<8x128xbf16>
    %50 = arith.mulf %23, %49 : vector<8x128xbf16>
    %cst_33 = arith.constant dense<0.000000e+00> : vector<8x128xf32>
    %51 = tpu.matmul %48, %50, %cst_33 {dimension_numbers = #tpu.dot_dimension_numbers<[1], [0], [0], [1], [0, 0, 1, 1], [], []>} : vector<8x8xbf16>, vector<8x128xbf16>, vector<8x128xf32> -> vector<8x128xf32>
    %52 = vector.broadcast %47 : vector<8x1xf32> to vector<8x128xf32>
    %53 = arith.mulf %51, %52 : vector<8x128xf32>
    %54 = arith.addf %25, %53 : vector<8x128xf32>
    %c64_i32_34 = arith.constant 64 : i32
    %55 = vector.broadcast %c64_i32_34 : i32 to vector<1x128xi32>
    %56 = arith.cmpi sge, %24, %55 : vector<1x128xi32>
    %c128_i32 = arith.constant 128 : i32
    %57 = vector.broadcast %c128_i32 : i32 to vector<1x128xi32>
    %58 = arith.cmpi slt, %24, %57 : vector<1x128xi32>
    %59 = arith.andi %56, %58 : vector<1x128xi1>
    %60 = arith.extui %59 : vector<1x128xi1> to vector<1x128xi32>
    %61 = arith.sitofp %60 : vector<1x128xi32> to vector<1x128xf32>
    %62 = arith.truncf %61 : vector<1x128xf32> to vector<1x128xbf16>
    %63 = vector.broadcast %62 : vector<1x128xbf16> to vector<8x128xbf16>
    %64 = arith.mulf %22, %63 : vector<8x128xbf16>
    %cst_35 = arith.constant dense<0.000000e+00> : vector<8x8xf32>
    %65 = tpu.matmul %21, %64, %cst_35 {dimension_numbers = #tpu.dot_dimension_numbers<[1], [1], [0], [0], [0, 0, 1, 0], [], []>} : vector<8x128xbf16>, vector<8x128xbf16>, vector<8x8xf32> -> vector<8x8xf32>
    %66 = vector.extract_strided_slice %3 {offsets = [0, 0], sizes = [1, 8], strides = [1, 1]} : vector<1x128xf32> to vector<1x8xf32>
    %67 = vector.broadcast %66 : vector<1x8xf32> to vector<8x8xf32>
    %68 = arith.addf %65, %67 : vector<8x8xf32>
    %cst_36 = arith.constant dense<0xFF800000> : vector<8xf32>
    %69 = vector.multi_reduction <maximumf>, %68, %cst_36 [1] : vector<8x8xf32> to vector<8xf32>
    %70 = vector.shape_cast %69 : vector<8xf32> to vector<8x1xf32>
    %71 = vector.broadcast %70 : vector<8x1xf32> to vector<8x8xf32>
    %72 = arith.subf %68, %71 : vector<8x8xf32>
    %73 = math.exp %72 : vector<8x8xf32>
    %cst_37 = arith.constant dense<0.000000e+00> : vector<8xf32>
    %74 = vector.multi_reduction <add>, %73, %cst_37 [1] : vector<8x8xf32> to vector<8xf32>
    %75 = vector.shape_cast %74 : vector<8xf32> to vector<8x1xf32>
    %76 = tpu.reciprocal %75 {approx = true} : vector<8x1xf32> -> vector<8x1xf32>
    %77 = arith.truncf %73 : vector<8x8xf32> to vector<8x8xbf16>
    %78 = vector.broadcast %62 : vector<1x128xbf16> to vector<8x128xbf16>
    %79 = arith.mulf %23, %78 : vector<8x128xbf16>
    %cst_38 = arith.constant dense<0.000000e+00> : vector<8x128xf32>
    %80 = tpu.matmul %77, %79, %cst_38 {dimension_numbers = #tpu.dot_dimension_numbers<[1], [0], [0], [1], [0, 0, 1, 1], [], []>} : vector<8x8xbf16>, vector<8x128xbf16>, vector<8x128xf32> -> vector<8x128xf32>
    %81 = vector.broadcast %76 : vector<8x1xf32> to vector<8x128xf32>
    %82 = arith.mulf %80, %81 : vector<8x128xf32>
    %83 = arith.addf %54, %82 : vector<8x128xf32>
    %84 = arith.truncf %83 : vector<8x128xf32> to vector<8x128xbf16>
    %cst_39 = arith.constant dense<0.000000e+00> : vector<8x128xf32>
    %85 = tpu.matmul %84, %6, %cst_39 {dimension_numbers = #tpu.dot_dimension_numbers<[1], [0], [0], [1], [0, 0, 1, 1], [], []>} : vector<8x128xbf16>, vector<128x128xbf16>, vector<8x128xf32> -> vector<8x128xf32>
    %86 = vector.broadcast %7 : vector<1x128xf32> to vector<8x128xf32>
    %87 = arith.addf %85, %86 : vector<8x128xf32>
    %88 = arith.addf %87, %16 : vector<8x128xf32>
    %cst_40 = arith.constant dense<0.000000e+00> : vector<8xf32>
    %89 = vector.multi_reduction <add>, %88, %cst_40 [1] : vector<8x128xf32> to vector<8xf32>
    %90 = vector.shape_cast %89 : vector<8xf32> to vector<8x1xf32>
    %cst_41 = arith.constant 1.280000e+02 : f32
    %91 = vector.broadcast %cst_41 : f32 to vector<8x1xf32>
    %92 = arith.divf %90, %91 : vector<8x1xf32>
    %93 = vector.broadcast %92 : vector<8x1xf32> to vector<8x128xf32>
    %94 = arith.subf %88, %93 : vector<8x128xf32>
    %95 = arith.mulf %94, %94 : vector<8x128xf32>
    %cst_42 = arith.constant dense<0.000000e+00> : vector<8xf32>
    %96 = vector.multi_reduction <add>, %95, %cst_42 [1] : vector<8x128xf32> to vector<8xf32>
    %97 = vector.shape_cast %96 : vector<8xf32> to vector<8x1xf32>
    %cst_43 = arith.constant 1.280000e+02 : f32
    %98 = vector.broadcast %cst_43 : f32 to vector<8x1xf32>
    %99 = arith.divf %97, %98 : vector<8x1xf32>
    %100 = vector.broadcast %92 : vector<8x1xf32> to vector<8x128xf32>
    %101 = arith.subf %88, %100 : vector<8x128xf32>
    %cst_44 = arith.constant 9.99999996E-13 : f32
    %102 = vector.broadcast %cst_44 : f32 to vector<8x1xf32>
    %103 = arith.addf %99, %102 : vector<8x1xf32>
    %104 = math.rsqrt %103 : vector<8x1xf32>
    %105 = vector.broadcast %104 : vector<8x1xf32> to vector<8x128xf32>
    %106 = arith.mulf %101, %105 : vector<8x128xf32>
    %107 = vector.broadcast %8 : vector<1x128xf32> to vector<8x128xf32>
    %108 = arith.mulf %106, %107 : vector<8x128xf32>
    %109 = vector.broadcast %9 : vector<1x128xf32> to vector<8x128xf32>
    %110 = arith.addf %108, %109 : vector<8x128xf32>
    %111 = arith.truncf %110 : vector<8x128xf32> to vector<8x128xbf16>
    %cst_45 = arith.constant dense<0.000000e+00> : vector<8x512xf32>
    %112 = tpu.matmul %111, %10, %cst_45 {dimension_numbers = #tpu.dot_dimension_numbers<[1], [0], [0], [1], [0, 0, 1, 1], [], []>} : vector<8x128xbf16>, vector<128x512xbf16>, vector<8x512xf32> -> vector<8x512xf32>
    %113 = vector.broadcast %11 : vector<1x512xf32> to vector<8x512xf32>
    %114 = arith.addf %112, %113 : vector<8x512xf32>
    %115 = arith.mulf %114, %114 : vector<8x512xf32>
    %116 = arith.mulf %114, %115 : vector<8x512xf32>
    %cst_46 = arith.constant 4.471500e-02 : f32
    %117 = vector.broadcast %cst_46 : f32 to vector<8x512xf32>
    %118 = arith.mulf %117, %116 : vector<8x512xf32>
    %119 = arith.addf %114, %118 : vector<8x512xf32>
    %cst_47 = arith.constant 0.797884583 : f32
    %120 = vector.broadcast %cst_47 : f32 to vector<8x512xf32>
    %121 = arith.mulf %120, %119 : vector<8x512xf32>
    %122 = math.tanh %121 : vector<8x512xf32>
    %cst_48 = arith.constant 1.000000e+00 : f32
    %123 = vector.broadcast %cst_48 : f32 to vector<8x512xf32>
    %124 = arith.addf %123, %122 : vector<8x512xf32>
    %cst_49 = arith.constant 5.000000e-01 : f32
    %125 = vector.broadcast %cst_49 : f32 to vector<8x512xf32>
    %126 = arith.mulf %125, %124 : vector<8x512xf32>
    %127 = arith.mulf %114, %126 : vector<8x512xf32>
    %128 = arith.truncf %127 : vector<8x512xf32> to vector<8x512xbf16>
    %cst_50 = arith.constant dense<0.000000e+00> : vector<8x128xf32>
    %129 = tpu.matmul %128, %12, %cst_50 {dimension_numbers = #tpu.dot_dimension_numbers<[1], [0], [0], [1], [0, 0, 1, 1], [], []>} : vector<8x512xbf16>, vector<512x128xbf16>, vector<8x128xf32> -> vector<8x128xf32>
    %130 = vector.broadcast %13 : vector<1x128xf32> to vector<8x128xf32>
    %131 = arith.addf %129, %130 : vector<8x128xf32>
    %132 = arith.addf %131, %110 : vector<8x128xf32>
    %cst_51 = arith.constant dense<0.000000e+00> : vector<8xf32>
    %133 = vector.multi_reduction <add>, %132, %cst_51 [1] : vector<8x128xf32> to vector<8xf32>
    %134 = vector.shape_cast %133 : vector<8xf32> to vector<8x1xf32>
    %cst_52 = arith.constant 1.280000e+02 : f32
    %135 = vector.broadcast %cst_52 : f32 to vector<8x1xf32>
    %136 = arith.divf %134, %135 : vector<8x1xf32>
    %137 = vector.broadcast %136 : vector<8x1xf32> to vector<8x128xf32>
    %138 = arith.subf %132, %137 : vector<8x128xf32>
    %139 = arith.mulf %138, %138 : vector<8x128xf32>
    %cst_53 = arith.constant dense<0.000000e+00> : vector<8xf32>
    %140 = vector.multi_reduction <add>, %139, %cst_53 [1] : vector<8x128xf32> to vector<8xf32>
    %141 = vector.shape_cast %140 : vector<8xf32> to vector<8x1xf32>
    %cst_54 = arith.constant 1.280000e+02 : f32
    %142 = vector.broadcast %cst_54 : f32 to vector<8x1xf32>
    %143 = arith.divf %141, %142 : vector<8x1xf32>
    %144 = vector.broadcast %136 : vector<8x1xf32> to vector<8x128xf32>
    %145 = arith.subf %132, %144 : vector<8x128xf32>
    %cst_55 = arith.constant 9.99999996E-13 : f32
    %146 = vector.broadcast %cst_55 : f32 to vector<8x1xf32>
    %147 = arith.addf %143, %146 : vector<8x1xf32>
    %148 = math.rsqrt %147 : vector<8x1xf32>
    %149 = vector.broadcast %148 : vector<8x1xf32> to vector<8x128xf32>
    %150 = arith.mulf %145, %149 : vector<8x128xf32>
    %151 = vector.broadcast %14 : vector<1x128xf32> to vector<8x128xf32>
    %152 = arith.mulf %150, %151 : vector<8x128xf32>
    %153 = vector.broadcast %15 : vector<1x128xf32> to vector<8x128xf32>
    %154 = arith.addf %152, %153 : vector<8x128xf32>
    %155 = vector.extract_strided_slice %154 {offsets = [0, 0], sizes = [1, 128], strides = [1, 1]} : vector<8x128xf32> to vector<1x128xf32>
    %156 = arith.truncf %155 : vector<1x128xf32> to vector<1x128xbf16>
    %c0_56 = arith.constant 0 : index
    %c0_57 = arith.constant 0 : index
    %157 = vector.load %arg15[%c0_56, %c0_57] : memref<128x128xbf16, #tpu.memory_space<vmem>>, vector<128x128xbf16>
    %cst_58 = arith.constant dense<0.000000e+00> : vector<1x128xf32>
    %158 = tpu.matmul %156, %157, %cst_58 {dimension_numbers = #tpu.dot_dimension_numbers<[1], [0], [0], [1], [0, 0, 1, 1], [], []>} : vector<1x128xbf16>, vector<128x128xbf16>, vector<1x128xf32> -> vector<1x128xf32>
    %c0_59 = arith.constant 0 : index
    %c0_60 = arith.constant 0 : index
    %159 = vector.load %arg16[%c0_59, %c0_60] : memref<1x128xf32, #tpu.memory_space<vmem>>, vector<1x128xf32>
    %160 = arith.addf %158, %159 : vector<1x128xf32>
    %c0_61 = arith.constant 0 : index
    %c0_62 = arith.constant 0 : index
    %c0_63 = arith.constant 0 : index
    %161 = vector.load %arg17[%c0_61, %c0_62, %c0_63] : memref<1x1x128xf32, #tpu.memory_space<vmem>>, vector<1x1x128xf32>
    %162 = vector.shape_cast %161 : vector<1x1x128xf32> to vector<1x128xf32>
    %163 = vector.shape_cast %160 : vector<1x128xf32> to vector<1x1x128xf32>
    tpu.vector_store %arg17[%c0_61, %c0_62, %c0_63], %163 {strides = array<i32>} : memref<1x1x128xf32, #tpu.memory_space<vmem>>, vector<1x1x128xf32>,
    return
  }
  func.func @transform_0(%arg0: i32) -> (i32, i32, i32) {
    %c0_i32 = arith.constant 0 : i32
    %c0_i32_0 = arith.constant 0 : i32
    %c0_i32_1 = arith.constant 0 : i32
    return %arg0, %c0_i32, %c0_i32_0 : i32, i32, i32
  }
  func.func @transform_1(%arg0: i32) -> (i32, i32, i32) {
    %c0_i32 = arith.constant 0 : i32
    %c0_i32_0 = arith.constant 0 : i32
    %c0_i32_1 = arith.constant 0 : i32
    return %arg0, %c0_i32, %c0_i32_0 : i32, i32, i32
  }
  func.func @transform_2(%arg0: i32) -> (i32, i32) {
    %c0_i32 = arith.constant 0 : i32
    %c0_i32_0 = arith.constant 0 : i32
    %c0_i32_1 = arith.constant 0 : i32
    return %c0_i32, %c0_i32_0 : i32, i32
  }
  func.func @transform_3(%arg0: i32) -> (i32, i32) {
    %c0_i32 = arith.constant 0 : i32
    %c0_i32_0 = arith.constant 0 : i32
    %c0_i32_1 = arith.constant 0 : i32
    return %c0_i32, %c0_i32_0 : i32, i32
  }
  func.func @transform_4(%arg0: i32) -> (i32, i32) {
    %c0_i32 = arith.constant 0 : i32
    %c0_i32_0 = arith.constant 0 : i32
    %c0_i32_1 = arith.constant 0 : i32
    return %c0_i32, %c0_i32_0 : i32, i32
  }
  func.func @transform_5(%arg0: i32) -> (i32, i32) {
    %c0_i32 = arith.constant 0 : i32
    %c0_i32_0 = arith.constant 0 : i32
    %c0_i32_1 = arith.constant 0 : i32
    return %c0_i32, %c0_i32_0 : i32, i32
  }
  func.func @transform_6(%arg0: i32) -> (i32, i32) {
    %c0_i32 = arith.constant 0 : i32
    %c0_i32_0 = arith.constant 0 : i32
    %c0_i32_1 = arith.constant 0 : i32
    return %c0_i32, %c0_i32_0 : i32, i32
  }
  func.func @transform_7(%arg0: i32) -> (i32, i32) {
    %c0_i32 = arith.constant 0 : i32
    %c0_i32_0 = arith.constant 0 : i32
    %c0_i32_1 = arith.constant 0 : i32
    return %c0_i32, %c0_i32_0 : i32, i32
  }
  func.func @transform_8(%arg0: i32) -> (i32, i32) {
    %c0_i32 = arith.constant 0 : i32
    %c0_i32_0 = arith.constant 0 : i32
    %c0_i32_1 = arith.constant 0 : i32
    return %c0_i32, %c0_i32_0 : i32, i32
  }
  func.func @transform_9(%arg0: i32) -> (i32, i32) {
    %c0_i32 = arith.constant 0 : i32
    %c0_i32_0 = arith.constant 0 : i32
    %c0_i32_1 = arith.constant 0 : i32
    return %c0_i32, %c0_i32_0 : i32, i32
  }
  func.func @transform_10(%arg0: i32) -> (i32, i32) {
    %c0_i32 = arith.constant 0 : i32
    %c0_i32_0 = arith.constant 0 : i32
    %c0_i32_1 = arith.constant 0 : i32
    return %c0_i32, %c0_i32_0 : i32, i32
  }
  func.func @transform_11(%arg0: i32) -> (i32, i32) {
    %c0_i32 = arith.constant 0 : i32
    %c0_i32_0 = arith.constant 0 : i32
    %c0_i32_1 = arith.constant 0 : i32
    return %c0_i32, %c0_i32_0 : i32, i32
  }
  func.func @transform_12(%arg0: i32) -> (i32, i32) {
    %c0_i32 = arith.constant 0 : i32
    %c0_i32_0 = arith.constant 0 : i32
    %c0_i32_1 = arith.constant 0 : i32
    return %c0_i32, %c0_i32_0 : i32, i32
  }
  func.func @transform_13(%arg0: i32) -> (i32, i32) {
    %c0_i32 = arith.constant 0 : i32
    %c0_i32_0 = arith.constant 0 : i32
    %c0_i32_1 = arith.constant 0 : i32
    return %c0_i32, %c0_i32_0 : i32, i32
  }
  func.func @transform_14(%arg0: i32) -> (i32, i32) {
    %c0_i32 = arith.constant 0 : i32
    %c0_i32_0 = arith.constant 0 : i32
    %c0_i32_1 = arith.constant 0 : i32
    return %c0_i32, %c0_i32_0 : i32, i32
  }
  func.func @transform_15(%arg0: i32) -> (i32, i32) {
    %c0_i32 = arith.constant 0 : i32
    %c0_i32_0 = arith.constant 0 : i32
    %c0_i32_1 = arith.constant 0 : i32
    return %c0_i32, %c0_i32_0 : i32, i32
  }
  func.func @transform_16(%arg0: i32) -> (i32, i32, i32) {
    %c0_i32 = arith.constant 0 : i32
    %c0_i32_0 = arith.constant 0 : i32
    %c0_i32_1 = arith.constant 0 : i32
    return %arg0, %c0_i32, %c0_i32_0 : i32, i32, i32
  }
}

</mosaic_0001>

<llo_original>
// kernel: bert_class_forward.3
$region0: #{bert_class_forward.3}
  #allocation0 [shape = 'u32[]', space=smem, size = 0x4, offset = 0x4, fixed_abs, tag = 'smem constant byte address 0x4 - core index']
  #allocation1 [shape = 'u32[144,128]{1,0:T(1,128)}', space=vmem, size = 0x12000, scoped, tag = 'internal scratch']
  %s0 = inlined_call_operand.vmem [shape: f32[16,128], index: 0, kind: input, shape index: {}]
  %s1 = inlined_call_operand.vmem [shape: f32[1,128], index: 1, kind: input, shape index: {}]
  %s2 = inlined_call_operand.vmem [shape: f32[1,128], index: 2, kind: input, shape index: {}]
  %s3 = inlined_call_operand.vmem [shape: bf16[16,128], index: 3, kind: output, shape index: {}]
  %s4 = sld [smem:[#allocation0]]
  $region45: #{bert_class_forward.3} parent=0
    _
  %s6 = ssub.s32 1, %s4
  %s7 = scalar_select 0, %s6, %s4
  loop: start=0, step=1, limit=4
  $region2: #{bert_class_forward.3} parent=0 // loop_pre_header
    _
  $region3: #{bert_class_forward.3} parent=0 // loop_header
    %s9 = sphi 0, %s13
    %p10 = scmp.ge.s32.totalorder %s9, 4
    %s19 = sphi 0, %s21
    %s22 = sphi 0, %s19
    %s23 = sphi 0, %s22
    %s39 = sphi 0, %s23
    %s43 = sphi 0, %s43
    %s45 = sphi 0, %s43
    %s46 = sphi 0, %s45
    %s60 = sphi 0, %s46
    %s64 = sphi 0, %s64
    %s66 = sphi 0, %s64
    %s67 = sphi 0, %s66
    %s81 = sphi 0, %s67
    %s87 = sphi 0, %s89
    %s90 = sphi 0, %s87
    %s91 = sphi 0, %s90
    %s107 = sphi 0, %s91
  $region4: #{bert_class_forward.3} parent=0 // loop_header_branch
    %12 = sbr.rel (%p10) target = $region8
  $region5: #{bert_class_forward.3} parent=0 // loop_body
    %s14 = ssub.s32 %s9, 1
    %s15 = ssub.s32 %s9, 2
    %s16 = sadd.s32 %s9, 1
    %s17 = ssub.s32 %s9, %s16
    %p18 = scmp.eq.s32.totalorder %s17, 0
    %s20 = sadd.s32 %s19, 1
    %s21 = scalar_select %p18, %s19, %s20
    %p24 = pneg %p18
    %p25 = scmp.eq.s32.totalorder %s9, 1
    %p26 = por %p24, %p25
    %p27 = scmp.ne.s32.totalorder %s19, %s22
    %p28 = scmp.eq.s32.totalorder %s9, 0
    %p29 = por %p27, %p28
    %p30 = scmp.ne.s32.totalorder %s19, %s22
    %p31 = scmp.eq.s32.totalorder %s14, 1
    %p32 = por %p30, %p31
    %p33 = scmp.ne.s32.totalorder %s22, %s23
    %p34 = scmp.eq.s32.totalorder %s14, 0
    %p35 = por %p33, %p34
    %p36 = scmp.ne.s32.totalorder %s22, %s23
    %p37 = scmp.eq.s32.totalorder %s15, 1
    %p38 = por %p36, %p37
    %p40 = scmp.ne.s32.totalorder %s23, %s39
    %p41 = scmp.eq.s32.totalorder %s15, 0
    %p42 = por %p40, %p41
    %s44 = sadd.s32 %s43, 1
    %p47 = scmp.eq.s32.totalorder %s9, 1
    %p48 = scmp.ne.s32.totalorder %s43, %s45
    %p49 = scmp.eq.s32.totalorder %s9, 0
    %p50 = por %p48, %p49
    %p51 = scmp.ne.s32.totalorder %s43, %s45
    %p52 = scmp.eq.s32.totalorder %s14, 1
    %p53 = por %p51, %p52
    %p54 = scmp.ne.s32.totalorder %s45, %s46
    %p55 = scmp.eq.s32.totalorder %s14, 0
    %p56 = por %p54, %p55
    %p57 = scmp.ne.s32.totalorder %s45, %s46
    %p58 = scmp.eq.s32.totalorder %s15, 1
    %p59 = por %p57, %p58
    %p61 = scmp.ne.s32.totalorder %s46, %s60
    %p62 = scmp.eq.s32.totalorder %s15, 0
    %p63 = por %p61, %p62
    %s65 = sadd.s32 %s64, 1
    %p68 = scmp.eq.s32.totalorder %s9, 1
    %p69 = scmp.ne.s32.totalorder %s64, %s66
    %p70 = scmp.eq.s32.totalorder %s9, 0
    %p71 = por %p69, %p70
    %p72 = scmp.ne.s32.totalorder %s64, %s66
    %p73 = scmp.eq.s32.totalorder %s14, 1
    %p74 = por %p72, %p73
    %p75 = scmp.ne.s32.totalorder %s66, %s67
    %p76 = scmp.eq.s32.totalorder %s14, 0
    %p77 = por %p75, %p76
    %p78 = scmp.ne.s32.totalorder %s66, %s67
    %p79 = scmp.eq.s32.totalorder %s15, 1
    %p80 = por %p78, %p79
    %p82 = scmp.ne.s32.totalorder %s67, %s81
    %p83 = scmp.eq.s32.totalorder %s15, 0
    %p84 = por %p82, %p83
    %s85 = ssub.s32 %s9, %s16
    %p86 = scmp.eq.s32.totalorder %s85, 0
    %s88 = sadd.s32 %s87, 1
    %s89 = scalar_select %p86, %s87, %s88
    %p92 = pneg %p86
    %p93 = scmp.eq.s32.totalorder %s9, 1
    %p94 = por %p92, %p93
    %p95 = scmp.ne.s32.totalorder %s87, %s90
    %p96 = scmp.eq.s32.totalorder %s9, 0
    %p97 = por %p95, %p96
    %p98 = scmp.ne.s32.totalorder %s87, %s90
    %p99 = scmp.eq.s32.totalorder %s14, 1
    %p100 = por %p98, %p99
    %p101 = scmp.ne.s32.totalorder %s90, %s91
    %p102 = scmp.eq.s32.totalorder %s14, 0
    %p103 = por %p101, %p102
    %p104 = scmp.ne.s32.totalorder %s90, %s91
    %p105 = scmp.eq.s32.totalorder %s15, 1
    %p106 = por %p104, %p105
    %p108 = scmp.ne.s32.totalorder %s91, %s107
    %p109 = scmp.eq.s32.totalorder %s15, 0
    %p110 = por %p108, %p109
    %p111 = scmp.le.s32.totalorder 1, %s9
    %p112 = scmp.lt.s32.totalorder %s9, 3
    %p113 = pnand %p111, %p112
    %p114 = pneg %p113
    // Predicated region
    $region9: #{bert_class_forward.3} parent=5 // pred_check
      _
    $region10: #{bert_class_forward.3} parent=5 // pred_check_branch
      %116 = sbr.rel (%p113) target = $region12
    $region11: #{bert_class_forward.3} parent=5 // pred_region
      %s117 = ssub.s32 %s9, 1
      // Predicated region
      $region13: #{bert_class_forward.3} parent=11 // pred_check
        %p118 = pneg %p56
      $region14: #{bert_class_forward.3} parent=11 // pred_check_branch
        %120 = sbr.rel (%p118) target = $region16
      $region15: #{bert_class_forward.3} parent=11 // pred_region
        _
      $region16: #{bert_class_forward.3} parent=11 // pred_fallthru
        _
      // Predicated region
      $region17: #{bert_class_forward.3} parent=11 // pred_check
        %p121 = pneg %p77
      $region18: #{bert_class_forward.3} parent=11 // pred_check_branch
        %123 = sbr.rel (%p121) target = $region20
      $region19: #{bert_class_forward.3} parent=11 // pred_region
        _
      $region20: #{bert_class_forward.3} parent=11 // pred_fallthru
        _
    $region12: #{bert_class_forward.3} parent=5 // pred_fallthru
      _
    %p124 = scmp.lt.s32.totalorder %s9, 2
    // Predicated region
    $region21: #{bert_class_forward.3} parent=5 // pred_check
      %p125 = pneg %p124
    $region22: #{bert_class_forward.3} parent=5 // pred_check_branch
      %127 = sbr.rel (%p125) target = $region24
    $region23: #{bert_class_forward.3} parent=5 // pred_region
      // Predicated region
      $region25: #{bert_class_forward.3} parent=23 // pred_check
        %p128 = pneg %p29
      $region26: #{bert_class_forward.3} parent=23 // pred_check_branch
        %130 = sbr.rel (%p128) target = $region28
      $region27: #{bert_class_forward.3} parent=23 // pred_region
        %p131 = scmp.lt.s32.totalorder %s9, 1
        %s132 = scalar_select %p131, %s9, 1
        %s133 = smul.addr %s132, 8
        %s134 = scalar_lea.vmem %s0, %s133
      $region28: #{bert_class_forward.3} parent=23 // pred_fallthru
        _
    $region24: #{bert_class_forward.3} parent=5 // pred_fallthru
      _
    %p135 = scmp.le.s32.totalorder 1, %s9
    %p136 = scmp.lt.s32.totalorder %s9, 3
    %p137 = pnand %p135, %p136
    %p138 = pneg %p137
    // Predicated region
    $region29: #{bert_class_forward.3} parent=5 // pred_check
      _
    $region30: #{bert_class_forward.3} parent=5 // pred_check_branch
      %140 = sbr.rel (%p137) target = $region32
    $region31: #{bert_class_forward.3} parent=5 // pred_region
      %s141 = ssub.s32 %s9, 1
      %p142 = scmp.lt.s32.totalorder %s14, 1
      %s143 = scalar_select %p142, %s14, 1
      %s144 = smul.addr %s143, 8
      %s145 = scalar_lea.vmem %s0, %s144
      %p146 = pneg %p35
      %p147 = pneg %p32
      %p148 = pneg %p56
      %p149 = pneg %p53
      %p150 = pneg %p77
      %p151 = pneg %p74
      %p152 = pneg %p103
      %p153 = pneg %p100
      %p154 = scmp.lt.s32.totalorder %s14, 1
      %s155 = scalar_select %p154, %s14, 1
      %s156 = smul.addr %s155, 4
      %s157 = scalar_lea.vmem %s3, %s156
      %p158 = scmp.lt.s32.totalorder %s14, 1
      %s159 = scalar_select %p158, %s14, 1
      %s160 = smul.addr %s159, 8
      %s161 = scalar_lea.vmem %s0, %s160
      %p162 = scmp.lt.s32.totalorder %s14, 1
      %s163 = scalar_select %p162, %s14, 1
      %s164 = smul.addr %s163, 4
      %s165 = scalar_lea.vmem %s3, %s164
      %v166 = vld [vmem:[%s161] sm:$0xff]
      %167 = vadd.xlane.f32.xlu0 %v166
      %v168 = vpop.xlane.xlu0 %167
      %v169 = vrcp.pop 128.0
      %v170 = vmul.f32 %v168, %v169
      %v171 = vsub.f32 %v166, %v170
      %v172 = vmul.f32 %v171, %v171
      %173 = vadd.xlane.f32.xlu0 %v172
      %v174 = vpop.xlane.xlu0 %173
      %v175 = vmul.f32 %v174, %v169
      %v176 = vadd.f32 %v175, 1e-12
      %v177 = vrsqrt.pop %v176
      %v178 = vmul.f32 %v171, %v177
      %v179 = vld [vmem:[%s1] sm:$0x1]
      %v181 = vlaneseq
      %v182 = vshrl.u32 %v181, 7
      %v183 = vsub.s32 0, %v182
      %v184 = vrot.slane %v179, %v183
      %v186 = vmul.f32 %v178, %v184
      %v187 = vld [vmem:[%s2] sm:$0x1]
      %v189 = vlaneseq
      %v190 = vshrl.u32 %v189, 7
      %v191 = vsub.s32 0, %v190
      %v192 = vrot.slane %v187, %v191
      %v194 = vadd.f32 %v186, %v192
      %v195 = vpack.c.bf16 %v194, %v194
      %196 = vst [vmem:[%s165] sm:$0xf] %v195
      %p197 = scmp.lt.s32.totalorder %s14, 1
      %s198 = scalar_select %p197, %s14, 1
      %s199 = smul.addr %s198, 4
      %s200 = scalar_lea.vmem %s3, %s199
      // Predicated region
      $region33: #{bert_class_forward.3} parent=31 // pred_check
        %p201 = pneg %p100
      $region34: #{bert_class_forward.3} parent=31 // pred_check_branch
        %203 = sbr.rel (%p201) target = $region36
      $region35: #{bert_class_forward.3} parent=31 // pred_region
        _
      $region36: #{bert_class_forward.3} parent=31 // pred_fallthru
        _
    $region32: #{bert_class_forward.3} parent=5 // pred_fallthru
      _
    %p204 = scmp.le.s32.totalorder 2, %s9
    // Predicated region
    $region37: #{bert_class_forward.3} parent=5 // pred_check
      %p205 = pneg %p204
    $region38: #{bert_class_forward.3} parent=5 // pred_check_branch
      %207 = sbr.rel (%p205) target = $region40
    $region39: #{bert_class_forward.3} parent=5 // pred_region
      %s208 = ssub.s32 %s9, 2
      // Predicated region
      $region41: #{bert_class_forward.3} parent=39 // pred_check
        %p209 = pneg %p106
      $region42: #{bert_class_forward.3} parent=39 // pred_check_branch
        %211 = sbr.rel (%p209) target = $region44
      $region43: #{bert_class_forward.3} parent=39 // pred_region
        %p212 = scmp.lt.s32.totalorder %s15, 1
        %s213 = scalar_select %p212, %s15, 1
        %s214 = smul.addr %s213, 4
        %s215 = scalar_lea.vmem %s3, %s214
      $region44: #{bert_class_forward.3} parent=39 // pred_fallthru
        _
    $region40: #{bert_class_forward.3} parent=5 // pred_fallthru
      _
  $region6: #{bert_class_forward.3} parent=0 // loop_footer
    %s13 = sadd.s32 1, %s9
  $region7: #{bert_class_forward.3} parent=0 // loop_footer_branch
    %8 = sbr.rel target = $region3
  $region8: #{bert_class_forward.3} parent=0 // loop_exit
    _

// kernel: bert_class_forward.4
$region0: #{bert_class_forward.4}
  #allocation0 [shape = 'u32[]', space=smem, size = 0x4, offset = 0x4, fixed_abs, tag = 'smem constant byte address 0x4 - core index']
  #allocation1 [shape = 'u32[144,128]{1,0:T(1,128)}', space=vmem, size = 0x12000, scoped, tag = 'internal scratch']
  %s0 = inlined_call_operand.vmem [shape: bf16[2,8,128], index: 0, kind: input, shape index: {}]
  %s1 = inlined_call_operand.vmem [shape: f32[2,1,128], index: 1, kind: input, shape index: {}]
  %s2 = inlined_call_operand.vmem [shape: bf16[128,384], index: 2, kind: input, shape index: {}]
  %s3 = inlined_call_operand.vmem [shape: f32[1,384], index: 3, kind: input, shape index: {}]
  %s4 = inlined_call_operand.vmem [shape: bf16[128,128], index: 4, kind: input, shape index: {}]
  %s5 = inlined_call_operand.vmem [shape: f32[1,128], index: 5, kind: input, shape index: {}]
  %s6 = inlined_call_operand.vmem [shape: f32[1,128], index: 6, kind: input, shape index: {}]
  %s7 = inlined_call_operand.vmem [shape: f32[1,128], index: 7, kind: input, shape index: {}]
  %s8 = inlined_call_operand.vmem [shape: bf16[128,512], index: 8, kind: input, shape index: {}]
  %s9 = inlined_call_operand.vmem [shape: f32[1,512], index: 9, kind: input, shape index: {}]
  %s10 = inlined_call_operand.hbm [shape: bf16[512,128], index: 10, kind: input, shape index: {}]
  %s11 = inlined_call_operand.vmem [shape: f32[1,128], index: 11, kind: input, shape index: {}]
  %s12 = inlined_call_operand.vmem [shape: f32[1,128], index: 12, kind: input, shape index: {}]
  %s13 = inlined_call_operand.vmem [shape: f32[1,128], index: 13, kind: input, shape index: {}]
  %s14 = inlined_call_operand.vmem [shape: bf16[2,8,128], index: 14, kind: output, shape index: {}]
  %s15 = sld [smem:[#allocation0]]
  $region93: #{bert_class_forward.4} parent=0
    _
  %s17 = ssub.s32 1, %s15
  %s18 = scalar_select 0, %s17, %s15
  $region1: #{bert_class_forward.4} parent=0
    #allocation2 [shape = 'u8[131072]{0}', space=vmem, size = 0x20000, scoped, tag = 'input window, operand 10, single buffered']
    #allocation3 [shape = 's32[2]{0}', space=sflag, size = 0x8, scoped, tag = 'scoped memory for bert_class_forward.4']
    %19 = vsyncpa [#allocation3], 0
    loop: start=0, step=1, limit=4
    $region2: #{bert_class_forward.4} parent=1 // loop_pre_header
      _
    $region3: #{bert_class_forward.4} parent=1 // loop_header
      %s21 = sphi 0, %s25
      %p22 = scmp.ge.s32.totalorder %s21, 4
      %s31 = sphi 0, %s33
      %s34 = sphi 0, %s31
      %s35 = sphi 0, %s34
      %s51 = sphi 0, %s35
      %s57 = sphi 0, %s59
      %s60 = sphi 0, %s57
      %s61 = sphi 0, %s60
      %s77 = sphi 0, %s61
      %s81 = sphi 0, %s81
      %s83 = sphi 0, %s81
      %s84 = sphi 0, %s83
      %s98 = sphi 0, %s84
      %s102 = sphi 0, %s102
      %s104 = sphi 0, %s102
      %s105 = sphi 0, %s104
      %s119 = sphi 0, %s105
      %s123 = sphi 0, %s123
      %s125 = sphi 0, %s123
      %s126 = sphi 0, %s125
      %s140 = sphi 0, %s126
      %s144 = sphi 0, %s144
      %s146 = sphi 0, %s144
      %s147 = sphi 0, %s146
      %s161 = sphi 0, %s147
      %s165 = sphi 0, %s165
      %s167 = sphi 0, %s165
      %s168 = sphi 0, %s167
      %s182 = sphi 0, %s168
      %s186 = sphi 0, %s186
      %s188 = sphi 0, %s186
      %s189 = sphi 0, %s188
      %s203 = sphi 0, %s189
      %s207 = sphi 0, %s207
      %s209 = sphi 0, %s207
      %s210 = sphi 0, %s209
      %s224 = sphi 0, %s210
      %s228 = sphi 0, %s228
      %s230 = sphi 0, %s228
      %s231 = sphi 0, %s230
      %s245 = sphi 0, %s231
      %s249 = sphi 0, %s249
      %s251 = sphi 0, %s249
      %s252 = sphi 0, %s251
      %s266 = sphi 0, %s252
      %s270 = sphi 0, %s270
      %s272 = sphi 0, %s270
      %s273 = sphi 0, %s272
      %s287 = sphi 0, %s273
      %s291 = sphi 0, %s291
      %s293 = sphi 0, %s291
      %s294 = sphi 0, %s293
      %s308 = sphi 0, %s294
      %s312 = sphi 0, %s312
      %s314 = sphi 0, %s312
      %s315 = sphi 0, %s314
      %s329 = sphi 0, %s315
      %s335 = sphi 0, %s337
      %s338 = sphi 0, %s335
      %s339 = sphi 0, %s338
      %s355 = sphi 0, %s339
    $region4: #{bert_class_forward.4} parent=1 // loop_header_branch
      %24 = sbr.rel (%p22) target = $region8
    $region5: #{bert_class_forward.4} parent=1 // loop_body
      %s26 = ssub.s32 %s21, 1
      %s27 = ssub.s32 %s21, 2
      %s28 = sadd.s32 %s21, 1
      %s29 = ssub.s32 %s21, %s28
      %p30 = scmp.eq.s32.totalorder %s29, 0
      %s32 = sadd.s32 %s31, 1
      %s33 = scalar_select %p30, %s31, %s32
      %p36 = pneg %p30
      %p37 = scmp.eq.s32.totalorder %s21, 1
      %p38 = por %p36, %p37
      %p39 = scmp.ne.s32.totalorder %s31, %s34
      %p40 = scmp.eq.s32.totalorder %s21, 0
      %p41 = por %p39, %p40
      %p42 = scmp.ne.s32.totalorder %s31, %s34
      %p43 = scmp.eq.s32.totalorder %s26, 1
      %p44 = por %p42, %p43
      %p45 = scmp.ne.s32.totalorder %s34, %s35
      %p46 = scmp.eq.s32.totalorder %s26, 0
      %p47 = por %p45, %p46
      %p48 = scmp.ne.s32.totalorder %s34, %s35
      %p49 = scmp.eq.s32.totalorder %s27, 1
      %p50 = por %p48, %p49
      %p52 = scmp.ne.s32.totalorder %s35, %s51
      %p53 = scmp.eq.s32.totalorder %s27, 0
      %p54 = por %p52, %p53
      %s55 = ssub.s32 %s21, %s28
      %p56 = scmp.eq.s32.totalorder %s55, 0
      %s58 = sadd.s32 %s57, 1
      %s59 = scalar_select %p56, %s57, %s58
      %p62 = pneg %p56
      %p63 = scmp.eq.s32.totalorder %s21, 1
      %p64 = por %p62, %p63
      %p65 = scmp.ne.s32.totalorder %s57, %s60
      %p66 = scmp.eq.s32.totalorder %s21, 0
      %p67 = por %p65, %p66
      %p68 = scmp.ne.s32.totalorder %s57, %s60
      %p69 = scmp.eq.s32.totalorder %s26, 1
      %p70 = por %p68, %p69
      %p71 = scmp.ne.s32.totalorder %s60, %s61
      %p72 = scmp.eq.s32.totalorder %s26, 0
      %p73 = por %p71, %p72
      %p74 = scmp.ne.s32.totalorder %s60, %s61
      %p75 = scmp.eq.s32.totalorder %s27, 1
      %p76 = por %p74, %p75
      %p78 = scmp.ne.s32.totalorder %s61, %s77
      %p79 = scmp.eq.s32.totalorder %s27, 0
      %p80 = por %p78, %p79
      %s82 = sadd.s32 %s81, 1
      %p85 = scmp.eq.s32.totalorder %s21, 1
      %p86 = scmp.ne.s32.totalorder %s81, %s83
      %p87 = scmp.eq.s32.totalorder %s21, 0
      %p88 = por %p86, %p87
      %p89 = scmp.ne.s32.totalorder %s81, %s83
      %p90 = scmp.eq.s32.totalorder %s26, 1
      %p91 = por %p89, %p90
      %p92 = scmp.ne.s32.totalorder %s83, %s84
      %p93 = scmp.eq.s32.totalorder %s26, 0
      %p94 = por %p92, %p93
      %p95 = scmp.ne.s32.totalorder %s83, %s84
      %p96 = scmp.eq.s32.totalorder %s27, 1
      %p97 = por %p95, %p96
      %p99 = scmp.ne.s32.totalorder %s84, %s98
      %p100 = scmp.eq.s32.totalorder %s27, 0
      %p101 = por %p99, %p100
      %s103 = sadd.s32 %s102, 1
      %p106 = scmp.eq.s32.totalorder %s21, 1
      %p107 = scmp.ne.s32.totalorder %s102, %s104
      %p108 = scmp.eq.s32.totalorder %s21, 0
      %p109 = por %p107, %p108
      %p110 = scmp.ne.s32.totalorder %s102, %s104
      %p111 = scmp.eq.s32.totalorder %s26, 1
      %p112 = por %p110, %p111
      %p113 = scmp.ne.s32.totalorder %s104, %s105
      %p114 = scmp.eq.s32.totalorder %s26, 0
      %p115 = por %p113, %p114
      %p116 = scmp.ne.s32.totalorder %s104, %s105
      %p117 = scmp.eq.s32.totalorder %s27, 1
      %p118 = por %p116, %p117
      %p120 = scmp.ne.s32.totalorder %s105, %s119
      %p121 = scmp.eq.s32.totalorder %s27, 0
      %p122 = por %p120, %p121
      %s124 = sadd.s32 %s123, 1
      %p127 = scmp.eq.s32.totalorder %s21, 1
      %p128 = scmp.ne.s32.totalorder %s123, %s125
      %p129 = scmp.eq.s32.totalorder %s21, 0
      %p130 = por %p128, %p129
      %p131 = scmp.ne.s32.totalorder %s123, %s125
      %p132 = scmp.eq.s32.totalorder %s26, 1
      %p133 = por %p131, %p132
      %p134 = scmp.ne.s32.totalorder %s125, %s126
      %p135 = scmp.eq.s32.totalorder %s26, 0
      %p136 = por %p134, %p135
      %p137 = scmp.ne.s32.totalorder %s125, %s126
      %p138 = scmp.eq.s32.totalorder %s27, 1
      %p139 = por %p137, %p138
      %p141 = scmp.ne.s32.totalorder %s126, %s140
      %p142 = scmp.eq.s32.totalorder %s27, 0
      %p143 = por %p141, %p142
      %s145 = sadd.s32 %s144, 1
      %p148 = scmp.eq.s32.totalorder %s21, 1
      %p149 = scmp.ne.s32.totalorder %s144, %s146
      %p150 = scmp.eq.s32.totalorder %s21, 0
      %p151 = por %p149, %p150
      %p152 = scmp.ne.s32.totalorder %s144, %s146
      %p153 = scmp.eq.s32.totalorder %s26, 1
      %p154 = por %p152, %p153
      %p155 = scmp.ne.s32.totalorder %s146, %s147
      %p156 = scmp.eq.s32.totalorder %s26, 0
      %p157 = por %p155, %p156
      %p158 = scmp.ne.s32.totalorder %s146, %s147
      %p159 = scmp.eq.s32.totalorder %s27, 1
      %p160 = por %p158, %p159
      %p162 = scmp.ne.s32.totalorder %s147, %s161
      %p163 = scmp.eq.s32.totalorder %s27, 0
      %p164 = por %p162, %p163
      %s166 = sadd.s32 %s165, 1
      %p169 = scmp.eq.s32.totalorder %s21, 1
      %p170 = scmp.ne.s32.totalorder %s165, %s167
      %p171 = scmp.eq.s32.totalorder %s21, 0
      %p172 = por %p170, %p171
      %p173 = scmp.ne.s32.totalorder %s165, %s167
      %p174 = scmp.eq.s32.totalorder %s26, 1
      %p175 = por %p173, %p174
      %p176 = scmp.ne.s32.totalorder %s167, %s168
      %p177 = scmp.eq.s32.totalorder %s26, 0
      %p178 = por %p176, %p177
      %p179 = scmp.ne.s32.totalorder %s167, %s168
      %p180 = scmp.eq.s32.totalorder %s27, 1
      %p181 = por %p179, %p180
      %p183 = scmp.ne.s32.totalorder %s168, %s182
      %p184 = scmp.eq.s32.totalorder %s27, 0
      %p185 = por %p183, %p184
      %s187 = sadd.s32 %s186, 1
      %p190 = scmp.eq.s32.totalorder %s21, 1
      %p191 = scmp.ne.s32.totalorder %s186, %s188
      %p192 = scmp.eq.s32.totalorder %s21, 0
      %p193 = por %p191, %p192
      %p194 = scmp.ne.s32.totalorder %s186, %s188
      %p195 = scmp.eq.s32.totalorder %s26, 1
      %p196 = por %p194, %p195
      %p197 = scmp.ne.s32.totalorder %s188, %s189
      %p198 = scmp.eq.s32.totalorder %s26, 0
      %p199 = por %p197, %p198
      %p200 = scmp.ne.s32.totalorder %s188, %s189
      %p201 = scmp.eq.s32.totalorder %s27, 1
      %p202 = por %p200, %p201
      %p204 = scmp.ne.s32.totalorder %s189, %s203
      %p205 = scmp.eq.s32.totalorder %s27, 0
      %p206 = por %p204, %p205
      %s208 = sadd.s32 %s207, 1
      %p211 = scmp.eq.s32.totalorder %s21, 1
      %p212 = scmp.ne.s32.totalorder %s207, %s209
      %p213 = scmp.eq.s32.totalorder %s21, 0
      %p214 = por %p212, %p213
      %p215 = scmp.ne.s32.totalorder %s207, %s209
      %p216 = scmp.eq.s32.totalorder %s26, 1
      %p217 = por %p215, %p216
      %p218 = scmp.ne.s32.totalorder %s209, %s210
      %p219 = scmp.eq.s32.totalorder %s26, 0
      %p220 = por %p218, %p219
      %p221 = scmp.ne.s32.totalorder %s209, %s210
      %p222 = scmp.eq.s32.totalorder %s27, 1
      %p223 = por %p221, %p222
      %p225 = scmp.ne.s32.totalorder %s210, %s224
      %p226 = scmp.eq.s32.totalorder %s27, 0
      %p227 = por %p225, %p226
      %s229 = sadd.s32 %s228, 1
      %p232 = scmp.eq.s32.totalorder %s21, 1
      %p233 = scmp.ne.s32.totalorder %s228, %s230
      %p234 = scmp.eq.s32.totalorder %s21, 0
      %p235 = por %p233, %p234
      %p236 = scmp.ne.s32.totalorder %s228, %s230
      %p237 = scmp.eq.s32.totalorder %s26, 1
      %p238 = por %p236, %p237
      %p239 = scmp.ne.s32.totalorder %s230, %s231
      %p240 = scmp.eq.s32.totalorder %s26, 0
      %p241 = por %p239, %p240
      %p242 = scmp.ne.s32.totalorder %s230, %s231
      %p243 = scmp.eq.s32.totalorder %s27, 1
      %p244 = por %p242, %p243
      %p246 = scmp.ne.s32.totalorder %s231, %s245
      %p247 = scmp.eq.s32.totalorder %s27, 0
      %p248 = por %p246, %p247
      %s250 = sadd.s32 %s249, 1
      %p253 = scmp.eq.s32.totalorder %s21, 1
      %p254 = scmp.ne.s32.totalorder %s249, %s251
      %p255 = scmp.eq.s32.totalorder %s21, 0
      %p256 = por %p254, %p255
      %p257 = scmp.ne.s32.totalorder %s249, %s251
      %p258 = scmp.eq.s32.totalorder %s26, 1
      %p259 = por %p257, %p258
      %p260 = scmp.ne.s32.totalorder %s251, %s252
      %p261 = scmp.eq.s32.totalorder %s26, 0
      %p262 = por %p260, %p261
      %p263 = scmp.ne.s32.totalorder %s251, %s252
      %p264 = scmp.eq.s32.totalorder %s27, 1
      %p265 = por %p263, %p264
      %p267 = scmp.ne.s32.totalorder %s252, %s266
      %p268 = scmp.eq.s32.totalorder %s27, 0
      %p269 = por %p267, %p268
      %s271 = sadd.s32 %s270, 1
      %p274 = scmp.eq.s32.totalorder %s21, 1
      %p275 = scmp.ne.s32.totalorder %s270, %s272
      %p276 = scmp.eq.s32.totalorder %s21, 0
      %p277 = por %p275, %p276
      %p278 = scmp.ne.s32.totalorder %s270, %s272
      %p279 = scmp.eq.s32.totalorder %s26, 1
      %p280 = por %p278, %p279
      %p281 = scmp.ne.s32.totalorder %s272, %s273
      %p282 = scmp.eq.s32.totalorder %s26, 0
      %p283 = por %p281, %p282
      %p284 = scmp.ne.s32.totalorder %s272, %s273
      %p285 = scmp.eq.s32.totalorder %s27, 1
      %p286 = por %p284, %p285
      %p288 = scmp.ne.s32.totalorder %s273, %s287
      %p289 = scmp.eq.s32.totalorder %s27, 0
      %p290 = por %p288, %p289
      %s292 = sadd.s32 %s291, 1
      %p295 = scmp.eq.s32.totalorder %s21, 1
      %p296 = scmp.ne.s32.totalorder %s291, %s293
      %p297 = scmp.eq.s32.totalorder %s21, 0
      %p298 = por %p296, %p297
      %p299 = scmp.ne.s32.totalorder %s291, %s293
      %p300 = scmp.eq.s32.totalorder %s26, 1
      %p301 = por %p299, %p300
      %p302 = scmp.ne.s32.totalorder %s293, %s294
      %p303 = scmp.eq.s32.totalorder %s26, 0
      %p304 = por %p302, %p303
      %p305 = scmp.ne.s32.totalorder %s293, %s294
      %p306 = scmp.eq.s32.totalorder %s27, 1
      %p307 = por %p305, %p306
      %p309 = scmp.ne.s32.totalorder %s294, %s308
      %p310 = scmp.eq.s32.totalorder %s27, 0
      %p311 = por %p309, %p310
      %s313 = sadd.s32 %s312, 1
      %p316 = scmp.eq.s32.totalorder %s21, 1
      %p317 = scmp.ne.s32.totalorder %s312, %s314
      %p318 = scmp.eq.s32.totalorder %s21, 0
      %p319 = por %p317, %p318
      %p320 = scmp.ne.s32.totalorder %s312, %s314
      %p321 = scmp.eq.s32.totalorder %s26, 1
      %p322 = por %p320, %p321
      %p323 = scmp.ne.s32.totalorder %s314, %s315
      %p324 = scmp.eq.s32.totalorder %s26, 0
      %p325 = por %p323, %p324
      %p326 = scmp.ne.s32.totalorder %s314, %s315
      %p327 = scmp.eq.s32.totalorder %s27, 1
      %p328 = por %p326, %p327
      %p330 = scmp.ne.s32.totalorder %s315, %s329
      %p331 = scmp.eq.s32.totalorder %s27, 0
      %p332 = por %p330, %p331
      %s333 = ssub.s32 %s21, %s28
      %p334 = scmp.eq.s32.totalorder %s333, 0
      %s336 = sadd.s32 %s335, 1
      %s337 = scalar_select %p334, %s335, %s336
      %p340 = pneg %p334
      %p341 = scmp.eq.s32.totalorder %s21, 1
      %p342 = por %p340, %p341
      %p343 = scmp.ne.s32.totalorder %s335, %s338
      %p344 = scmp.eq.s32.totalorder %s21, 0
      %p345 = por %p343, %p344
      %p346 = scmp.ne.s32.totalorder %s335, %s338
      %p347 = scmp.eq.s32.totalorder %s26, 1
      %p348 = por %p346, %p347
      %p349 = scmp.ne.s32.totalorder %s338, %s339
      %p350 = scmp.eq.s32.totalorder %s26, 0
      %p351 = por %p349, %p350
      %p352 = scmp.ne.s32.totalorder %s338, %s339
      %p353 = scmp.eq.s32.totalorder %s27, 1
      %p354 = por %p352, %p353
      %p356 = scmp.ne.s32.totalorder %s339, %s355
      %p357 = scmp.eq.s32.totalorder %s27, 0
      %p358 = por %p356, %p357
      %p359 = scmp.le.s32.totalorder 1, %s21
      %p360 = scmp.lt.s32.totalorder %s21, 3
      %p361 = pnand %p359, %p360
      %p362 = pneg %p361
      // Predicated region
      $region9: #{bert_class_forward.4} parent=5 // pred_check
        _
      $region10: #{bert_class_forward.4} parent=5 // pred_check_branch
        %364 = sbr.rel (%p361) target = $region12
      $region11: #{bert_class_forward.4} parent=5 // pred_region
        %s365 = ssub.s32 %s21, 1
        // Predicated region
        $region13: #{bert_class_forward.4} parent=11 // pred_check
          %p366 = pneg %p94
        $region14: #{bert_class_forward.4} parent=11 // pred_check_branch
          %368 = sbr.rel (%p366) target = $region16
        $region15: #{bert_class_forward.4} parent=11 // pred_region
          _
        $region16: #{bert_class_forward.4} parent=11 // pred_fallthru
          _
        // Predicated region
        $region17: #{bert_class_forward.4} parent=11 // pred_check
          %p369 = pneg %p115
        $region18: #{bert_class_forward.4} parent=11 // pred_check_branch
          %371 = sbr.rel (%p369) target = $region20
        $region19: #{bert_class_forward.4} parent=11 // pred_region
          _
        $region20: #{bert_class_forward.4} parent=11 // pred_fallthru
          _
        // Predicated region
        $region21: #{bert_class_forward.4} parent=11 // pred_check
          %p372 = pneg %p136
        $region22: #{bert_class_forward.4} parent=11 // pred_check_branch
          %374 = sbr.rel (%p372) target = $region24
        $region23: #{bert_class_forward.4} parent=11 // pred_region
          _
        $region24: #{bert_class_forward.4} parent=11 // pred_fallthru
          _
        // Predicated region
        $region25: #{bert_class_forward.4} parent=11 // pred_check
          %p375 = pneg %p157
        $region26: #{bert_class_forward.4} parent=11 // pred_check_branch
          %377 = sbr.rel (%p375) target = $region28
        $region27: #{bert_class_forward.4} parent=11 // pred_region
          _
        $region28: #{bert_class_forward.4} parent=11 // pred_fallthru
          _
        // Predicated region
        $region29: #{bert_class_forward.4} parent=11 // pred_check
          %p378 = pneg %p178
        $region30: #{bert_class_forward.4} parent=11 // pred_check_branch
          %380 = sbr.rel (%p378) target = $region32
        $region31: #{bert_class_forward.4} parent=11 // pred_region
          _
        $region32: #{bert_class_forward.4} parent=11 // pred_fallthru
          _
        // Predicated region
        $region33: #{bert_class_forward.4} parent=11 // pred_check
          %p381 = pneg %p199
        $region34: #{bert_class_forward.4} parent=11 // pred_check_branch
          %383 = sbr.rel (%p381) target = $region36
        $region35: #{bert_class_forward.4} parent=11 // pred_region
          _
        $region36: #{bert_class_forward.4} parent=11 // pred_fallthru
          _
        // Predicated region
        $region37: #{bert_class_forward.4} parent=11 // pred_check
          %p384 = pneg %p220
        $region38: #{bert_class_forward.4} parent=11 // pred_check_branch
          %386 = sbr.rel (%p384) target = $region40
        $region39: #{bert_class_forward.4} parent=11 // pred_region
          _
        $region40: #{bert_class_forward.4} parent=11 // pred_fallthru
          _
        // Predicated region
        $region41: #{bert_class_forward.4} parent=11 // pred_check
          %p387 = pneg %p241
        $region42: #{bert_class_forward.4} parent=11 // pred_check_branch
          %389 = sbr.rel (%p387) target = $region44
        $region43: #{bert_class_forward.4} parent=11 // pred_region
          _
        $region44: #{bert_class_forward.4} parent=11 // pred_fallthru
          _
        // Predicated region
        $region45: #{bert_class_forward.4} parent=11 // pred_check
          %p390 = pneg %p262
        $region46: #{bert_class_forward.4} parent=11 // pred_check_branch
          %392 = sbr.rel (%p390) target = $region48
        $region47: #{bert_class_forward.4} parent=11 // pred_region
          %s394 = ssub.s32 4096, 4096
          %395 = vsyncadd [#allocation3], %s394
          %s396 = sshll.u32 [#allocation2], 4
          %s397 = int_to_ptr.vmem [resolvable:$true] %s396
          %402 = dma.hbm_to_vmem [thread:$0]  %s10, 4096, %s397, [#allocation3], 64, 64, 4
        $region48: #{bert_class_forward.4} parent=11 // pred_fallthru
          _
        // Predicated region
        $region49: #{bert_class_forward.4} parent=11 // pred_check
          %p403 = pneg %p283
        $region50: #{bert_class_forward.4} parent=11 // pred_check_branch
          %405 = sbr.rel (%p403) target = $region52
        $region51: #{bert_class_forward.4} parent=11 // pred_region
          _
        $region52: #{bert_class_forward.4} parent=11 // pred_fallthru
          _
        // Predicated region
        $region53: #{bert_class_forward.4} parent=11 // pred_check
          %p406 = pneg %p304
        $region54: #{bert_class_forward.4} parent=11 // pred_check_branch
          %408 = sbr.rel (%p406) target = $region56
        $region55: #{bert_class_forward.4} parent=11 // pred_region
          _
        $region56: #{bert_class_forward.4} parent=11 // pred_fallthru
          _
        // Predicated region
        $region57: #{bert_class_forward.4} parent=11 // pred_check
          %p409 = pneg %p325
        $region58: #{bert_class_forward.4} parent=11 // pred_check_branch
          %411 = sbr.rel (%p409) target = $region60
        $region59: #{bert_class_forward.4} parent=11 // pred_region
          _
        $region60: #{bert_class_forward.4} parent=11 // pred_fallthru
          _
      $region12: #{bert_class_forward.4} parent=5 // pred_fallthru
        _
      %p412 = scmp.lt.s32.totalorder %s21, 2
      // Predicated region
      $region61: #{bert_class_forward.4} parent=5 // pred_check
        %p413 = pneg %p412
      $region62: #{bert_class_forward.4} parent=5 // pred_check_branch
        %415 = sbr.rel (%p413) target = $region64
      $region63: #{bert_class_forward.4} parent=5 // pred_region
        // Predicated region
        $region65: #{bert_class_forward.4} parent=63 // pred_check
          %p416 = pneg %p41
        $region66: #{bert_class_forward.4} parent=63 // pred_check_branch
          %418 = sbr.rel (%p416) target = $region68
        $region67: #{bert_class_forward.4} parent=63 // pred_region
          %p419 = scmp.lt.s32.totalorder %s21, 1
          %s420 = scalar_select %p419, %s21, 1
          %s421 = smul.addr %s420, 4
          %s422 = scalar_lea.vmem %s0, %s421
        $region68: #{bert_class_forward.4} parent=63 // pred_fallthru
          _
        // Predicated region
        $region69: #{bert_class_forward.4} parent=63 // pred_check
          %p423 = pneg %p67
        $region70: #{bert_class_forward.4} parent=63 // pred_check_branch
          %425 = sbr.rel (%p423) target = $region72
        $region71: #{bert_class_forward.4} parent=63 // pred_region
          %p426 = scmp.lt.s32.totalorder %s21, 1
          %s427 = scalar_select %p426, %s21, 1
          %s428 = scalar_lea.vmem %s1, %s427
        $region72: #{bert_class_forward.4} parent=63 // pred_fallthru
          _
      $region64: #{bert_class_forward.4} parent=5 // pred_fallthru
        _
      %p429 = scmp.le.s32.totalorder 1, %s21
      %p430 = scmp.lt.s32.totalorder %s21, 3
      %p431 = pnand %p429, %p430
      %p432 = pneg %p431
      // Predicated region
      $region73: #{bert_class_forward.4} parent=5 // pred_check
        _
      $region74: #{bert_class_forward.4} parent=5 // pred_check_branch
        %434 = sbr.rel (%p431) target = $region76
      $region75: #{bert_class_forward.4} parent=5 // pred_region
        %s435 = ssub.s32 %s21, 1
        // Predicated region
        $region77: #{bert_class_forward.4} parent=75 // pred_check
          %p436 = pneg %p262
        $region78: #{bert_class_forward.4} parent=75 // pred_check_branch
          %438 = sbr.rel (%p436) target = $region80
        $region79: #{bert_class_forward.4} parent=75 // pred_region
          %439 = dma.done [#allocation3], 4096
        $region80: #{bert_class_forward.4} parent=75 // pred_fallthru
          _
        %p440 = scmp.lt.s32.totalorder %s26, 1
        %s441 = scalar_select %p440, %s26, 1
        %s442 = smul.addr %s441, 4
        %s443 = scalar_lea.vmem %s0, %s442
        %p444 = pneg %p47
        %p445 = pneg %p44
        %p446 = scmp.lt.s32.totalorder %s26, 1
        %s447 = scalar_select %p446, %s26, 1
        %s448 = scalar_lea.vmem %s1, %s447
        %p449 = pneg %p73
        %p450 = pneg %p70
        %p451 = pneg %p94
        %p452 = pneg %p91
        %p453 = pneg %p115
        %p454 = pneg %p112
        %p455 = pneg %p136
        %p456 = pneg %p133
        %p457 = pneg %p157
        %p458 = pneg %p154
        %p459 = pneg %p178
        %p460 = pneg %p175
        %p461 = pneg %p199
        %p462 = pneg %p196
        %p463 = pneg %p220
        %p464 = pneg %p217
        %p465 = pneg %p241
        %p466 = pneg %p238
        %p467 = pneg %p262
        %p468 = pneg %p259
        %p469 = pneg %p283
        %p470 = pneg %p280
        %p471 = pneg %p304
        %p472 = pneg %p301
        %p473 = pneg %p325
        %p474 = pneg %p322
        %p475 = pneg %p351
        %p476 = pneg %p348
        %p477 = scmp.lt.s32.totalorder %s26, 1
        %s478 = scalar_select %p477, %s26, 1
        %s479 = smul.addr %s478, 4
        %s480 = scalar_lea.vmem %s14, %s479
        %p481 = scmp.lt.s32.totalorder %s26, 1
        %s482 = scalar_select %p481, %s26, 1
        %s483 = smul.addr %s482, 4
        %s484 = scalar_lea.vmem %s0, %s483
        %p485 = scmp.lt.s32.totalorder %s26, 1
        %s486 = scalar_select %p485, %s26, 1
        %s487 = scalar_lea.vmem %s1, %s486
        %p488 = scmp.lt.s32.totalorder %s26, 1
        %s489 = scalar_select %p488, %s26, 1
        %s490 = smul.addr %s489, 4
        %s491 = scalar_lea.vmem %s14, %s490
        %v493 = vld [vmem:[%s484] sm:$0xf]
        %v494 = vld [vmem:[%s487] sm:$0x1]
        %v495 = vld [vmem:[%s2] sm:$0xff]
        %v496 = vld [vmem:[%s2 + $0x8] sm:$0xf]
        %v497 = vld [vmem:[%s2 + $0xc] sm:$0xff]
        %v498 = vld [vmem:[%s2 + $0x14] sm:$0xf]
        %v499 = vld [vmem:[%s2 + $0x18] sm:$0xff]
        %v500 = vld [vmem:[%s2 + $0x20] sm:$0xf]
        %v501 = vld [vmem:[%s2 + $0x24] sm:$0xff]
        %v502 = vld [vmem:[%s2 + $0x2c] sm:$0xf]
        %v503 = vld [vmem:[%s2 + $0x30] sm:$0xff]
        %v504 = vld [vmem:[%s2 + $0x38] sm:$0xf]
        %v505 = vld [vmem:[%s2 + $0x3c] sm:$0xff]
        %v506 = vld [vmem:[%s2 + $0x44] sm:$0xf]
        %v507 = vld [vmem:[%s2 + $0x48] sm:$0xff]
        %v508 = vld [vmem:[%s2 + $0x50] sm:$0xf]
        %v509 = vld [vmem:[%s2 + $0x54] sm:$0xff]
        %v510 = vld [vmem:[%s2 + $0x5c] sm:$0xf]
        %v511 = vld [vmem:[%s2 + $0x60] sm:$0xff]
        %v512 = vld [vmem:[%s2 + $0x68] sm:$0xf]
        %v513 = vld [vmem:[%s2 + $0x6c] sm:$0xff]
        %v514 = vld [vmem:[%s2 + $0x74] sm:$0xf]
        %v515 = vld [vmem:[%s2 + $0x78] sm:$0xff]
        %v516 = vld [vmem:[%s2 + $0x80] sm:$0xf]
        %v517 = vld [vmem:[%s2 + $0x84] sm:$0xff]
        %v518 = vld [vmem:[%s2 + $0x8c] sm:$0xf]
        %v519 = vld [vmem:[%s2 + $0x90] sm:$0xff]
        %v520 = vld [vmem:[%s2 + $0x98] sm:$0xf]
        %v521 = vld [vmem:[%s2 + $0x9c] sm:$0xff]
        %v522 = vld [vmem:[%s2 + $0xa4] sm:$0xf]
        %v523 = vld [vmem:[%s2 + $0xa8] sm:$0xff]
        %v524 = vld [vmem:[%s2 + $0xb0] sm:$0xf]
        %v525 = vld [vmem:[%s2 + $0xb4] sm:$0xff]
        %v526 = vld [vmem:[%s2 + $0xbc] sm:$0xf]
        %v527 = vld [vmem:[%s3] sm:$0x7]
        %v528 = vld [vmem:[%s4] sm:$0xf]
        %v529 = vld [vmem:[%s4 + $0x4] sm:$0xf]
        %v530 = vld [vmem:[%s4 + $0x8] sm:$0xf]
        %v531 = vld [vmem:[%s4 + $0xc] sm:$0xf]
        %v532 = vld [vmem:[%s4 + $0x10] sm:$0xf]
        %v533 = vld [vmem:[%s4 + $0x14] sm:$0xf]
        %v534 = vld [vmem:[%s4 + $0x18] sm:$0xf]
        %v535 = vld [vmem:[%s4 + $0x1c] sm:$0xf]
        %v536 = vld [vmem:[%s4 + $0x20] sm:$0xf]
        %v537 = vld [vmem:[%s4 + $0x24] sm:$0xf]
        %v538 = vld [vmem:[%s4 + $0x28] sm:$0xf]
        %v539 = vld [vmem:[%s4 + $0x2c] sm:$0xf]
        %v540 = vld [vmem:[%s4 + $0x30] sm:$0xf]
        %v541 = vld [vmem:[%s4 + $0x34] sm:$0xf]
        %v542 = vld [vmem:[%s4 + $0x38] sm:$0xf]
        %v543 = vld [vmem:[%s4 + $0x3c] sm:$0xf]
        %v544 = vld [vmem:[%s5] sm:$0x1]
        %v545 = vld [vmem:[%s6] sm:$0x1]
        %v546 = vld [vmem:[%s7] sm:$0x1]
        %v547 = vld [vmem:[%s8] sm:$0xff]
        %v548 = vld [vmem:[%s8 + $0x8] sm:$0xff]
        %v549 = vld [vmem:[%s8 + $0x10] sm:$0xff]
        %v550 = vld [vmem:[%s8 + $0x18] sm:$0xff]
        %v551 = vld [vmem:[%s8 + $0x20] sm:$0xff]
        %v552 = vld [vmem:[%s8 + $0x28] sm:$0xff]
        %v553 = vld [vmem:[%s8 + $0x30] sm:$0xff]
        %v554 = vld [vmem:[%s8 + $0x38] sm:$0xff]
        %v555 = vld [vmem:[%s8 + $0x40] sm:$0xff]
        %v556 = vld [vmem:[%s8 + $0x48] sm:$0xff]
        %v557 = vld [vmem:[%s8 + $0x50] sm:$0xff]
        %v558 = vld [vmem:[%s8 + $0x58] sm:$0xff]
        %v559 = vld [vmem:[%s8 + $0x60] sm:$0xff]
        %v560 = vld [vmem:[%s8 + $0x68] sm:$0xff]
        %v561 = vld [vmem:[%s8 + $0x70] sm:$0xff]
        %v562 = vld [vmem:[%s8 + $0x78] sm:$0xff]
        %v563 = vld [vmem:[%s8 + $0x80] sm:$0xff]
        %v564 = vld [vmem:[%s8 + $0x88] sm:$0xff]
        %v565 = vld [vmem:[%s8 + $0x90] sm:$0xff]
        %v566 = vld [vmem:[%s8 + $0x98] sm:$0xff]
        %v567 = vld [vmem:[%s8 + $0xa0] sm:$0xff]
        %v568 = vld [vmem:[%s8 + $0xa8] sm:$0xff]
        %v569 = vld [vmem:[%s8 + $0xb0] sm:$0xff]
        %v570 = vld [vmem:[%s8 + $0xb8] sm:$0xff]
        %v571 = vld [vmem:[%s8 + $0xc0] sm:$0xff]
        %v572 = vld [vmem:[%s8 + $0xc8] sm:$0xff]
        %v573 = vld [vmem:[%s8 + $0xd0] sm:$0xff]
        %v574 = vld [vmem:[%s8 + $0xd8] sm:$0xff]
        %v575 = vld [vmem:[%s8 + $0xe0] sm:$0xff]
        %v576 = vld [vmem:[%s8 + $0xe8] sm:$0xff]
        %v577 = vld [vmem:[%s8 + $0xf0] sm:$0xff]
        %v578 = vld [vmem:[%s8 + $0xf8] sm:$0xff]
        %v579 = vld [vmem:[%s9] sm:$0xf]
        %v580 = vld [vmem:[#allocation2] sm:$0xf]
        %v581 = vld [vmem:[#allocation2 + $0x4] sm:$0xf]
        %v582 = vld [vmem:[#allocation2 + $0x8] sm:$0xf]
        %v583 = vld [vmem:[#allocation2 + $0xc] sm:$0xf]
        %v584 = vld [vmem:[#allocation2 + $0x10] sm:$0xf]
        %v585 = vld [vmem:[#allocation2 + $0x14] sm:$0xf]
        %v586 = vld [vmem:[#allocation2 + $0x18] sm:$0xf]
        %v587 = vld [vmem:[#allocation2 + $0x1c] sm:$0xf]
        %v588 = vld [vmem:[#allocation2 + $0x20] sm:$0xf]
        %v589 = vld [vmem:[#allocation2 + $0x24] sm:$0xf]
        %v590 = vld [vmem:[#allocation2 + $0x28] sm:$0xf]
        %v591 = vld [vmem:[#allocation2 + $0x2c] sm:$0xf]
        %v592 = vld [vmem:[#allocation2 + $0x30] sm:$0xf]
        %v593 = vld [vmem:[#allocation2 + $0x34] sm:$0xf]
        %v594 = vld [vmem:[#allocation2 + $0x38] sm:$0xf]
        %v595 = vld [vmem:[#allocation2 + $0x3c] sm:$0xf]
        %v596 = vld [vmem:[#allocation2 + $0x40] sm:$0xf]
        %v597 = vld [vmem:[#allocation2 + $0x44] sm:$0xf]
        %v598 = vld [vmem:[#allocation2 + $0x48] sm:$0xf]
        %v599 = vld [vmem:[#allocation2 + $0x4c] sm:$0xf]
        %v600 = vld [vmem:[#allocation2 + $0x50] sm:$0xf]
        %v601 = vld [vmem:[#allocation2 + $0x54] sm:$0xf]
        %v602 = vld [vmem:[#allocation2 + $0x58] sm:$0xf]
        %v603 = vld [vmem:[#allocation2 + $0x5c] sm:$0xf]
        %v604 = vld [vmem:[#allocation2 + $0x60] sm:$0xf]
        %v605 = vld [vmem:[#allocation2 + $0x64] sm:$0xf]
        %v606 = vld [vmem:[#allocation2 + $0x68] sm:$0xf]
        %v607 = vld [vmem:[#allocation2 + $0x6c] sm:$0xf]
        %v608 = vld [vmem:[#allocation2 + $0x70] sm:$0xf]
        %v609 = vld [vmem:[#allocation2 + $0x74] sm:$0xf]
        %v610 = vld [vmem:[#allocation2 + $0x78] sm:$0xf]
        %v611 = vld [vmem:[#allocation2 + $0x7c] sm:$0xf]
        %v612 = vld [vmem:[#allocation2 + $0x80] sm:$0xf]
        %v613 = vld [vmem:[#allocation2 + $0x84] sm:$0xf]
        %v614 = vld [vmem:[#allocation2 + $0x88] sm:$0xf]
        %v615 = vld [vmem:[#allocation2 + $0x8c] sm:$0xf]
        %v616 = vld [vmem:[#allocation2 + $0x90] sm:$0xf]
        %v617 = vld [vmem:[#allocation2 + $0x94] sm:$0xf]
        %v618 = vld [vmem:[#allocation2 + $0x98] sm:$0xf]
        %v619 = vld [vmem:[#allocation2 + $0x9c] sm:$0xf]
        %v620 = vld [vmem:[#allocation2 + $0xa0] sm:$0xf]
        %v621 = vld [vmem:[#allocation2 + $0xa4] sm:$0xf]
        %v622 = vld [vmem:[#allocation2 + $0xa8] sm:$0xf]
        %v623 = vld [vmem:[#allocation2 + $0xac] sm:$0xf]
        %v624 = vld [vmem:[#allocation2 + $0xb0] sm:$0xf]
        %v625 = vld [vmem:[#allocation2 + $0xb4] sm:$0xf]
        %v626 = vld [vmem:[#allocation2 + $0xb8] sm:$0xf]
        %v627 = vld [vmem:[#allocation2 + $0xbc] sm:$0xf]
        %v628 = vld [vmem:[#allocation2 + $0xc0] sm:$0xf]
        %v629 = vld [vmem:[#allocation2 + $0xc4] sm:$0xf]
        %v630 = vld [vmem:[#allocation2 + $0xc8] sm:$0xf]
        %v631 = vld [vmem:[#allocation2 + $0xcc] sm:$0xf]
        %v632 = vld [vmem:[#allocation2 + $0xd0] sm:$0xf]
        %v633 = vld [vmem:[#allocation2 + $0xd4] sm:$0xf]
        %v634 = vld [vmem:[#allocation2 + $0xd8] sm:$0xf]
        %v635 = vld [vmem:[#allocation2 + $0xdc] sm:$0xf]
        %v636 = vld [vmem:[#allocation2 + $0xe0] sm:$0xf]
        %v637 = vld [vmem:[#allocation2 + $0xe4] sm:$0xf]
        %v638 = vld [vmem:[#allocation2 + $0xe8] sm:$0xf]
        %v639 = vld [vmem:[#allocation2 + $0xec] sm:$0xf]
        %v640 = vld [vmem:[#allocation2 + $0xf0] sm:$0xf]
        %v641 = vld [vmem:[#allocation2 + $0xf4] sm:$0xf]
        %v642 = vld [vmem:[#allocation2 + $0xf8] sm:$0xf]
        %v643 = vld [vmem:[#allocation2 + $0xfc] sm:$0xf]
        %v644 = vld [vmem:[%s11] sm:$0x1]
        %v645 = vld [vmem:[%s12] sm:$0x1]
        %v646 = vld [vmem:[%s13] sm:$0x1]
        %v647 = vunpack.c.l.bf16 %v493
        %v649 = vlaneseq
        %v650 = vshrl.u32 %v649, 7
        %v651 = vsub.s32 0, %v650
        %v652 = vrot.slane %v527, %v651
        %v653 = vlaneseq
        %v654 = vshrl.u32 %v653, 7
        %v655 = vsub.s32 1, %v654
        %v656 = vrot.slane %v527, %v655
        %v657 = vlaneseq
        %v658 = vshrl.u32 %v657, 7
        %v659 = vsub.s32 2, %v658
        %v660 = vrot.slane %v527, %v659
        %v696 = vunpack.c.l.b16 %v495
        %v697 = vunpack.c.h.b16 %v495
        %v698 = vunpack.c.l.b16 %v496
        %v699 = vunpack.c.l.b16 %v497
        %v700 = vunpack.c.h.b16 %v497
        %v701 = vunpack.c.l.b16 %v498
        %v702 = vunpack.c.l.b16 %v499
        %v703 = vunpack.c.h.b16 %v499
        %v704 = vunpack.c.l.b16 %v500
        %v705 = vunpack.c.l.b16 %v501
        %v706 = vunpack.c.h.b16 %v501
        %v707 = vunpack.c.l.b16 %v502
        %v708 = vunpack.c.l.b16 %v503
        %v709 = vunpack.c.h.b16 %v503
        %v710 = vunpack.c.l.b16 %v504
        %v711 = vunpack.c.l.b16 %v505
        %v712 = vunpack.c.h.b16 %v505
        %v713 = vunpack.c.l.b16 %v506
        %v714 = vunpack.c.l.b16 %v507
        %v715 = vunpack.c.h.b16 %v507
        %v716 = vunpack.c.l.b16 %v508
        %v717 = vunpack.c.l.b16 %v509
        %v718 = vunpack.c.h.b16 %v509
        %v719 = vunpack.c.l.b16 %v510
        %v720 = vunpack.c.l.b16 %v511
        %v721 = vunpack.c.h.b16 %v511
        %v722 = vunpack.c.l.b16 %v512
        %v723 = vunpack.c.l.b16 %v513
        %v724 = vunpack.c.h.b16 %v513
        %v725 = vunpack.c.l.b16 %v514
        %v726 = vunpack.c.l.b16 %v515
        %v727 = vunpack.c.h.b16 %v515
        %v728 = vunpack.c.l.b16 %v516
        %v729 = vunpack.c.l.b16 %v517
        %v730 = vunpack.c.h.b16 %v517
        %v731 = vunpack.c.l.b16 %v518
        %v732 = vunpack.c.l.b16 %v519
        %v733 = vunpack.c.h.b16 %v519
        %v734 = vunpack.c.l.b16 %v520
        %v735 = vunpack.c.l.b16 %v521
        %v736 = vunpack.c.h.b16 %v521
        %v737 = vunpack.c.l.b16 %v522
        %v738 = vunpack.c.l.b16 %v523
        %v739 = vunpack.c.h.b16 %v523
        %v740 = vunpack.c.l.b16 %v524
        %v741 = vunpack.c.l.b16 %v525
        %v742 = vunpack.c.h.b16 %v525
        %v743 = vunpack.c.l.b16 %v526
        %v744 = vpack.c.b16 %v699, %v696
        %v745 = vpack.c.b16 %v700, %v697
        %v746 = vpack.c.b16 %v701, %v698
        %v747 = vpack.c.b16 %v705, %v702
        %v748 = vpack.c.b16 %v706, %v703
        %v749 = vpack.c.b16 %v707, %v704
        %v750 = vpack.c.b16 %v711, %v708
        %v751 = vpack.c.b16 %v712, %v709
        %v752 = vpack.c.b16 %v713, %v710
        %v753 = vpack.c.b16 %v717, %v714
        %v754 = vpack.c.b16 %v718, %v715
        %v755 = vpack.c.b16 %v719, %v716
        %v756 = vpack.c.b16 %v723, %v720
        %v757 = vpack.c.b16 %v724, %v721
        %v758 = vpack.c.b16 %v725, %v722
        %v759 = vpack.c.b16 %v729, %v726
        %v760 = vpack.c.b16 %v730, %v727
        %v761 = vpack.c.b16 %v731, %v728
        %v762 = vpack.c.b16 %v735, %v732
        %v763 = vpack.c.b16 %v736, %v733
        %v764 = vpack.c.b16 %v737, %v734
        %v765 = vpack.c.b16 %v741, %v738
        %v766 = vpack.c.b16 %v742, %v739
        %v767 = vpack.c.b16 %v743, %v740
        %792 = vmatprep.subr.bf16.mxu0 %v745
        %793 = vmatpush1.bf16.msra.mxu0 %v744
        %794 = vmatprep.subr.bf16.mxu0 %v748
        %795 = vmatpush1.bf16.msra.mxu0 %v747
        %796 = vmatprep.subr.bf16.mxu0 %v751
        %797 = vmatpush1.bf16.msra.mxu0 %v750
        %798 = vmatprep.subr.bf16.mxu0 %v754
        %799 = vmatpush1.bf16.msra.mxu0 %v753
        %800 = vmatprep.subr.bf16.mxu0 %v757
        %801 = vmatpush1.bf16.msra.mxu0 %v756
        %802 = vmatprep.subr.bf16.mxu0 %v760
        %803 = vmatpush1.bf16.msra.mxu0 %v759
        %804 = vmatprep.subr.bf16.mxu0 %v763
        %805 = vmatpush1.bf16.msra.mxu0 %v762
        %806 = vmatprep.subr.bf16.mxu0 %v766
        %807 = vmatpush1.bf16.msra.mxu0 %v765
        %808 = vmatprep.subr.bf16.mxu0 0
        %809 = vmatpush1.bf16.msra.mxu0 0
        %810 = vmatprep.subr.bf16.mxu0 0
        %811 = vmatpush1.bf16.msra.mxu0 0
        %812 = vmatprep.subr.bf16.mxu0 0
        %813 = vmatpush1.bf16.msra.mxu0 0
        %814 = vmatprep.subr.bf16.mxu0 0
        %815 = vmatpush1.bf16.msra.mxu0 0
        %816 = vmatprep.subr.bf16.mxu0 0
        %817 = vmatpush1.bf16.msra.mxu0 0
        %818 = vmatprep.subr.bf16.mxu0 0
        %819 = vmatpush1.bf16.msra.mxu0 0
        %820 = vmatprep.subr.bf16.mxu0 0
        %821 = vmatpush1.bf16.msra.mxu0 0
        %822 = vmatprep.subr.bf16.mxu0 0
        %823 = vmatpush1.bf16.msra.mxu0 0
        %824 = vmatprep.mubr.bf16.mxu0 0
        %825 = vmatmul.mubr.bf16.gmra.mrb[0].mxu0 %v493
        %v826 = vpop.f32.mrb[0].mxu0
        %v827 = vadd.f32 %v652, %v826
        %v828 = vpop.f32.mrb[0].mxu0
        %v829 = vadd.f32 %v656, %v828
        %v830 = vpop.f32.mrb[0].mxu0
        %v831 = vpop.f32.mrb[0].mxu0
        %832 = vdwg.mxu0
        %833 = vmatprep.subr.bf16.mxu0 0
        %834 = vmatpush1.bf16.msra.mxu0 %v746
        %835 = vmatprep.subr.bf16.mxu0 0
        %836 = vmatpush1.bf16.msra.mxu0 %v749
        %837 = vmatprep.subr.bf16.mxu0 0
        %838 = vmatpush1.bf16.msra.mxu0 %v752
        %839 = vmatprep.subr.bf16.mxu0 0
        %840 = vmatpush1.bf16.msra.mxu0 %v755
        %841 = vmatprep.subr.bf16.mxu0 0
        %842 = vmatpush1.bf16.msra.mxu0 %v758
        %843 = vmatprep.subr.bf16.mxu0 0
        %844 = vmatpush1.bf16.msra.mxu0 %v761
        %845 = vmatprep.subr.bf16.mxu0 0
        %846 = vmatpush1.bf16.msra.mxu0 %v764
        %847 = vmatprep.subr.bf16.mxu0 0
        %848 = vmatpush1.bf16.msra.mxu0 %v767
        %849 = vmatprep.subr.bf16.mxu0 0
        %850 = vmatpush1.bf16.msra.mxu0 0
        %851 = vmatprep.subr.bf16.mxu0 0
        %852 = vmatpush1.bf16.msra.mxu0 0
        %853 = vmatprep.subr.bf16.mxu0 0
        %854 = vmatpush1.bf16.msra.mxu0 0
        %855 = vmatprep.subr.bf16.mxu0 0
        %856 = vmatpush1.bf16.msra.mxu0 0
        %857 = vmatprep.subr.bf16.mxu0 0
        %858 = vmatpush1.bf16.msra.mxu0 0
        %859 = vmatprep.subr.bf16.mxu0 0
        %860 = vmatpush1.bf16.msra.mxu0 0
        %861 = vmatprep.subr.bf16.mxu0 0
        %862 = vmatpush1.bf16.msra.mxu0 0
        %863 = vmatprep.subr.bf16.mxu0 0
        %864 = vmatpush1.bf16.msra.mxu0 0
        %865 = vmatprep.mubr.bf16.mxu0 0
        %866 = vmatmul.mubr.bf16.gmra.mrb[0].mxu0 %v493
        %v867 = vpop.f32.mrb[0].mxu0
        %v868 = vadd.f32 %v660, %v867
        %v869 = vpop.f32.mrb[0].mxu0
        %v870 = vpop.f32.mrb[0].mxu0
        %v871 = vpop.f32.mrb[0].mxu0
        %872 = vdwg.mxu0
        %v873 = vpack.c.bf16 %v827, %v827
        %v874 = vpack.c.bf16 %v829, %v829
        %v875 = vpack.c.bf16 %v868, %v868
        %v876 = vlaneseq
        %v877 = vand.u32 %v876, 127
        %vm878 = vcmp.ge.s32.totalorder %v877, 0
        %vm879 = vcmp.lt.s32.totalorder %v877, 64
        %vm880 = vmand %vm878, %vm879
        %v881 = vsel %vm880, 1, 0
        %v882 = vcvt.s32.f32 %v881
        %v883 = vpack.c.bf16 %v882, %v882
        %v884 = vmul.bf16 %v874, %v883
        %v886 = vlaneseq
        %v887 = vshrl.u32 %v886, 7
        %v888 = vsub.s32 0, %v887
        %v889 = vrot.slane %v494, %v888
        %891 = vmatprep.subr.bf16.mxu0 0
        %892 = vmatpush1.bf16.xpose.msra.mxu0 %v884
        %893 = vmatprep.subr.bf16.mxu0 0
        %894 = vmatpush1.bf16.xpose.msra.mxu0 0
        %895 = vmatprep.subr.bf16.mxu0 0
        %896 = vmatpush1.bf16.xpose.msra.mxu0 0
        %897 = vmatprep.subr.bf16.mxu0 0
        %898 = vmatpush1.bf16.xpose.msra.mxu0 0
        %899 = vmatprep.subr.bf16.mxu0 0
        %900 = vmatpush1.bf16.xpose.msra.mxu0 0
        %901 = vmatprep.subr.bf16.mxu0 0
        %902 = vmatpush1.bf16.xpose.msra.mxu0 0
        %903 = vmatprep.subr.bf16.mxu0 0
        %904 = vmatpush1.bf16.xpose.msra.mxu0 0
        %905 = vmatprep.subr.bf16.mxu0 0
        %906 = vmatpush1.bf16.xpose.msra.mxu0 0
        %907 = vmatprep.subr.bf16.mxu0 0
        %908 = vmatpush1.bf16.xpose.msra.mxu0 0
        %909 = vmatprep.subr.bf16.mxu0 0
        %910 = vmatpush1.bf16.xpose.msra.mxu0 0
        %911 = vmatprep.subr.bf16.mxu0 0
        %912 = vmatpush1.bf16.xpose.msra.mxu0 0
        %913 = vmatprep.subr.bf16.mxu0 0
        %914 = vmatpush1.bf16.xpose.msra.mxu0 0
        %915 = vmatprep.subr.bf16.mxu0 0
        %916 = vmatpush1.bf16.xpose.msra.mxu0 0
        %917 = vmatprep.subr.bf16.mxu0 0
        %918 = vmatpush1.bf16.xpose.msra.mxu0 0
        %919 = vmatprep.subr.bf16.mxu0 0
        %920 = vmatpush1.bf16.xpose.msra.mxu0 0
        %921 = vmatprep.subr.bf16.mxu0 0
        %922 = vmatpush1.bf16.xpose.msra.mxu0 0
        %923 = vmatprep.mubr.bf16.mxu0 0
        %924 = vmatmul.mubr.bf16.gmra.mrb[0].mxu0 %v873
        %v925 = vpop.f32.mrb[0].mxu0
        %v926 = vadd.f32 %v889, %v925
        %v927 = vpop.f32.mrb[0].mxu0
        %v928 = vpop.f32.mrb[0].mxu0
        %v929 = vpop.f32.mrb[0].mxu0
        %930 = vdwg.mxu0
        %vm931 = vcmask 64512
        %v932 = vsel %vm931, %v926, -inf
        %933 = vmax.xlane.f32.xlu0 %v932
        %v934 = vpop.xlane.xlu0 %933
        %v935 = vsub.f32 %v926, %v934
        %v936 = vmul.f32 %v935, 1.442695
        %v937 = vpow.pop %v936
        %v938 = vsel %vm931, %v937, 0.0
        %939 = vadd.xlane.f32.xlu0 %v938
        %v940 = vpop.xlane.xlu0 %939
        %v941 = vrcp.pop %v940
        %v942 = vpack.c.bf16 %v937, %v937
        %v943 = vmul.bf16 %v875, %v883
        %v945 = vsel %vm931, %v942, 0
        %vm947 = vcmask 1043456
        %v949 = vsel %vm947, %v943, 0
        %951 = vmatprep.subr.bf16.mxu0 0
        %952 = vmatpush1.bf16.msra.mxu0 %v949
        %953 = vmatprep.subr.bf16.mxu0 0
        %954 = vmatpush1.bf16.msra.mxu0 0
        %955 = vmatprep.subr.bf16.mxu0 0
        %956 = vmatpush1.bf16.msra.mxu0 0
        %957 = vmatprep.subr.bf16.mxu0 0
        %958 = vmatpush1.bf16.msra.mxu0 0
        %959 = vmatprep.subr.bf16.mxu0 0
        %960 = vmatpush1.bf16.msra.mxu0 0
        %961 = vmatprep.subr.bf16.mxu0 0
        %962 = vmatpush1.bf16.msra.mxu0 0
        %963 = vmatprep.subr.bf16.mxu0 0
        %964 = vmatpush1.bf16.msra.mxu0 0
        %965 = vmatprep.subr.bf16.mxu0 0
        %966 = vmatpush1.bf16.msra.mxu0 0
        %967 = vmatprep.subr.bf16.mxu0 0
        %968 = vmatpush1.bf16.msra.mxu0 0
        %969 = vmatprep.subr.bf16.mxu0 0
        %970 = vmatpush1.bf16.msra.mxu0 0
        %971 = vmatprep.subr.bf16.mxu0 0
        %972 = vmatpush1.bf16.msra.mxu0 0
        %973 = vmatprep.subr.bf16.mxu0 0
        %974 = vmatpush1.bf16.msra.mxu0 0
        %975 = vmatprep.subr.bf16.mxu0 0
        %976 = vmatpush1.bf16.msra.mxu0 0
        %977 = vmatprep.subr.bf16.mxu0 0
        %978 = vmatpush1.bf16.msra.mxu0 0
        %979 = vmatprep.subr.bf16.mxu0 0
        %980 = vmatpush1.bf16.msra.mxu0 0
        %981 = vmatprep.subr.bf16.mxu0 0
        %982 = vmatpush1.bf16.msra.mxu0 0
        %983 = vmatprep.mubr.bf16.mxu0 0
        %984 = vmatmul.mubr.bf16.gmra.mrb[0].mxu0 %v945
        %v985 = vpop.f32.mrb[0].mxu0
        %v986 = vadd.f32 0.0, %v985
        %v987 = vpop.f32.mrb[0].mxu0
        %v988 = vpop.f32.mrb[0].mxu0
        %v989 = vpop.f32.mrb[0].mxu0
        %990 = vdwg.mxu0
        %v991 = vmul.f32 %v986, %v941
        %v992 = vadd.f32 %v991, 0.0
        %vm993 = vcmp.ge.s32.totalorder %v877, 64
        %vm994 = vcmp.lt.s32.totalorder %v877, 128
        %vm995 = vmand %vm993, %vm994
        %v996 = vsel %vm995, 1, 0
        %v997 = vcvt.s32.f32 %v996
        %v998 = vpack.c.bf16 %v997, %v997
        %v999 = vmul.bf16 %v874, %v998
        %1000 = vmatprep.subr.bf16.mxu0 0
        %1001 = vmatpush1.bf16.xpose.msra.mxu0 %v999
        %1002 = vmatprep.subr.bf16.mxu0 0
        %1003 = vmatpush1.bf16.xpose.msra.mxu0 0
        %1004 = vmatprep.subr.bf16.mxu0 0
        %1005 = vmatpush1.bf16.xpose.msra.mxu0 0
        %1006 = vmatprep.subr.bf16.mxu0 0
        %1007 = vmatpush1.bf16.xpose.msra.mxu0 0
        %1008 = vmatprep.subr.bf16.mxu0 0
        %1009 = vmatpush1.bf16.xpose.msra.mxu0 0
        %1010 = vmatprep.subr.bf16.mxu0 0
        %1011 = vmatpush1.bf16.xpose.msra.mxu0 0
        %1012 = vmatprep.subr.bf16.mxu0 0
        %1013 = vmatpush1.bf16.xpose.msra.mxu0 0
        %1014 = vmatprep.subr.bf16.mxu0 0
        %1015 = vmatpush1.bf16.xpose.msra.mxu0 0
        %1016 = vmatprep.subr.bf16.mxu0 0
        %1017 = vmatpush1.bf16.xpose.msra.mxu0 0
        %1018 = vmatprep.subr.bf16.mxu0 0
        %1019 = vmatpush1.bf16.xpose.msra.mxu0 0
        %1020 = vmatprep.subr.bf16.mxu0 0
        %1021 = vmatpush1.bf16.xpose.msra.mxu0 0
        %1022 = vmatprep.subr.bf16.mxu0 0
        %1023 = vmatpush1.bf16.xpose.msra.mxu0 0
        %1024 = vmatprep.subr.bf16.mxu0 0
        %1025 = vmatpush1.bf16.xpose.msra.mxu0 0
        %1026 = vmatprep.subr.bf16.mxu0 0
        %1027 = vmatpush1.bf16.xpose.msra.mxu0 0
        %1028 = vmatprep.subr.bf16.mxu0 0
        %1029 = vmatpush1.bf16.xpose.msra.mxu0 0
        %1030 = vmatprep.subr.bf16.mxu0 0
        %1031 = vmatpush1.bf16.xpose.msra.mxu0 0
        %1032 = vmatprep.mubr.bf16.mxu0 0
        %1033 = vmatmul.mubr.bf16.gmra.mrb[0].mxu0 %v873
        %v1034 = vpop.f32.mrb[0].mxu0
        %v1035 = vadd.f32 %v889, %v1034
        %v1036 = vpop.f32.mrb[0].mxu0
        %v1037 = vpop.f32.mrb[0].mxu0
        %v1038 = vpop.f32.mrb[0].mxu0
        %1039 = vdwg.mxu0
        %v1040 = vsel %vm931, %v1035, -inf
        %1041 = vmax.xlane.f32.xlu0 %v1040
        %v1042 = vpop.xlane.xlu0 %1041
        %v1043 = vsub.f32 %v1035, %v1042
        %v1044 = vmul.f32 %v1043, 1.442695
        %v1045 = vpow.pop %v1044
        %v1046 = vsel %vm931, %v1045, 0.0
        %1047 = vadd.xlane.f32.xlu0 %v1046
        %v1048 = vpop.xlane.xlu0 %1047
        %v1049 = vrcp.pop %v1048
        %v1050 = vpack.c.bf16 %v1045, %v1045
        %v1051 = vmul.bf16 %v875, %v998
        %v1053 = vsel %vm931, %v1050, 0
        %v1056 = vsel %vm947, %v1051, 0
        %1058 = vmatprep.subr.bf16.mxu0 0
        %1059 = vmatpush1.bf16.msra.mxu0 %v1056
        %1060 = vmatprep.subr.bf16.mxu0 0
        %1061 = vmatpush1.bf16.msra.mxu0 0
        %1062 = vmatprep.subr.bf16.mxu0 0
        %1063 = vmatpush1.bf16.msra.mxu0 0
        %1064 = vmatprep.subr.bf16.mxu0 0
        %1065 = vmatpush1.bf16.msra.mxu0 0
        %1066 = vmatprep.subr.bf16.mxu0 0
        %1067 = vmatpush1.bf16.msra.mxu0 0
        %1068 = vmatprep.subr.bf16.mxu0 0
        %1069 = vmatpush1.bf16.msra.mxu0 0
        %1070 = vmatprep.subr.bf16.mxu0 0
        %1071 = vmatpush1.bf16.msra.mxu0 0
        %1072 = vmatprep.subr.bf16.mxu0 0
        %1073 = vmatpush1.bf16.msra.mxu0 0
        %1074 = vmatprep.subr.bf16.mxu0 0
        %1075 = vmatpush1.bf16.msra.mxu0 0
        %1076 = vmatprep.subr.bf16.mxu0 0
        %1077 = vmatpush1.bf16.msra.mxu0 0
        %1078 = vmatprep.subr.bf16.mxu0 0
        %1079 = vmatpush1.bf16.msra.mxu0 0
        %1080 = vmatprep.subr.bf16.mxu0 0
        %1081 = vmatpush1.bf16.msra.mxu0 0
        %1082 = vmatprep.subr.bf16.mxu0 0
        %1083 = vmatpush1.bf16.msra.mxu0 0
        %1084 = vmatprep.subr.bf16.mxu0 0
        %1085 = vmatpush1.bf16.msra.mxu0 0
        %1086 = vmatprep.subr.bf16.mxu0 0
        %1087 = vmatpush1.bf16.msra.mxu0 0
        %1088 = vmatprep.subr.bf16.mxu0 0
        %1089 = vmatpush1.bf16.msra.mxu0 0
        %1090 = vmatprep.mubr.bf16.mxu0 0
        %1091 = vmatmul.mubr.bf16.gmra.mrb[0].mxu0 %v1053
        %v1092 = vpop.f32.mrb[0].mxu0
        %v1093 = vadd.f32 0.0, %v1092
        %v1094 = vpop.f32.mrb[0].mxu0
        %v1095 = vpop.f32.mrb[0].mxu0
        %v1096 = vpop.f32.mrb[0].mxu0
        %1097 = vdwg.mxu0
        %v1098 = vmul.f32 %v1093, %v1049
        %v1099 = vadd.f32 %v992, %v1098
        %v1100 = vpack.c.bf16 %v1099, %v1099
        %v1102 = vlaneseq
        %v1103 = vshrl.u32 %v1102, 7
        %v1104 = vsub.s32 0, %v1103
        %v1105 = vrot.slane %v544, %v1104
        %v1123 = vunpack.c.l.b16 %v528
        %v1124 = vunpack.c.l.b16 %v529
        %v1125 = vunpack.c.l.b16 %v530
        %v1126 = vunpack.c.l.b16 %v531
        %v1127 = vunpack.c.l.b16 %v532
        %v1128 = vunpack.c.l.b16 %v533
        %v1129 = vunpack.c.l.b16 %v534
        %v1130 = vunpack.c.l.b16 %v535
        %v1131 = vunpack.c.l.b16 %v536
        %v1132 = vunpack.c.l.b16 %v537
        %v1133 = vunpack.c.l.b16 %v538
        %v1134 = vunpack.c.l.b16 %v539
        %v1135 = vunpack.c.l.b16 %v540
        %v1136 = vunpack.c.l.b16 %v541
        %v1137 = vunpack.c.l.b16 %v542
        %v1138 = vunpack.c.l.b16 %v543
        %v1139 = vpack.c.b16 %v1124, %v1123
        %v1140 = vpack.c.b16 %v1126, %v1125
        %v1141 = vpack.c.b16 %v1128, %v1127
        %v1142 = vpack.c.b16 %v1130, %v1129
        %v1143 = vpack.c.b16 %v1132, %v1131
        %v1144 = vpack.c.b16 %v1134, %v1133
        %v1145 = vpack.c.b16 %v1136, %v1135
        %v1146 = vpack.c.b16 %v1138, %v1137
        %1155 = vmatprep.subr.bf16.mxu0 0
        %1156 = vmatpush1.bf16.msra.mxu0 %v1139
        %1157 = vmatprep.subr.bf16.mxu0 0
        %1158 = vmatpush1.bf16.msra.mxu0 %v1140
        %1159 = vmatprep.subr.bf16.mxu0 0
        %1160 = vmatpush1.bf16.msra.mxu0 %v1141
        %1161 = vmatprep.subr.bf16.mxu0 0
        %1162 = vmatpush1.bf16.msra.mxu0 %v1142
        %1163 = vmatprep.subr.bf16.mxu0 0
        %1164 = vmatpush1.bf16.msra.mxu0 %v1143
        %1165 = vmatprep.subr.bf16.mxu0 0
        %1166 = vmatpush1.bf16.msra.mxu0 %v1144
        %1167 = vmatprep.subr.bf16.mxu0 0
        %1168 = vmatpush1.bf16.msra.mxu0 %v1145
        %1169 = vmatprep.subr.bf16.mxu0 0
        %1170 = vmatpush1.bf16.msra.mxu0 %v1146
        %1171 = vmatprep.subr.bf16.mxu0 0
        %1172 = vmatpush1.bf16.msra.mxu0 0
        %1173 = vmatprep.subr.bf16.mxu0 0
        %1174 = vmatpush1.bf16.msra.mxu0 0
        %1175 = vmatprep.subr.bf16.mxu0 0
        %1176 = vmatpush1.bf16.msra.mxu0 0
        %1177 = vmatprep.subr.bf16.mxu0 0
        %1178 = vmatpush1.bf16.msra.mxu0 0
        %1179 = vmatprep.subr.bf16.mxu0 0
        %1180 = vmatpush1.bf16.msra.mxu0 0
        %1181 = vmatprep.subr.bf16.mxu0 0
        %1182 = vmatpush1.bf16.msra.mxu0 0
        %1183 = vmatprep.subr.bf16.mxu0 0
        %1184 = vmatpush1.bf16.msra.mxu0 0
        %1185 = vmatprep.subr.bf16.mxu0 0
        %1186 = vmatpush1.bf16.msra.mxu0 0
        %1187 = vmatprep.mubr.bf16.mxu0 0
        %1188 = vmatmul.mubr.bf16.gmra.mrb[0].mxu0 %v1100
        %v1189 = vpop.f32.mrb[0].mxu0
        %v1190 = vadd.f32 %v1105, %v1189
        %v1191 = vpop.f32.mrb[0].mxu0
        %v1192 = vpop.f32.mrb[0].mxu0
        %v1193 = vpop.f32.mrb[0].mxu0
        %1194 = vdwg.mxu0
        %v1195 = vadd.f32 %v1190, %v647
        %1196 = vadd.xlane.f32.xlu0 %v1195
        %v1197 = vpop.xlane.xlu0 %1196
        %v1198 = vrcp.pop 128.0
        %v1199 = vmul.f32 %v1197, %v1198
        %v1200 = vsub.f32 %v1195, %v1199
        %v1201 = vmul.f32 %v1200, %v1200
        %1202 = vadd.xlane.f32.xlu0 %v1201
        %v1203 = vpop.xlane.xlu0 %1202
        %v1204 = vmul.f32 %v1203, %v1198
        %v1205 = vadd.f32 %v1204, 1e-12
        %v1206 = vrsqrt.pop %v1205
        %v1207 = vmul.f32 %v1200, %v1206
        %v1209 = vlaneseq
        %v1210 = vshrl.u32 %v1209, 7
        %v1211 = vsub.s32 0, %v1210
        %v1212 = vrot.slane %v545, %v1211
        %v1214 = vmul.f32 %v1207, %v1212
        %v1216 = vlaneseq
        %v1217 = vshrl.u32 %v1216, 7
        %v1218 = vsub.s32 0, %v1217
        %v1219 = vrot.slane %v546, %v1218
        %v1221 = vadd.f32 %v1214, %v1219
        %v1222 = vpack.c.bf16 %v1221, %v1221
        %v1224 = vlaneseq
        %v1225 = vshrl.u32 %v1224, 7
        %v1226 = vsub.s32 0, %v1225
        %v1227 = vrot.slane %v579, %v1226
        %v1228 = vlaneseq
        %v1229 = vshrl.u32 %v1228, 7
        %v1230 = vsub.s32 1, %v1229
        %v1231 = vrot.slane %v579, %v1230
        %v1232 = vlaneseq
        %v1233 = vshrl.u32 %v1232, 7
        %v1234 = vsub.s32 2, %v1233
        %v1235 = vrot.slane %v579, %v1234
        %v1236 = vlaneseq
        %v1237 = vshrl.u32 %v1236, 7
        %v1238 = vsub.s32 3, %v1237
        %v1239 = vrot.slane %v579, %v1238
        %v1276 = vunpack.c.l.b16 %v547
        %v1277 = vunpack.c.h.b16 %v547
        %v1278 = vunpack.c.l.b16 %v548
        %v1279 = vunpack.c.h.b16 %v548
        %v1280 = vunpack.c.l.b16 %v549
        %v1281 = vunpack.c.h.b16 %v549
        %v1282 = vunpack.c.l.b16 %v550
        %v1283 = vunpack.c.h.b16 %v550
        %v1284 = vunpack.c.l.b16 %v551
        %v1285 = vunpack.c.h.b16 %v551
        %v1286 = vunpack.c.l.b16 %v552
        %v1287 = vunpack.c.h.b16 %v552
        %v1288 = vunpack.c.l.b16 %v553
        %v1289 = vunpack.c.h.b16 %v553
        %v1290 = vunpack.c.l.b16 %v554
        %v1291 = vunpack.c.h.b16 %v554
        %v1292 = vunpack.c.l.b16 %v555
        %v1293 = vunpack.c.h.b16 %v555
        %v1294 = vunpack.c.l.b16 %v556
        %v1295 = vunpack.c.h.b16 %v556
        %v1296 = vunpack.c.l.b16 %v557
        %v1297 = vunpack.c.h.b16 %v557
        %v1298 = vunpack.c.l.b16 %v558
        %v1299 = vunpack.c.h.b16 %v558
        %v1300 = vunpack.c.l.b16 %v559
        %v1301 = vunpack.c.h.b16 %v559
        %v1302 = vunpack.c.l.b16 %v560
        %v1303 = vunpack.c.h.b16 %v560
        %v1304 = vunpack.c.l.b16 %v561
        %v1305 = vunpack.c.h.b16 %v561
        %v1306 = vunpack.c.l.b16 %v562
        %v1307 = vunpack.c.h.b16 %v562
        %v1308 = vunpack.c.l.b16 %v563
        %v1309 = vunpack.c.h.b16 %v563
        %v1310 = vunpack.c.l.b16 %v564
        %v1311 = vunpack.c.h.b16 %v564
        %v1312 = vunpack.c.l.b16 %v565
        %v1313 = vunpack.c.h.b16 %v565
        %v1314 = vunpack.c.l.b16 %v566
        %v1315 = vunpack.c.h.b16 %v566
        %v1316 = vunpack.c.l.b16 %v567
        %v1317 = vunpack.c.h.b16 %v567
        %v1318 = vunpack.c.l.b16 %v568
        %v1319 = vunpack.c.h.b16 %v568
        %v1320 = vunpack.c.l.b16 %v569
        %v1321 = vunpack.c.h.b16 %v569
        %v1322 = vunpack.c.l.b16 %v570
        %v1323 = vunpack.c.h.b16 %v570
        %v1324 = vunpack.c.l.b16 %v571
        %v1325 = vunpack.c.h.b16 %v571
        %v1326 = vunpack.c.l.b16 %v572
        %v1327 = vunpack.c.h.b16 %v572
        %v1328 = vunpack.c.l.b16 %v573
        %v1329 = vunpack.c.h.b16 %v573
        %v1330 = vunpack.c.l.b16 %v574
        %v1331 = vunpack.c.h.b16 %v574
        %v1332 = vunpack.c.l.b16 %v575
        %v1333 = vunpack.c.h.b16 %v575
        %v1334 = vunpack.c.l.b16 %v576
        %v1335 = vunpack.c.h.b16 %v576
        %v1336 = vunpack.c.l.b16 %v577
        %v1337 = vunpack.c.h.b16 %v577
        %v1338 = vunpack.c.l.b16 %v578
        %v1339 = vunpack.c.h.b16 %v578
        %v1340 = vpack.c.b16 %v1280, %v1276
        %v1341 = vpack.c.b16 %v1281, %v1277
        %v1342 = vpack.c.b16 %v1282, %v1278
        %v1343 = vpack.c.b16 %v1283, %v1279
        %v1344 = vpack.c.b16 %v1288, %v1284
        %v1345 = vpack.c.b16 %v1289, %v1285
        %v1346 = vpack.c.b16 %v1290, %v1286
        %v1347 = vpack.c.b16 %v1291, %v1287
        %v1348 = vpack.c.b16 %v1296, %v1292
        %v1349 = vpack.c.b16 %v1297, %v1293
        %v1350 = vpack.c.b16 %v1298, %v1294
        %v1351 = vpack.c.b16 %v1299, %v1295
        %v1352 = vpack.c.b16 %v1304, %v1300
        %v1353 = vpack.c.b16 %v1305, %v1301
        %v1354 = vpack.c.b16 %v1306, %v1302
        %v1355 = vpack.c.b16 %v1307, %v1303
        %v1356 = vpack.c.b16 %v1312, %v1308
        %v1357 = vpack.c.b16 %v1313, %v1309
        %v1358 = vpack.c.b16 %v1314, %v1310
        %v1359 = vpack.c.b16 %v1315, %v1311
        %v1360 = vpack.c.b16 %v1320, %v1316
        %v1361 = vpack.c.b16 %v1321, %v1317
        %v1362 = vpack.c.b16 %v1322, %v1318
        %v1363 = vpack.c.b16 %v1323, %v1319
        %v1364 = vpack.c.b16 %v1328, %v1324
        %v1365 = vpack.c.b16 %v1329, %v1325
        %v1366 = vpack.c.b16 %v1330, %v1326
        %v1367 = vpack.c.b16 %v1331, %v1327
        %v1368 = vpack.c.b16 %v1336, %v1332
        %v1369 = vpack.c.b16 %v1337, %v1333
        %v1370 = vpack.c.b16 %v1338, %v1334
        %v1371 = vpack.c.b16 %v1339, %v1335
        %1404 = vmatprep.subr.bf16.mxu0 %v1341
        %1405 = vmatpush1.bf16.msra.mxu0 %v1340
        %1406 = vmatprep.subr.bf16.mxu0 %v1345
        %1407 = vmatpush1.bf16.msra.mxu0 %v1344
        %1408 = vmatprep.subr.bf16.mxu0 %v1349
        %1409 = vmatpush1.bf16.msra.mxu0 %v1348
        %1410 = vmatprep.subr.bf16.mxu0 %v1353
        %1411 = vmatpush1.bf16.msra.mxu0 %v1352
        %1412 = vmatprep.subr.bf16.mxu0 %v1357
        %1413 = vmatpush1.bf16.msra.mxu0 %v1356
        %1414 = vmatprep.subr.bf16.mxu0 %v1361
        %1415 = vmatpush1.bf16.msra.mxu0 %v1360
        %1416 = vmatprep.subr.bf16.mxu0 %v1365
        %1417 = vmatpush1.bf16.msra.mxu0 %v1364
        %1418 = vmatprep.subr.bf16.mxu0 %v1369
        %1419 = vmatpush1.bf16.msra.mxu0 %v1368
        %1420 = vmatprep.subr.bf16.mxu0 0
        %1421 = vmatpush1.bf16.msra.mxu0 0
        %1422 = vmatprep.subr.bf16.mxu0 0
        %1423 = vmatpush1.bf16.msra.mxu0 0
        %1424 = vmatprep.subr.bf16.mxu0 0
        %1425 = vmatpush1.bf16.msra.mxu0 0
        %1426 = vmatprep.subr.bf16.mxu0 0
        %1427 = vmatpush1.bf16.msra.mxu0 0
        %1428 = vmatprep.subr.bf16.mxu0 0
        %1429 = vmatpush1.bf16.msra.mxu0 0
        %1430 = vmatprep.subr.bf16.mxu0 0
        %1431 = vmatpush1.bf16.msra.mxu0 0
        %1432 = vmatprep.subr.bf16.mxu0 0
        %1433 = vmatpush1.bf16.msra.mxu0 0
        %1434 = vmatprep.subr.bf16.mxu0 0
        %1435 = vmatpush1.bf16.msra.mxu0 0
        %1436 = vmatprep.mubr.bf16.mxu0 0
        %1437 = vmatmul.mubr.bf16.gmra.mrb[0].mxu0 %v1222
        %v1438 = vpop.f32.mrb[0].mxu0
        %v1439 = vadd.f32 %v1227, %v1438
        %v1440 = vpop.f32.mrb[0].mxu0
        %v1441 = vadd.f32 %v1231, %v1440
        %v1442 = vpop.f32.mrb[0].mxu0
        %v1443 = vpop.f32.mrb[0].mxu0
        %1444 = vdwg.mxu0
        %1445 = vmatprep.subr.bf16.mxu0 %v1343
        %1446 = vmatpush1.bf16.msra.mxu0 %v1342
        %1447 = vmatprep.subr.bf16.mxu0 %v1347
        %1448 = vmatpush1.bf16.msra.mxu0 %v1346
        %1449 = vmatprep.subr.bf16.mxu0 %v1351
        %1450 = vmatpush1.bf16.msra.mxu0 %v1350
        %1451 = vmatprep.subr.bf16.mxu0 %v1355
        %1452 = vmatpush1.bf16.msra.mxu0 %v1354
        %1453 = vmatprep.subr.bf16.mxu0 %v1359
        %1454 = vmatpush1.bf16.msra.mxu0 %v1358
        %1455 = vmatprep.subr.bf16.mxu0 %v1363
        %1456 = vmatpush1.bf16.msra.mxu0 %v1362
        %1457 = vmatprep.subr.bf16.mxu0 %v1367
        %1458 = vmatpush1.bf16.msra.mxu0 %v1366
        %1459 = vmatprep.subr.bf16.mxu0 %v1371
        %1460 = vmatpush1.bf16.msra.mxu0 %v1370
        %1461 = vmatprep.subr.bf16.mxu0 0
        %1462 = vmatpush1.bf16.msra.mxu0 0
        %1463 = vmatprep.subr.bf16.mxu0 0
        %1464 = vmatpush1.bf16.msra.mxu0 0
        %1465 = vmatprep.subr.bf16.mxu0 0
        %1466 = vmatpush1.bf16.msra.mxu0 0
        %1467 = vmatprep.subr.bf16.mxu0 0
        %1468 = vmatpush1.bf16.msra.mxu0 0
        %1469 = vmatprep.subr.bf16.mxu0 0
        %1470 = vmatpush1.bf16.msra.mxu0 0
        %1471 = vmatprep.subr.bf16.mxu0 0
        %1472 = vmatpush1.bf16.msra.mxu0 0
        %1473 = vmatprep.subr.bf16.mxu0 0
        %1474 = vmatpush1.bf16.msra.mxu0 0
        %1475 = vmatprep.subr.bf16.mxu0 0
        %1476 = vmatpush1.bf16.msra.mxu0 0
        %1477 = vmatprep.mubr.bf16.mxu0 0
        %1478 = vmatmul.mubr.bf16.gmra.mrb[0].mxu0 %v1222
        %v1479 = vpop.f32.mrb[0].mxu0
        %v1480 = vadd.f32 %v1235, %v1479
        %v1481 = vpop.f32.mrb[0].mxu0
        %v1482 = vadd.f32 %v1239, %v1481
        %v1483 = vpop.f32.mrb[0].mxu0
        %v1484 = vpop.f32.mrb[0].mxu0
        %1485 = vdwg.mxu0
        %v1486 = vmul.f32 %v1439, %v1439
        %v1487 = vmul.f32 %v1441, %v1441
        %v1488 = vmul.f32 %v1480, %v1480
        %v1489 = vmul.f32 %v1482, %v1482
        %v1490 = vmul.f32 %v1439, %v1486
        %v1491 = vmul.f32 %v1441, %v1487
        %v1492 = vmul.f32 %v1480, %v1488
        %v1493 = vmul.f32 %v1482, %v1489
        %v1494 = vmul.f32 %v1490, 0.044715
        %v1495 = vmul.f32 %v1491, 0.044715
        %v1496 = vmul.f32 %v1492, 0.044715
        %v1497 = vmul.f32 %v1493, 0.044715
        %v1498 = vadd.f32 %v1439, %v1494
        %v1499 = vadd.f32 %v1441, %v1495
        %v1500 = vadd.f32 %v1480, %v1496
        %v1501 = vadd.f32 %v1482, %v1497
        %v1502 = vmul.f32 %v1498, 0.7978846
        %v1503 = vmul.f32 %v1499, 0.7978846
        %v1504 = vmul.f32 %v1500, 0.7978846
        %v1505 = vmul.f32 %v1501, 0.7978846
        %v1506 = vtanh.pop %v1502
        %v1507 = vtanh.pop %v1503
        %v1508 = vtanh.pop %v1504
        %v1509 = vtanh.pop %v1505
        %v1510 = vadd.f32 %v1506, 1.0
        %v1511 = vadd.f32 %v1507, 1.0
        %v1512 = vadd.f32 %v1508, 1.0
        %v1513 = vadd.f32 %v1509, 1.0
        %v1514 = vmul.f32 %v1510, 0.5
        %v1515 = vmul.f32 %v1511, 0.5
        %v1516 = vmul.f32 %v1512, 0.5
        %v1517 = vmul.f32 %v1513, 0.5
        %v1518 = vmul.f32 %v1439, %v1514
        %v1519 = vmul.f32 %v1441, %v1515
        %v1520 = vmul.f32 %v1480, %v1516
        %v1521 = vmul.f32 %v1482, %v1517
        %v1522 = vpack.c.bf16 %v1518, %v1518
        %v1523 = vpack.c.bf16 %v1519, %v1519
        %v1524 = vpack.c.bf16 %v1520, %v1520
        %v1525 = vpack.c.bf16 %v1521, %v1521
        %v1527 = vlaneseq
        %v1528 = vshrl.u32 %v1527, 7
        %v1529 = vsub.s32 0, %v1528
        %v1530 = vrot.slane %v644, %v1529
        %v1596 = vunpack.c.l.b16 %v580
        %v1597 = vunpack.c.l.b16 %v581
        %v1598 = vunpack.c.l.b16 %v582
        %v1599 = vunpack.c.l.b16 %v583
        %v1600 = vunpack.c.l.b16 %v584
        %v1601 = vunpack.c.l.b16 %v585
        %v1602 = vunpack.c.l.b16 %v586
        %v1603 = vunpack.c.l.b16 %v587
        %v1604 = vunpack.c.l.b16 %v588
        %v1605 = vunpack.c.l.b16 %v589
        %v1606 = vunpack.c.l.b16 %v590
        %v1607 = vunpack.c.l.b16 %v591
        %v1608 = vunpack.c.l.b16 %v592
        %v1609 = vunpack.c.l.b16 %v593
        %v1610 = vunpack.c.l.b16 %v594
        %v1611 = vunpack.c.l.b16 %v595
        %v1612 = vunpack.c.l.b16 %v596
        %v1613 = vunpack.c.l.b16 %v597
        %v1614 = vunpack.c.l.b16 %v598
        %v1615 = vunpack.c.l.b16 %v599
        %v1616 = vunpack.c.l.b16 %v600
        %v1617 = vunpack.c.l.b16 %v601
        %v1618 = vunpack.c.l.b16 %v602
        %v1619 = vunpack.c.l.b16 %v603
        %v1620 = vunpack.c.l.b16 %v604
        %v1621 = vunpack.c.l.b16 %v605
        %v1622 = vunpack.c.l.b16 %v606
        %v1623 = vunpack.c.l.b16 %v607
        %v1624 = vunpack.c.l.b16 %v608
        %v1625 = vunpack.c.l.b16 %v609
        %v1626 = vunpack.c.l.b16 %v610
        %v1627 = vunpack.c.l.b16 %v611
        %v1628 = vunpack.c.l.b16 %v612
        %v1629 = vunpack.c.l.b16 %v613
        %v1630 = vunpack.c.l.b16 %v614
        %v1631 = vunpack.c.l.b16 %v615
        %v1632 = vunpack.c.l.b16 %v616
        %v1633 = vunpack.c.l.b16 %v617
        %v1634 = vunpack.c.l.b16 %v618
        %v1635 = vunpack.c.l.b16 %v619
        %v1636 = vunpack.c.l.b16 %v620
        %v1637 = vunpack.c.l.b16 %v621
        %v1638 = vunpack.c.l.b16 %v622
        %v1639 = vunpack.c.l.b16 %v623
        %v1640 = vunpack.c.l.b16 %v624
        %v1641 = vunpack.c.l.b16 %v625
        %v1642 = vunpack.c.l.b16 %v626
        %v1643 = vunpack.c.l.b16 %v627
        %v1644 = vunpack.c.l.b16 %v628
        %v1645 = vunpack.c.l.b16 %v629
        %v1646 = vunpack.c.l.b16 %v630
        %v1647 = vunpack.c.l.b16 %v631
        %v1648 = vunpack.c.l.b16 %v632
        %v1649 = vunpack.c.l.b16 %v633
        %v1650 = vunpack.c.l.b16 %v634
        %v1651 = vunpack.c.l.b16 %v635
        %v1652 = vunpack.c.l.b16 %v636
        %v1653 = vunpack.c.l.b16 %v637
        %v1654 = vunpack.c.l.b16 %v638
        %v1655 = vunpack.c.l.b16 %v639
        %v1656 = vunpack.c.l.b16 %v640
        %v1657 = vunpack.c.l.b16 %v641
        %v1658 = vunpack.c.l.b16 %v642
        %v1659 = vunpack.c.l.b16 %v643
        %v1660 = vpack.c.b16 %v1597, %v1596
        %v1661 = vpack.c.b16 %v1599, %v1598
        %v1662 = vpack.c.b16 %v1601, %v1600
        %v1663 = vpack.c.b16 %v1603, %v1602
        %v1664 = vpack.c.b16 %v1605, %v1604
        %v1665 = vpack.c.b16 %v1607, %v1606
        %v1666 = vpack.c.b16 %v1609, %v1608
        %v1667 = vpack.c.b16 %v1611, %v1610
        %v1668 = vpack.c.b16 %v1613, %v1612
        %v1669 = vpack.c.b16 %v1615, %v1614
        %v1670 = vpack.c.b16 %v1617, %v1616
        %v1671 = vpack.c.b16 %v1619, %v1618
        %v1672 = vpack.c.b16 %v1621, %v1620
        %v1673 = vpack.c.b16 %v1623, %v1622
        %v1674 = vpack.c.b16 %v1625, %v1624
        %v1675 = vpack.c.b16 %v1627, %v1626
        %v1676 = vpack.c.b16 %v1629, %v1628
        %v1677 = vpack.c.b16 %v1631, %v1630
        %v1678 = vpack.c.b16 %v1633, %v1632
        %v1679 = vpack.c.b16 %v1635, %v1634
        %v1680 = vpack.c.b16 %v1637, %v1636
        %v1681 = vpack.c.b16 %v1639, %v1638
        %v1682 = vpack.c.b16 %v1641, %v1640
        %v1683 = vpack.c.b16 %v1643, %v1642
        %v1684 = vpack.c.b16 %v1645, %v1644
        %v1685 = vpack.c.b16 %v1647, %v1646
        %v1686 = vpack.c.b16 %v1649, %v1648
        %v1687 = vpack.c.b16 %v1651, %v1650
        %v1688 = vpack.c.b16 %v1653, %v1652
        %v1689 = vpack.c.b16 %v1655, %v1654
        %v1690 = vpack.c.b16 %v1657, %v1656
        %v1691 = vpack.c.b16 %v1659, %v1658
        %1724 = vmatprep.subr.bf16.mxu0 0
        %1725 = vmatpush1.bf16.msra.mxu0 %v1660
        %1726 = vmatprep.subr.bf16.mxu0 0
        %1727 = vmatpush1.bf16.msra.mxu0 %v1661
        %1728 = vmatprep.subr.bf16.mxu0 0
        %1729 = vmatpush1.bf16.msra.mxu0 %v1662
        %1730 = vmatprep.subr.bf16.mxu0 0
        %1731 = vmatpush1.bf16.msra.mxu0 %v1663
        %1732 = vmatprep.subr.bf16.mxu0 0
        %1733 = vmatpush1.bf16.msra.mxu0 %v1664
        %1734 = vmatprep.subr.bf16.mxu0 0
        %1735 = vmatpush1.bf16.msra.mxu0 %v1665
        %1736 = vmatprep.subr.bf16.mxu0 0
        %1737 = vmatpush1.bf16.msra.mxu0 %v1666
        %1738 = vmatprep.subr.bf16.mxu0 0
        %1739 = vmatpush1.bf16.msra.mxu0 %v1667
        %1740 = vmatprep.subr.bf16.mxu0 0
        %1741 = vmatpush1.bf16.msra.mxu0 %v1668
        %1742 = vmatprep.subr.bf16.mxu0 0
        %1743 = vmatpush1.bf16.msra.mxu0 %v1669
        %1744 = vmatprep.subr.bf16.mxu0 0
        %1745 = vmatpush1.bf16.msra.mxu0 %v1670
        %1746 = vmatprep.subr.bf16.mxu0 0
        %1747 = vmatpush1.bf16.msra.mxu0 %v1671
        %1748 = vmatprep.subr.bf16.mxu0 0
        %1749 = vmatpush1.bf16.msra.mxu0 %v1672
        %1750 = vmatprep.subr.bf16.mxu0 0
        %1751 = vmatpush1.bf16.msra.mxu0 %v1673
        %1752 = vmatprep.subr.bf16.mxu0 0
        %1753 = vmatpush1.bf16.msra.mxu0 %v1674
        %1754 = vmatprep.subr.bf16.mxu0 0
        %1755 = vmatpush1.bf16.msra.mxu0 %v1675
        %1756 = vmatprep.mubr.bf16.mxu0 %v1523
        %1757 = vmatmul.mubr.bf16.gmra.mrb[0].mxu0 %v1522
        %v1758 = vpop.f32.mrb[0].mxu0
        %v1759 = vadd.f32 %v1530, %v1758
        %v1760 = vpop.f32.mrb[0].mxu0
        %v1761 = vpop.f32.mrb[0].mxu0
        %v1762 = vpop.f32.mrb[0].mxu0
        %1763 = vdwg.mxu0
        %1764 = vmatprep.subr.bf16.mxu0 0
        %1765 = vmatpush1.bf16.msra.mxu0 %v1676
        %1766 = vmatprep.subr.bf16.mxu0 0
        %1767 = vmatpush1.bf16.msra.mxu0 %v1677
        %1768 = vmatprep.subr.bf16.mxu0 0
        %1769 = vmatpush1.bf16.msra.mxu0 %v1678
        %1770 = vmatprep.subr.bf16.mxu0 0
        %1771 = vmatpush1.bf16.msra.mxu0 %v1679
        %1772 = vmatprep.subr.bf16.mxu0 0
        %1773 = vmatpush1.bf16.msra.mxu0 %v1680
        %1774 = vmatprep.subr.bf16.mxu0 0
        %1775 = vmatpush1.bf16.msra.mxu0 %v1681
        %1776 = vmatprep.subr.bf16.mxu0 0
        %1777 = vmatpush1.bf16.msra.mxu0 %v1682
        %1778 = vmatprep.subr.bf16.mxu0 0
        %1779 = vmatpush1.bf16.msra.mxu0 %v1683
        %1780 = vmatprep.subr.bf16.mxu0 0
        %1781 = vmatpush1.bf16.msra.mxu0 %v1684
        %1782 = vmatprep.subr.bf16.mxu0 0
        %1783 = vmatpush1.bf16.msra.mxu0 %v1685
        %1784 = vmatprep.subr.bf16.mxu0 0
        %1785 = vmatpush1.bf16.msra.mxu0 %v1686
        %1786 = vmatprep.subr.bf16.mxu0 0
        %1787 = vmatpush1.bf16.msra.mxu0 %v1687
        %1788 = vmatprep.subr.bf16.mxu0 0
        %1789 = vmatpush1.bf16.msra.mxu0 %v1688
        %1790 = vmatprep.subr.bf16.mxu0 0
        %1791 = vmatpush1.bf16.msra.mxu0 %v1689
        %1792 = vmatprep.subr.bf16.mxu0 0
        %1793 = vmatpush1.bf16.msra.mxu0 %v1690
        %1794 = vmatprep.subr.bf16.mxu0 0
        %1795 = vmatpush1.bf16.msra.mxu0 %v1691
        %1796 = vmatprep.mubr.bf16.mxu0 %v1525
        %1797 = vmatmul.mubr.bf16.gmra.mrb[0].mxu0 %v1524
        %v1798 = vpop.f32.mrb[0].mxu0
        %v1799 = vadd.f32 %v1759, %v1798
        %v1800 = vpop.f32.mrb[0].mxu0
        %v1801 = vpop.f32.mrb[0].mxu0
        %v1802 = vpop.f32.mrb[0].mxu0
        %1803 = vdwg.mxu0
        %v1804 = vadd.f32 %v1799, %v1221
        %1805 = vadd.xlane.f32.xlu0 %v1804
        %v1806 = vpop.xlane.xlu0 %1805
        %v1807 = vmul.f32 %v1806, %v1198
        %v1808 = vsub.f32 %v1804, %v1807
        %v1809 = vmul.f32 %v1808, %v1808
        %1810 = vadd.xlane.f32.xlu0 %v1809
        %v1811 = vpop.xlane.xlu0 %1810
        %v1812 = vmul.f32 %v1811, %v1198
        %v1813 = vadd.f32 %v1812, 1e-12
        %v1814 = vrsqrt.pop %v1813
        %v1815 = vmul.f32 %v1808, %v1814
        %v1817 = vlaneseq
        %v1818 = vshrl.u32 %v1817, 7
        %v1819 = vsub.s32 0, %v1818
        %v1820 = vrot.slane %v645, %v1819
        %v1822 = vmul.f32 %v1815, %v1820
        %v1824 = vlaneseq
        %v1825 = vshrl.u32 %v1824, 7
        %v1826 = vsub.s32 0, %v1825
        %v1827 = vrot.slane %v646, %v1826
        %v1829 = vadd.f32 %v1822, %v1827
        %v1830 = vpack.c.bf16 %v1829, %v1829
        %1831 = vst [vmem:[%s491] sm:$0xf] %v1830
        %p1832 = scmp.lt.s32.totalorder %s26, 1
        %s1833 = scalar_select %p1832, %s26, 1
        %s1834 = smul.addr %s1833, 4
        %s1835 = scalar_lea.vmem %s14, %s1834
        // Predicated region
        $region81: #{bert_class_forward.4} parent=75 // pred_check
          %p1836 = pneg %p348
        $region82: #{bert_class_forward.4} parent=75 // pred_check_branch
          %1838 = sbr.rel (%p1836) target = $region84
        $region83: #{bert_class_forward.4} parent=75 // pred_region
          _
        $region84: #{bert_class_forward.4} parent=75 // pred_fallthru
          _
      $region76: #{bert_class_forward.4} parent=5 // pred_fallthru
        _
      %p1839 = scmp.le.s32.totalorder 2, %s21
      // Predicated region
      $region85: #{bert_class_forward.4} parent=5 // pred_check
        %p1840 = pneg %p1839
      $region86: #{bert_class_forward.4} parent=5 // pred_check_branch
        %1842 = sbr.rel (%p1840) target = $region88
      $region87: #{bert_class_forward.4} parent=5 // pred_region
        %s1843 = ssub.s32 %s21, 2
        // Predicated region
        $region89: #{bert_class_forward.4} parent=87 // pred_check
          %p1844 = pneg %p354
        $region90: #{bert_class_forward.4} parent=87 // pred_check_branch
          %1846 = sbr.rel (%p1844) target = $region92
        $region91: #{bert_class_forward.4} parent=87 // pred_region
          %p1847 = scmp.lt.s32.totalorder %s27, 1
          %s1848 = scalar_select %p1847, %s27, 1
          %s1849 = smul.addr %s1848, 4
          %s1850 = scalar_lea.vmem %s14, %s1849
        $region92: #{bert_class_forward.4} parent=87 // pred_fallthru
          _
      $region88: #{bert_class_forward.4} parent=5 // pred_fallthru
        _
    $region6: #{bert_class_forward.4} parent=1 // loop_footer
      %s25 = sadd.s32 1, %s21
    $region7: #{bert_class_forward.4} parent=1 // loop_footer_branch
      %20 = sbr.rel target = $region3
    $region8: #{bert_class_forward.4} parent=1 // loop_exit
      _
    %1851 = vsyncpa [#allocation3], 1
    %s1852 = scalar_lea.sflag [#allocation3], 1
    %1853 = vsyncpa %s1852, 1

// kernel: bert_class_forward.5
$region0: #{bert_class_forward.5}
  #allocation0 [shape = 'u32[]', space=smem, size = 0x4, offset = 0x4, fixed_abs, tag = 'smem constant byte address 0x4 - core index']
  #allocation1 [shape = 'u32[144,128]{1,0:T(1,128)}', space=vmem, size = 0x12000, scoped, tag = 'internal scratch']
  %s0 = inlined_call_operand.vmem [shape: bf16[2,8,128], index: 0, kind: input, shape index: {}]
  %s1 = inlined_call_operand.vmem [shape: f32[2,1,128], index: 1, kind: input, shape index: {}]
  %s2 = inlined_call_operand.vmem [shape: bf16[128,384], index: 2, kind: input, shape index: {}]
  %s3 = inlined_call_operand.vmem [shape: f32[1,384], index: 3, kind: input, shape index: {}]
  %s4 = inlined_call_operand.vmem [shape: bf16[128,128], index: 4, kind: input, shape index: {}]
  %s5 = inlined_call_operand.vmem [shape: f32[1,128], index: 5, kind: input, shape index: {}]
  %s6 = inlined_call_operand.vmem [shape: f32[1,128], index: 6, kind: input, shape index: {}]
  %s7 = inlined_call_operand.vmem [shape: f32[1,128], index: 7, kind: input, shape index: {}]
  %s8 = inlined_call_operand.vmem [shape: bf16[128,512], index: 8, kind: input, shape index: {}]
  %s9 = inlined_call_operand.vmem [shape: f32[1,512], index: 9, kind: input, shape index: {}]
  %s10 = inlined_call_operand.vmem [shape: bf16[512,128], index: 10, kind: input, shape index: {}]
  %s11 = inlined_call_operand.vmem [shape: f32[1,128], index: 11, kind: input, shape index: {}]
  %s12 = inlined_call_operand.hbm [shape: f32[1,128], index: 12, kind: input, shape index: {}]
  %s13 = inlined_call_operand.hbm [shape: f32[1,128], index: 13, kind: input, shape index: {}]
  %s14 = inlined_call_operand.vmem [shape: bf16[128,128], index: 14, kind: input, shape index: {}]
  %s15 = inlined_call_operand.hbm [shape: f32[1,128], index: 15, kind: input, shape index: {}]
  %s16 = inlined_call_operand.hbm [shape: f32[2,1,128], index: 16, kind: output, shape index: {}]
  %s17 = sld [smem:[#allocation0]]
  $region109: #{bert_class_forward.5} parent=0
    _
  %s19 = ssub.s32 1, %s17
  %s20 = scalar_select 0, %s19, %s17
  $region1: #{bert_class_forward.5} parent=0
    #allocation2 [shape = 'u8[512]{0}', space=vmem, size = 0x400, scoped, tag = 'input window, operand 12, single buffered']
    #allocation3 [shape = 's32[2]{0}', space=sflag, size = 0x8, scoped, tag = 'scoped memory for bert_class_forward.5']
    #allocation4 [shape = 's32[2]{0}', space=sflag, size = 0x8, scoped, tag = 'scoped memory for bert_class_forward.5']
    #allocation5 [shape = 'u8[512]{0}', space=vmem, size = 0x400, scoped, tag = 'input window, operand 13, single buffered']
    #allocation6 [shape = 's32[1]{0}', space=sflag, size = 0x4, scoped, tag = 'scoped memory for bert_class_forward.5']
    #allocation7 [shape = 'u8[512]{0}', space=vmem, size = 0x400, scoped, tag = 'input window, operand 15, single buffered']
    #allocation8 [shape = 'u8[1024]{0}', space=vmem, size = 0x400, scoped, tag = 'output window, operand 0']
    %21 = vsyncpa [#allocation3], 0
    %22 = vsyncpa [#allocation6], 0
    %23 = vsyncpa [#allocation4], 0
    %s24 = scalar_lea.sflag [#allocation4], 1
    %25 = vsyncpa %s24, 0
    loop: start=0, step=1, limit=4
    $region2: #{bert_class_forward.5} parent=1 // loop_pre_header
      _
    $region3: #{bert_class_forward.5} parent=1 // loop_header
      %s27 = sphi 0, %s31
      %p28 = scmp.ge.s32.totalorder %s27, 4
      %s37 = sphi 0, %s39
      %s40 = sphi 0, %s37
      %s41 = sphi 0, %s40
      %s57 = sphi 0, %s41
      %s63 = sphi 0, %s65
      %s66 = sphi 0, %s63
      %s67 = sphi 0, %s66
      %s83 = sphi 0, %s67
      %s87 = sphi 0, %s87
      %s89 = sphi 0, %s87
      %s90 = sphi 0, %s89
      %s104 = sphi 0, %s90
      %s108 = sphi 0, %s108
      %s110 = sphi 0, %s108
      %s111 = sphi 0, %s110
      %s125 = sphi 0, %s111
      %s129 = sphi 0, %s129
      %s131 = sphi 0, %s129
      %s132 = sphi 0, %s131
      %s146 = sphi 0, %s132
      %s150 = sphi 0, %s150
      %s152 = sphi 0, %s150
      %s153 = sphi 0, %s152
      %s167 = sphi 0, %s153
      %s171 = sphi 0, %s171
      %s173 = sphi 0, %s171
      %s174 = sphi 0, %s173
      %s188 = sphi 0, %s174
      %s192 = sphi 0, %s192
      %s194 = sphi 0, %s192
      %s195 = sphi 0, %s194
      %s209 = sphi 0, %s195
      %s213 = sphi 0, %s213
      %s215 = sphi 0, %s213
      %s216 = sphi 0, %s215
      %s230 = sphi 0, %s216
      %s234 = sphi 0, %s234
      %s236 = sphi 0, %s234
      %s237 = sphi 0, %s236
      %s251 = sphi 0, %s237
      %s255 = sphi 0, %s255
      %s257 = sphi 0, %s255
      %s258 = sphi 0, %s257
      %s272 = sphi 0, %s258
      %s276 = sphi 0, %s276
      %s278 = sphi 0, %s276
      %s279 = sphi 0, %s278
      %s293 = sphi 0, %s279
      %s297 = sphi 0, %s297
      %s299 = sphi 0, %s297
      %s300 = sphi 0, %s299
      %s314 = sphi 0, %s300
      %s318 = sphi 0, %s318
      %s320 = sphi 0, %s318
      %s321 = sphi 0, %s320
      %s335 = sphi 0, %s321
      %s339 = sphi 0, %s339
      %s341 = sphi 0, %s339
      %s342 = sphi 0, %s341
      %s356 = sphi 0, %s342
      %s360 = sphi 0, %s360
      %s362 = sphi 0, %s360
      %s363 = sphi 0, %s362
      %s377 = sphi 0, %s363
      %s383 = sphi 0, %s385
      %s386 = sphi 0, %s383
      %s387 = sphi 0, %s386
      %s403 = sphi 0, %s387
    $region4: #{bert_class_forward.5} parent=1 // loop_header_branch
      %30 = sbr.rel (%p28) target = $region8
    $region5: #{bert_class_forward.5} parent=1 // loop_body
      %s32 = ssub.s32 %s27, 1
      %s33 = ssub.s32 %s27, 2
      %s34 = sadd.s32 %s27, 1
      %s35 = ssub.s32 %s27, %s34
      %p36 = scmp.eq.s32.totalorder %s35, 0
      %s38 = sadd.s32 %s37, 1
      %s39 = scalar_select %p36, %s37, %s38
      %p42 = pneg %p36
      %p43 = scmp.eq.s32.totalorder %s27, 1
      %p44 = por %p42, %p43
      %p45 = scmp.ne.s32.totalorder %s37, %s40
      %p46 = scmp.eq.s32.totalorder %s27, 0
      %p47 = por %p45, %p46
      %p48 = scmp.ne.s32.totalorder %s37, %s40
      %p49 = scmp.eq.s32.totalorder %s32, 1
      %p50 = por %p48, %p49
      %p51 = scmp.ne.s32.totalorder %s40, %s41
      %p52 = scmp.eq.s32.totalorder %s32, 0
      %p53 = por %p51, %p52
      %p54 = scmp.ne.s32.totalorder %s40, %s41
      %p55 = scmp.eq.s32.totalorder %s33, 1
      %p56 = por %p54, %p55
      %p58 = scmp.ne.s32.totalorder %s41, %s57
      %p59 = scmp.eq.s32.totalorder %s33, 0
      %p60 = por %p58, %p59
      %s61 = ssub.s32 %s27, %s34
      %p62 = scmp.eq.s32.totalorder %s61, 0
      %s64 = sadd.s32 %s63, 1
      %s65 = scalar_select %p62, %s63, %s64
      %p68 = pneg %p62
      %p69 = scmp.eq.s32.totalorder %s27, 1
      %p70 = por %p68, %p69
      %p71 = scmp.ne.s32.totalorder %s63, %s66
      %p72 = scmp.eq.s32.totalorder %s27, 0
      %p73 = por %p71, %p72
      %p74 = scmp.ne.s32.totalorder %s63, %s66
      %p75 = scmp.eq.s32.totalorder %s32, 1
      %p76 = por %p74, %p75
      %p77 = scmp.ne.s32.totalorder %s66, %s67
      %p78 = scmp.eq.s32.totalorder %s32, 0
      %p79 = por %p77, %p78
      %p80 = scmp.ne.s32.totalorder %s66, %s67
      %p81 = scmp.eq.s32.totalorder %s33, 1
      %p82 = por %p80, %p81
      %p84 = scmp.ne.s32.totalorder %s67, %s83
      %p85 = scmp.eq.s32.totalorder %s33, 0
      %p86 = por %p84, %p85
      %s88 = sadd.s32 %s87, 1
      %p91 = scmp.eq.s32.totalorder %s27, 1
      %p92 = scmp.ne.s32.totalorder %s87, %s89
      %p93 = scmp.eq.s32.totalorder %s27, 0
      %p94 = por %p92, %p93
      %p95 = scmp.ne.s32.totalorder %s87, %s89
      %p96 = scmp.eq.s32.totalorder %s32, 1
      %p97 = por %p95, %p96
      %p98 = scmp.ne.s32.totalorder %s89, %s90
      %p99 = scmp.eq.s32.totalorder %s32, 0
      %p100 = por %p98, %p99
      %p101 = scmp.ne.s32.totalorder %s89, %s90
      %p102 = scmp.eq.s32.totalorder %s33, 1
      %p103 = por %p101, %p102
      %p105 = scmp.ne.s32.totalorder %s90, %s104
      %p106 = scmp.eq.s32.totalorder %s33, 0
      %p107 = por %p105, %p106
      %s109 = sadd.s32 %s108, 1
      %p112 = scmp.eq.s32.totalorder %s27, 1
      %p113 = scmp.ne.s32.totalorder %s108, %s110
      %p114 = scmp.eq.s32.totalorder %s27, 0
      %p115 = por %p113, %p114
      %p116 = scmp.ne.s32.totalorder %s108, %s110
      %p117 = scmp.eq.s32.totalorder %s32, 1
      %p118 = por %p116, %p117
      %p119 = scmp.ne.s32.totalorder %s110, %s111
      %p120 = scmp.eq.s32.totalorder %s32, 0
      %p121 = por %p119, %p120
      %p122 = scmp.ne.s32.totalorder %s110, %s111
      %p123 = scmp.eq.s32.totalorder %s33, 1
      %p124 = por %p122, %p123
      %p126 = scmp.ne.s32.totalorder %s111, %s125
      %p127 = scmp.eq.s32.totalorder %s33, 0
      %p128 = por %p126, %p127
      %s130 = sadd.s32 %s129, 1
      %p133 = scmp.eq.s32.totalorder %s27, 1
      %p134 = scmp.ne.s32.totalorder %s129, %s131
      %p135 = scmp.eq.s32.totalorder %s27, 0
      %p136 = por %p134, %p135
      %p137 = scmp.ne.s32.totalorder %s129, %s131
      %p138 = scmp.eq.s32.totalorder %s32, 1
      %p139 = por %p137, %p138
      %p140 = scmp.ne.s32.totalorder %s131, %s132
      %p141 = scmp.eq.s32.totalorder %s32, 0
      %p142 = por %p140, %p141
      %p143 = scmp.ne.s32.totalorder %s131, %s132
      %p144 = scmp.eq.s32.totalorder %s33, 1
      %p145 = por %p143, %p144
      %p147 = scmp.ne.s32.totalorder %s132, %s146
      %p148 = scmp.eq.s32.totalorder %s33, 0
      %p149 = por %p147, %p148
      %s151 = sadd.s32 %s150, 1
      %p154 = scmp.eq.s32.totalorder %s27, 1
      %p155 = scmp.ne.s32.totalorder %s150, %s152
      %p156 = scmp.eq.s32.totalorder %s27, 0
      %p157 = por %p155, %p156
      %p158 = scmp.ne.s32.totalorder %s150, %s152
      %p159 = scmp.eq.s32.totalorder %s32, 1
      %p160 = por %p158, %p159
      %p161 = scmp.ne.s32.totalorder %s152, %s153
      %p162 = scmp.eq.s32.totalorder %s32, 0
      %p163 = por %p161, %p162
      %p164 = scmp.ne.s32.totalorder %s152, %s153
      %p165 = scmp.eq.s32.totalorder %s33, 1
      %p166 = por %p164, %p165
      %p168 = scmp.ne.s32.totalorder %s153, %s167
      %p169 = scmp.eq.s32.totalorder %s33, 0
      %p170 = por %p168, %p169
      %s172 = sadd.s32 %s171, 1
      %p175 = scmp.eq.s32.totalorder %s27, 1
      %p176 = scmp.ne.s32.totalorder %s171, %s173
      %p177 = scmp.eq.s32.totalorder %s27, 0
      %p178 = por %p176, %p177
      %p179 = scmp.ne.s32.totalorder %s171, %s173
      %p180 = scmp.eq.s32.totalorder %s32, 1
      %p181 = por %p179, %p180
      %p182 = scmp.ne.s32.totalorder %s173, %s174
      %p183 = scmp.eq.s32.totalorder %s32, 0
      %p184 = por %p182, %p183
      %p185 = scmp.ne.s32.totalorder %s173, %s174
      %p186 = scmp.eq.s32.totalorder %s33, 1
      %p187 = por %p185, %p186
      %p189 = scmp.ne.s32.totalorder %s174, %s188
      %p190 = scmp.eq.s32.totalorder %s33, 0
      %p191 = por %p189, %p190
      %s193 = sadd.s32 %s192, 1
      %p196 = scmp.eq.s32.totalorder %s27, 1
      %p197 = scmp.ne.s32.totalorder %s192, %s194
      %p198 = scmp.eq.s32.totalorder %s27, 0
      %p199 = por %p197, %p198
      %p200 = scmp.ne.s32.totalorder %s192, %s194
      %p201 = scmp.eq.s32.totalorder %s32, 1
      %p202 = por %p200, %p201
      %p203 = scmp.ne.s32.totalorder %s194, %s195
      %p204 = scmp.eq.s32.totalorder %s32, 0
      %p205 = por %p203, %p204
      %p206 = scmp.ne.s32.totalorder %s194, %s195
      %p207 = scmp.eq.s32.totalorder %s33, 1
      %p208 = por %p206, %p207
      %p210 = scmp.ne.s32.totalorder %s195, %s209
      %p211 = scmp.eq.s32.totalorder %s33, 0
      %p212 = por %p210, %p211
      %s214 = sadd.s32 %s213, 1
      %p217 = scmp.eq.s32.totalorder %s27, 1
      %p218 = scmp.ne.s32.totalorder %s213, %s215
      %p219 = scmp.eq.s32.totalorder %s27, 0
      %p220 = por %p218, %p219
      %p221 = scmp.ne.s32.totalorder %s213, %s215
      %p222 = scmp.eq.s32.totalorder %s32, 1
      %p223 = por %p221, %p222
      %p224 = scmp.ne.s32.totalorder %s215, %s216
      %p225 = scmp.eq.s32.totalorder %s32, 0
      %p226 = por %p224, %p225
      %p227 = scmp.ne.s32.totalorder %s215, %s216
      %p228 = scmp.eq.s32.totalorder %s33, 1
      %p229 = por %p227, %p228
      %p231 = scmp.ne.s32.totalorder %s216, %s230
      %p232 = scmp.eq.s32.totalorder %s33, 0
      %p233 = por %p231, %p232
      %s235 = sadd.s32 %s234, 1
      %p238 = scmp.eq.s32.totalorder %s27, 1
      %p239 = scmp.ne.s32.totalorder %s234, %s236
      %p240 = scmp.eq.s32.totalorder %s27, 0
      %p241 = por %p239, %p240
      %p242 = scmp.ne.s32.totalorder %s234, %s236
      %p243 = scmp.eq.s32.totalorder %s32, 1
      %p244 = por %p242, %p243
      %p245 = scmp.ne.s32.totalorder %s236, %s237
      %p246 = scmp.eq.s32.totalorder %s32, 0
      %p247 = por %p245, %p246
      %p248 = scmp.ne.s32.totalorder %s236, %s237
      %p249 = scmp.eq.s32.totalorder %s33, 1
      %p250 = por %p248, %p249
      %p252 = scmp.ne.s32.totalorder %s237, %s251
      %p253 = scmp.eq.s32.totalorder %s33, 0
      %p254 = por %p252, %p253
      %s256 = sadd.s32 %s255, 1
      %p259 = scmp.eq.s32.totalorder %s27, 1
      %p260 = scmp.ne.s32.totalorder %s255, %s257
      %p261 = scmp.eq.s32.totalorder %s27, 0
      %p262 = por %p260, %p261
      %p263 = scmp.ne.s32.totalorder %s255, %s257
      %p264 = scmp.eq.s32.totalorder %s32, 1
      %p265 = por %p263, %p264
      %p266 = scmp.ne.s32.totalorder %s257, %s258
      %p267 = scmp.eq.s32.totalorder %s32, 0
      %p268 = por %p266, %p267
      %p269 = scmp.ne.s32.totalorder %s257, %s258
      %p270 = scmp.eq.s32.totalorder %s33, 1
      %p271 = por %p269, %p270
      %p273 = scmp.ne.s32.totalorder %s258, %s272
      %p274 = scmp.eq.s32.totalorder %s33, 0
      %p275 = por %p273, %p274
      %s277 = sadd.s32 %s276, 1
      %p280 = scmp.eq.s32.totalorder %s27, 1
      %p281 = scmp.ne.s32.totalorder %s276, %s278
      %p282 = scmp.eq.s32.totalorder %s27, 0
      %p283 = por %p281, %p282
      %p284 = scmp.ne.s32.totalorder %s276, %s278
      %p285 = scmp.eq.s32.totalorder %s32, 1
      %p286 = por %p284, %p285
      %p287 = scmp.ne.s32.totalorder %s278, %s279
      %p288 = scmp.eq.s32.totalorder %s32, 0
      %p289 = por %p287, %p288
      %p290 = scmp.ne.s32.totalorder %s278, %s279
      %p291 = scmp.eq.s32.totalorder %s33, 1
      %p292 = por %p290, %p291
      %p294 = scmp.ne.s32.totalorder %s279, %s293
      %p295 = scmp.eq.s32.totalorder %s33, 0
      %p296 = por %p294, %p295
      %s298 = sadd.s32 %s297, 1
      %p301 = scmp.eq.s32.totalorder %s27, 1
      %p302 = scmp.ne.s32.totalorder %s297, %s299
      %p303 = scmp.eq.s32.totalorder %s27, 0
      %p304 = por %p302, %p303
      %p305 = scmp.ne.s32.totalorder %s297, %s299
      %p306 = scmp.eq.s32.totalorder %s32, 1
      %p307 = por %p305, %p306
      %p308 = scmp.ne.s32.totalorder %s299, %s300
      %p309 = scmp.eq.s32.totalorder %s32, 0
      %p310 = por %p308, %p309
      %p311 = scmp.ne.s32.totalorder %s299, %s300
      %p312 = scmp.eq.s32.totalorder %s33, 1
      %p313 = por %p311, %p312
      %p315 = scmp.ne.s32.totalorder %s300, %s314
      %p316 = scmp.eq.s32.totalorder %s33, 0
      %p317 = por %p315, %p316
      %s319 = sadd.s32 %s318, 1
      %p322 = scmp.eq.s32.totalorder %s27, 1
      %p323 = scmp.ne.s32.totalorder %s318, %s320
      %p324 = scmp.eq.s32.totalorder %s27, 0
      %p325 = por %p323, %p324
      %p326 = scmp.ne.s32.totalorder %s318, %s320
      %p327 = scmp.eq.s32.totalorder %s32, 1
      %p328 = por %p326, %p327
      %p329 = scmp.ne.s32.totalorder %s320, %s321
      %p330 = scmp.eq.s32.totalorder %s32, 0
      %p331 = por %p329, %p330
      %p332 = scmp.ne.s32.totalorder %s320, %s321
      %p333 = scmp.eq.s32.totalorder %s33, 1
      %p334 = por %p332, %p333
      %p336 = scmp.ne.s32.totalorder %s321, %s335
      %p337 = scmp.eq.s32.totalorder %s33, 0
      %p338 = por %p336, %p337
      %s340 = sadd.s32 %s339, 1
      %p343 = scmp.eq.s32.totalorder %s27, 1
      %p344 = scmp.ne.s32.totalorder %s339, %s341
      %p345 = scmp.eq.s32.totalorder %s27, 0
      %p346 = por %p344, %p345
      %p347 = scmp.ne.s32.totalorder %s339, %s341
      %p348 = scmp.eq.s32.totalorder %s32, 1
      %p349 = por %p347, %p348
      %p350 = scmp.ne.s32.totalorder %s341, %s342
      %p351 = scmp.eq.s32.totalorder %s32, 0
      %p352 = por %p350, %p351
      %p353 = scmp.ne.s32.totalorder %s341, %s342
      %p354 = scmp.eq.s32.totalorder %s33, 1
      %p355 = por %p353, %p354
      %p357 = scmp.ne.s32.totalorder %s342, %s356
      %p358 = scmp.eq.s32.totalorder %s33, 0
      %p359 = por %p357, %p358
      %s361 = sadd.s32 %s360, 1
      %p364 = scmp.eq.s32.totalorder %s27, 1
      %p365 = scmp.ne.s32.totalorder %s360, %s362
      %p366 = scmp.eq.s32.totalorder %s27, 0
      %p367 = por %p365, %p366
      %p368 = scmp.ne.s32.totalorder %s360, %s362
      %p369 = scmp.eq.s32.totalorder %s32, 1
      %p370 = por %p368, %p369
      %p371 = scmp.ne.s32.totalorder %s362, %s363
      %p372 = scmp.eq.s32.totalorder %s32, 0
      %p373 = por %p371, %p372
      %p374 = scmp.ne.s32.totalorder %s362, %s363
      %p375 = scmp.eq.s32.totalorder %s33, 1
      %p376 = por %p374, %p375
      %p378 = scmp.ne.s32.totalorder %s363, %s377
      %p379 = scmp.eq.s32.totalorder %s33, 0
      %p380 = por %p378, %p379
      %s381 = ssub.s32 %s27, %s34
      %p382 = scmp.eq.s32.totalorder %s381, 0
      %s384 = sadd.s32 %s383, 1
      %s385 = scalar_select %p382, %s383, %s384
      %p388 = pneg %p382
      %p389 = scmp.eq.s32.totalorder %s27, 1
      %p390 = por %p388, %p389
      %p391 = scmp.ne.s32.totalorder %s383, %s386
      %p392 = scmp.eq.s32.totalorder %s27, 0
      %p393 = por %p391, %p392
      %p394 = scmp.ne.s32.totalorder %s383, %s386
      %p395 = scmp.eq.s32.totalorder %s32, 1
      %p396 = por %p394, %p395
      %p397 = scmp.ne.s32.totalorder %s386, %s387
      %p398 = scmp.eq.s32.totalorder %s32, 0
      %p399 = por %p397, %p398
      %p400 = scmp.ne.s32.totalorder %s386, %s387
      %p401 = scmp.eq.s32.totalorder %s33, 1
      %p402 = por %p400, %p401
      %p404 = scmp.ne.s32.totalorder %s387, %s403
      %p405 = scmp.eq.s32.totalorder %s33, 0
      %p406 = por %p404, %p405
      %p407 = scmp.le.s32.totalorder 1, %s27
      %p408 = scmp.lt.s32.totalorder %s27, 3
      %p409 = pnand %p407, %p408
      %p410 = pneg %p409
      // Predicated region
      $region9: #{bert_class_forward.5} parent=5 // pred_check
        _
      $region10: #{bert_class_forward.5} parent=5 // pred_check_branch
        %412 = sbr.rel (%p409) target = $region12
      $region11: #{bert_class_forward.5} parent=5 // pred_region
        %s413 = ssub.s32 %s27, 1
        // Predicated region
        $region13: #{bert_class_forward.5} parent=11 // pred_check
          %p414 = pneg %p100
        $region14: #{bert_class_forward.5} parent=11 // pred_check_branch
          %416 = sbr.rel (%p414) target = $region16
        $region15: #{bert_class_forward.5} parent=11 // pred_region
          _
        $region16: #{bert_class_forward.5} parent=11 // pred_fallthru
          _
        // Predicated region
        $region17: #{bert_class_forward.5} parent=11 // pred_check
          %p417 = pneg %p121
        $region18: #{bert_class_forward.5} parent=11 // pred_check_branch
          %419 = sbr.rel (%p417) target = $region20
        $region19: #{bert_class_forward.5} parent=11 // pred_region
          _
        $region20: #{bert_class_forward.5} parent=11 // pred_fallthru
          _
        // Predicated region
        $region21: #{bert_class_forward.5} parent=11 // pred_check
          %p420 = pneg %p142
        $region22: #{bert_class_forward.5} parent=11 // pred_check_branch
          %422 = sbr.rel (%p420) target = $region24
        $region23: #{bert_class_forward.5} parent=11 // pred_region
          _
        $region24: #{bert_class_forward.5} parent=11 // pred_fallthru
          _
        // Predicated region
        $region25: #{bert_class_forward.5} parent=11 // pred_check
          %p423 = pneg %p163
        $region26: #{bert_class_forward.5} parent=11 // pred_check_branch
          %425 = sbr.rel (%p423) target = $region28
        $region27: #{bert_class_forward.5} parent=11 // pred_region
          _
        $region28: #{bert_class_forward.5} parent=11 // pred_fallthru
          _
        // Predicated region
        $region29: #{bert_class_forward.5} parent=11 // pred_check
          %p426 = pneg %p184
        $region30: #{bert_class_forward.5} parent=11 // pred_check_branch
          %428 = sbr.rel (%p426) target = $region32
        $region31: #{bert_class_forward.5} parent=11 // pred_region
          _
        $region32: #{bert_class_forward.5} parent=11 // pred_fallthru
          _
        // Predicated region
        $region33: #{bert_class_forward.5} parent=11 // pred_check
          %p429 = pneg %p205
        $region34: #{bert_class_forward.5} parent=11 // pred_check_branch
          %431 = sbr.rel (%p429) target = $region36
        $region35: #{bert_class_forward.5} parent=11 // pred_region
          _
        $region36: #{bert_class_forward.5} parent=11 // pred_fallthru
          _
        // Predicated region
        $region37: #{bert_class_forward.5} parent=11 // pred_check
          %p432 = pneg %p226
        $region38: #{bert_class_forward.5} parent=11 // pred_check_branch
          %434 = sbr.rel (%p432) target = $region40
        $region39: #{bert_class_forward.5} parent=11 // pred_region
          _
        $region40: #{bert_class_forward.5} parent=11 // pred_fallthru
          _
        // Predicated region
        $region41: #{bert_class_forward.5} parent=11 // pred_check
          %p435 = pneg %p247
        $region42: #{bert_class_forward.5} parent=11 // pred_check_branch
          %437 = sbr.rel (%p435) target = $region44
        $region43: #{bert_class_forward.5} parent=11 // pred_region
          _
        $region44: #{bert_class_forward.5} parent=11 // pred_fallthru
          _
        // Predicated region
        $region45: #{bert_class_forward.5} parent=11 // pred_check
          %p438 = pneg %p268
        $region46: #{bert_class_forward.5} parent=11 // pred_check_branch
          %440 = sbr.rel (%p438) target = $region48
        $region47: #{bert_class_forward.5} parent=11 // pred_region
          _
        $region48: #{bert_class_forward.5} parent=11 // pred_fallthru
          _
        // Predicated region
        $region49: #{bert_class_forward.5} parent=11 // pred_check
          %p441 = pneg %p289
        $region50: #{bert_class_forward.5} parent=11 // pred_check_branch
          %443 = sbr.rel (%p441) target = $region52
        $region51: #{bert_class_forward.5} parent=11 // pred_region
          _
        $region52: #{bert_class_forward.5} parent=11 // pred_fallthru
          _
        // Predicated region
        $region53: #{bert_class_forward.5} parent=11 // pred_check
          %p444 = pneg %p310
        $region54: #{bert_class_forward.5} parent=11 // pred_check_branch
          %446 = sbr.rel (%p444) target = $region56
        $region55: #{bert_class_forward.5} parent=11 // pred_region
          %s448 = ssub.s32 16, 16
          %449 = vsyncadd [#allocation3], %s448
          %s451 = sshll.u32 [#allocation2], 4
          %s452 = int_to_ptr.vmem [resolvable:$true] %s451
          %454 = dma.hbm_to_vmem [thread:$0]  %s12, 16, %s452, [#allocation3]
        $region56: #{bert_class_forward.5} parent=11 // pred_fallthru
          _
        // Predicated region
        $region57: #{bert_class_forward.5} parent=11 // pred_check
          %p455 = pneg %p331
        $region58: #{bert_class_forward.5} parent=11 // pred_check_branch
          %457 = sbr.rel (%p455) target = $region60
        $region59: #{bert_class_forward.5} parent=11 // pred_region
          %s459 = ssub.s32 16, 16
          %460 = vsyncadd [#allocation6], %s459
          %s462 = sshll.u32 [#allocation5], 4
          %s463 = int_to_ptr.vmem [resolvable:$true] %s462
          %465 = dma.hbm_to_vmem [thread:$0]  %s13, 16, %s463, [#allocation6]
        $region60: #{bert_class_forward.5} parent=11 // pred_fallthru
          _
        // Predicated region
        $region61: #{bert_class_forward.5} parent=11 // pred_check
          %p466 = pneg %p352
        $region62: #{bert_class_forward.5} parent=11 // pred_check_branch
          %468 = sbr.rel (%p466) target = $region64
        $region63: #{bert_class_forward.5} parent=11 // pred_region
          _
        $region64: #{bert_class_forward.5} parent=11 // pred_fallthru
          _
        // Predicated region
        $region65: #{bert_class_forward.5} parent=11 // pred_check
          %p469 = pneg %p373
        $region66: #{bert_class_forward.5} parent=11 // pred_check_branch
          %471 = sbr.rel (%p469) target = $region68
        $region67: #{bert_class_forward.5} parent=11 // pred_region
          %s473 = ssub.s32 16, 16
          %474 = vsyncadd [#allocation6], %s473
          %s476 = sshll.u32 [#allocation7], 4
          %s477 = int_to_ptr.vmem [resolvable:$true] %s476
          %479 = dma.hbm_to_vmem [thread:$0]  %s15, 16, %s477, [#allocation6]
        $region68: #{bert_class_forward.5} parent=11 // pred_fallthru
          _
      $region12: #{bert_class_forward.5} parent=5 // pred_fallthru
        _
      %p480 = scmp.lt.s32.totalorder %s27, 2
      // Predicated region
      $region69: #{bert_class_forward.5} parent=5 // pred_check
        %p481 = pneg %p480
      $region70: #{bert_class_forward.5} parent=5 // pred_check_branch
        %483 = sbr.rel (%p481) target = $region72
      $region71: #{bert_class_forward.5} parent=5 // pred_region
        // Predicated region
        $region73: #{bert_class_forward.5} parent=71 // pred_check
          %p484 = pneg %p47
        $region74: #{bert_class_forward.5} parent=71 // pred_check_branch
          %486 = sbr.rel (%p484) target = $region76
        $region75: #{bert_class_forward.5} parent=71 // pred_region
          %p487 = scmp.lt.s32.totalorder %s27, 1
          %s488 = scalar_select %p487, %s27, 1
          %s489 = smul.addr %s488, 4
          %s490 = scalar_lea.vmem %s0, %s489
        $region76: #{bert_class_forward.5} parent=71 // pred_fallthru
          _
        // Predicated region
        $region77: #{bert_class_forward.5} parent=71 // pred_check
          %p491 = pneg %p73
        $region78: #{bert_class_forward.5} parent=71 // pred_check_branch
          %493 = sbr.rel (%p491) target = $region80
        $region79: #{bert_class_forward.5} parent=71 // pred_region
          %p494 = scmp.lt.s32.totalorder %s27, 1
          %s495 = scalar_select %p494, %s27, 1
          %s496 = scalar_lea.vmem %s1, %s495
        $region80: #{bert_class_forward.5} parent=71 // pred_fallthru
          _
      $region72: #{bert_class_forward.5} parent=5 // pred_fallthru
        _
      %p497 = scmp.le.s32.totalorder 1, %s27
      %p498 = scmp.lt.s32.totalorder %s27, 3
      %p499 = pnand %p497, %p498
      %p500 = pneg %p499
      // Predicated region
      $region81: #{bert_class_forward.5} parent=5 // pred_check
        _
      $region82: #{bert_class_forward.5} parent=5 // pred_check_branch
        %502 = sbr.rel (%p499) target = $region84
      $region83: #{bert_class_forward.5} parent=5 // pred_region
        %s503 = ssub.s32 %s27, 1
        // Predicated region
        $region85: #{bert_class_forward.5} parent=83 // pred_check
          %p504 = pneg %p310
        $region86: #{bert_class_forward.5} parent=83 // pred_check_branch
          %506 = sbr.rel (%p504) target = $region88
        $region87: #{bert_class_forward.5} parent=83 // pred_region
          %507 = dma.done [#allocation3], 16
        $region88: #{bert_class_forward.5} parent=83 // pred_fallthru
          _
        // Predicated region
        $region89: #{bert_class_forward.5} parent=83 // pred_check
          %p508 = pneg %p331
        $region90: #{bert_class_forward.5} parent=83 // pred_check_branch
          %510 = sbr.rel (%p508) target = $region92
        $region91: #{bert_class_forward.5} parent=83 // pred_region
          %511 = dma.done [#allocation6], 16
        $region92: #{bert_class_forward.5} parent=83 // pred_fallthru
          _
        // Predicated region
        $region93: #{bert_class_forward.5} parent=83 // pred_check
          %p512 = pneg %p373
        $region94: #{bert_class_forward.5} parent=83 // pred_check_branch
          %514 = sbr.rel (%p512) target = $region96
        $region95: #{bert_class_forward.5} parent=83 // pred_region
          %515 = dma.done [#allocation6], 16
        $region96: #{bert_class_forward.5} parent=83 // pred_fallthru
          _
        %p516 = scmp.lt.s32.totalorder %s32, 1
        %s517 = scalar_select %p516, %s32, 1
        %s518 = smul.addr %s517, 4
        %s519 = scalar_lea.vmem %s0, %s518
        %p520 = pneg %p53
        %p521 = pneg %p50
        %p522 = scmp.lt.s32.totalorder %s32, 1
        %s523 = scalar_select %p522, %s32, 1
        %s524 = scalar_lea.vmem %s1, %s523
        %p525 = pneg %p79
        %p526 = pneg %p76
        %p527 = pneg %p100
        %p528 = pneg %p97
        %p529 = pneg %p121
        %p530 = pneg %p118
        %p531 = pneg %p142
        %p532 = pneg %p139
        %p533 = pneg %p163
        %p534 = pneg %p160
        %p535 = pneg %p184
        %p536 = pneg %p181
        %p537 = pneg %p205
        %p538 = pneg %p202
        %p539 = pneg %p226
        %p540 = pneg %p223
        %p541 = pneg %p247
        %p542 = pneg %p244
        %p543 = pneg %p268
        %p544 = pneg %p265
        %p545 = pneg %p289
        %p546 = pneg %p286
        %p547 = pneg %p310
        %p548 = pneg %p307
        %p549 = pneg %p331
        %p550 = pneg %p328
        %p551 = pneg %p352
        %p552 = pneg %p349
        %p553 = pneg %p373
        %p554 = pneg %p370
        %p555 = pneg %p399
        %p556 = pneg %p396
        %s557 = sand.u32 %s386, 1
        %s558 = scalar_lea.sflag [#allocation4], %s557
        %s559 = sand.u32 %s386, 1
        %s560 = scalar_lea.vmem [#allocation8], %s559
        %p561 = scmp.lt.s32.totalorder %s32, 1
        %s562 = scalar_select %p561, %s32, 1
        %s563 = smul.addr %s562, 4
        %s564 = scalar_lea.vmem %s0, %s563
        %p565 = scmp.lt.s32.totalorder %s32, 1
        %s566 = scalar_select %p565, %s32, 1
        %s567 = scalar_lea.vmem %s1, %s566
        %v569 = vld [vmem:[%s564] sm:$0xf]
        %v570 = vld [vmem:[%s567] sm:$0x1]
        %v571 = vld [vmem:[%s2] sm:$0xff]
        %v572 = vld [vmem:[%s2 + $0x8] sm:$0xf]
        %v573 = vld [vmem:[%s2 + $0xc] sm:$0xff]
        %v574 = vld [vmem:[%s2 + $0x14] sm:$0xf]
        %v575 = vld [vmem:[%s2 + $0x18] sm:$0xff]
        %v576 = vld [vmem:[%s2 + $0x20] sm:$0xf]
        %v577 = vld [vmem:[%s2 + $0x24] sm:$0xff]
        %v578 = vld [vmem:[%s2 + $0x2c] sm:$0xf]
        %v579 = vld [vmem:[%s2 + $0x30] sm:$0xff]
        %v580 = vld [vmem:[%s2 + $0x38] sm:$0xf]
        %v581 = vld [vmem:[%s2 + $0x3c] sm:$0xff]
        %v582 = vld [vmem:[%s2 + $0x44] sm:$0xf]
        %v583 = vld [vmem:[%s2 + $0x48] sm:$0xff]
        %v584 = vld [vmem:[%s2 + $0x50] sm:$0xf]
        %v585 = vld [vmem:[%s2 + $0x54] sm:$0xff]
        %v586 = vld [vmem:[%s2 + $0x5c] sm:$0xf]
        %v587 = vld [vmem:[%s2 + $0x60] sm:$0xff]
        %v588 = vld [vmem:[%s2 + $0x68] sm:$0xf]
        %v589 = vld [vmem:[%s2 + $0x6c] sm:$0xff]
        %v590 = vld [vmem:[%s2 + $0x74] sm:$0xf]
        %v591 = vld [vmem:[%s2 + $0x78] sm:$0xff]
        %v592 = vld [vmem:[%s2 + $0x80] sm:$0xf]
        %v593 = vld [vmem:[%s2 + $0x84] sm:$0xff]
        %v594 = vld [vmem:[%s2 + $0x8c] sm:$0xf]
        %v595 = vld [vmem:[%s2 + $0x90] sm:$0xff]
        %v596 = vld [vmem:[%s2 + $0x98] sm:$0xf]
        %v597 = vld [vmem:[%s2 + $0x9c] sm:$0xff]
        %v598 = vld [vmem:[%s2 + $0xa4] sm:$0xf]
        %v599 = vld [vmem:[%s2 + $0xa8] sm:$0xff]
        %v600 = vld [vmem:[%s2 + $0xb0] sm:$0xf]
        %v601 = vld [vmem:[%s2 + $0xb4] sm:$0xff]
        %v602 = vld [vmem:[%s2 + $0xbc] sm:$0xf]
        %v603 = vld [vmem:[%s3] sm:$0x7]
        %v604 = vld [vmem:[%s4] sm:$0xf]
        %v605 = vld [vmem:[%s4 + $0x4] sm:$0xf]
        %v606 = vld [vmem:[%s4 + $0x8] sm:$0xf]
        %v607 = vld [vmem:[%s4 + $0xc] sm:$0xf]
        %v608 = vld [vmem:[%s4 + $0x10] sm:$0xf]
        %v609 = vld [vmem:[%s4 + $0x14] sm:$0xf]
        %v610 = vld [vmem:[%s4 + $0x18] sm:$0xf]
        %v611 = vld [vmem:[%s4 + $0x1c] sm:$0xf]
        %v612 = vld [vmem:[%s4 + $0x20] sm:$0xf]
        %v613 = vld [vmem:[%s4 + $0x24] sm:$0xf]
        %v614 = vld [vmem:[%s4 + $0x28] sm:$0xf]
        %v615 = vld [vmem:[%s4 + $0x2c] sm:$0xf]
        %v616 = vld [vmem:[%s4 + $0x30] sm:$0xf]
        %v617 = vld [vmem:[%s4 + $0x34] sm:$0xf]
        %v618 = vld [vmem:[%s4 + $0x38] sm:$0xf]
        %v619 = vld [vmem:[%s4 + $0x3c] sm:$0xf]
        %v620 = vld [vmem:[%s5] sm:$0x1]
        %v621 = vld [vmem:[%s6] sm:$0x1]
        %v622 = vld [vmem:[%s7] sm:$0x1]
        %v623 = vld [vmem:[%s8] sm:$0xff]
        %v624 = vld [vmem:[%s8 + $0x8] sm:$0xff]
        %v625 = vld [vmem:[%s8 + $0x10] sm:$0xff]
        %v626 = vld [vmem:[%s8 + $0x18] sm:$0xff]
        %v627 = vld [vmem:[%s8 + $0x20] sm:$0xff]
        %v628 = vld [vmem:[%s8 + $0x28] sm:$0xff]
        %v629 = vld [vmem:[%s8 + $0x30] sm:$0xff]
        %v630 = vld [vmem:[%s8 + $0x38] sm:$0xff]
        %v631 = vld [vmem:[%s8 + $0x40] sm:$0xff]
        %v632 = vld [vmem:[%s8 + $0x48] sm:$0xff]
        %v633 = vld [vmem:[%s8 + $0x50] sm:$0xff]
        %v634 = vld [vmem:[%s8 + $0x58] sm:$0xff]
        %v635 = vld [vmem:[%s8 + $0x60] sm:$0xff]
        %v636 = vld [vmem:[%s8 + $0x68] sm:$0xff]
        %v637 = vld [vmem:[%s8 + $0x70] sm:$0xff]
        %v638 = vld [vmem:[%s8 + $0x78] sm:$0xff]
        %v639 = vld [vmem:[%s8 + $0x80] sm:$0xff]
        %v640 = vld [vmem:[%s8 + $0x88] sm:$0xff]
        %v641 = vld [vmem:[%s8 + $0x90] sm:$0xff]
        %v642 = vld [vmem:[%s8 + $0x98] sm:$0xff]
        %v643 = vld [vmem:[%s8 + $0xa0] sm:$0xff]
        %v644 = vld [vmem:[%s8 + $0xa8] sm:$0xff]
        %v645 = vld [vmem:[%s8 + $0xb0] sm:$0xff]
        %v646 = vld [vmem:[%s8 + $0xb8] sm:$0xff]
        %v647 = vld [vmem:[%s8 + $0xc0] sm:$0xff]
        %v648 = vld [vmem:[%s8 + $0xc8] sm:$0xff]
        %v649 = vld [vmem:[%s8 + $0xd0] sm:$0xff]
        %v650 = vld [vmem:[%s8 + $0xd8] sm:$0xff]
        %v651 = vld [vmem:[%s8 + $0xe0] sm:$0xff]
        %v652 = vld [vmem:[%s8 + $0xe8] sm:$0xff]
        %v653 = vld [vmem:[%s8 + $0xf0] sm:$0xff]
        %v654 = vld [vmem:[%s8 + $0xf8] sm:$0xff]
        %v655 = vld [vmem:[%s9] sm:$0xf]
        %v656 = vld [vmem:[%s10] sm:$0xf]
        %v657 = vld [vmem:[%s10 + $0x4] sm:$0xf]
        %v658 = vld [vmem:[%s10 + $0x8] sm:$0xf]
        %v659 = vld [vmem:[%s10 + $0xc] sm:$0xf]
        %v660 = vld [vmem:[%s10 + $0x10] sm:$0xf]
        %v661 = vld [vmem:[%s10 + $0x14] sm:$0xf]
        %v662 = vld [vmem:[%s10 + $0x18] sm:$0xf]
        %v663 = vld [vmem:[%s10 + $0x1c] sm:$0xf]
        %v664 = vld [vmem:[%s10 + $0x20] sm:$0xf]
        %v665 = vld [vmem:[%s10 + $0x24] sm:$0xf]
        %v666 = vld [vmem:[%s10 + $0x28] sm:$0xf]
        %v667 = vld [vmem:[%s10 + $0x2c] sm:$0xf]
        %v668 = vld [vmem:[%s10 + $0x30] sm:$0xf]
        %v669 = vld [vmem:[%s10 + $0x34] sm:$0xf]
        %v670 = vld [vmem:[%s10 + $0x38] sm:$0xf]
        %v671 = vld [vmem:[%s10 + $0x3c] sm:$0xf]
        %v672 = vld [vmem:[%s10 + $0x40] sm:$0xf]
        %v673 = vld [vmem:[%s10 + $0x44] sm:$0xf]
        %v674 = vld [vmem:[%s10 + $0x48] sm:$0xf]
        %v675 = vld [vmem:[%s10 + $0x4c] sm:$0xf]
        %v676 = vld [vmem:[%s10 + $0x50] sm:$0xf]
        %v677 = vld [vmem:[%s10 + $0x54] sm:$0xf]
        %v678 = vld [vmem:[%s10 + $0x58] sm:$0xf]
        %v679 = vld [vmem:[%s10 + $0x5c] sm:$0xf]
        %v680 = vld [vmem:[%s10 + $0x60] sm:$0xf]
        %v681 = vld [vmem:[%s10 + $0x64] sm:$0xf]
        %v682 = vld [vmem:[%s10 + $0x68] sm:$0xf]
        %v683 = vld [vmem:[%s10 + $0x6c] sm:$0xf]
        %v684 = vld [vmem:[%s10 + $0x70] sm:$0xf]
        %v685 = vld [vmem:[%s10 + $0x74] sm:$0xf]
        %v686 = vld [vmem:[%s10 + $0x78] sm:$0xf]
        %v687 = vld [vmem:[%s10 + $0x7c] sm:$0xf]
        %v688 = vld [vmem:[%s10 + $0x80] sm:$0xf]
        %v689 = vld [vmem:[%s10 + $0x84] sm:$0xf]
        %v690 = vld [vmem:[%s10 + $0x88] sm:$0xf]
        %v691 = vld [vmem:[%s10 + $0x8c] sm:$0xf]
        %v692 = vld [vmem:[%s10 + $0x90] sm:$0xf]
        %v693 = vld [vmem:[%s10 + $0x94] sm:$0xf]
        %v694 = vld [vmem:[%s10 + $0x98] sm:$0xf]
        %v695 = vld [vmem:[%s10 + $0x9c] sm:$0xf]
        %v696 = vld [vmem:[%s10 + $0xa0] sm:$0xf]
        %v697 = vld [vmem:[%s10 + $0xa4] sm:$0xf]
        %v698 = vld [vmem:[%s10 + $0xa8] sm:$0xf]
        %v699 = vld [vmem:[%s10 + $0xac] sm:$0xf]
        %v700 = vld [vmem:[%s10 + $0xb0] sm:$0xf]
        %v701 = vld [vmem:[%s10 + $0xb4] sm:$0xf]
        %v702 = vld [vmem:[%s10 + $0xb8] sm:$0xf]
        %v703 = vld [vmem:[%s10 + $0xbc] sm:$0xf]
        %v704 = vld [vmem:[%s10 + $0xc0] sm:$0xf]
        %v705 = vld [vmem:[%s10 + $0xc4] sm:$0xf]
        %v706 = vld [vmem:[%s10 + $0xc8] sm:$0xf]
        %v707 = vld [vmem:[%s10 + $0xcc] sm:$0xf]
        %v708 = vld [vmem:[%s10 + $0xd0] sm:$0xf]
        %v709 = vld [vmem:[%s10 + $0xd4] sm:$0xf]
        %v710 = vld [vmem:[%s10 + $0xd8] sm:$0xf]
        %v711 = vld [vmem:[%s10 + $0xdc] sm:$0xf]
        %v712 = vld [vmem:[%s10 + $0xe0] sm:$0xf]
        %v713 = vld [vmem:[%s10 + $0xe4] sm:$0xf]
        %v714 = vld [vmem:[%s10 + $0xe8] sm:$0xf]
        %v715 = vld [vmem:[%s10 + $0xec] sm:$0xf]
        %v716 = vld [vmem:[%s10 + $0xf0] sm:$0xf]
        %v717 = vld [vmem:[%s10 + $0xf4] sm:$0xf]
        %v718 = vld [vmem:[%s10 + $0xf8] sm:$0xf]
        %v719 = vld [vmem:[%s10 + $0xfc] sm:$0xf]
        %v720 = vld [vmem:[%s11] sm:$0x1]
        %v721 = vld [vmem:[#allocation2] sm:$0x1]
        %v722 = vld [vmem:[#allocation5] sm:$0x1]
        %v723 = vunpack.c.l.bf16 %v569
        %v725 = vlaneseq
        %v726 = vshrl.u32 %v725, 7
        %v727 = vsub.s32 0, %v726
        %v728 = vrot.slane %v603, %v727
        %v729 = vlaneseq
        %v730 = vshrl.u32 %v729, 7
        %v731 = vsub.s32 1, %v730
        %v732 = vrot.slane %v603, %v731
        %v733 = vlaneseq
        %v734 = vshrl.u32 %v733, 7
        %v735 = vsub.s32 2, %v734
        %v736 = vrot.slane %v603, %v735
        %v772 = vunpack.c.l.b16 %v571
        %v773 = vunpack.c.h.b16 %v571
        %v774 = vunpack.c.l.b16 %v572
        %v775 = vunpack.c.l.b16 %v573
        %v776 = vunpack.c.h.b16 %v573
        %v777 = vunpack.c.l.b16 %v574
        %v778 = vunpack.c.l.b16 %v575
        %v779 = vunpack.c.h.b16 %v575
        %v780 = vunpack.c.l.b16 %v576
        %v781 = vunpack.c.l.b16 %v577
        %v782 = vunpack.c.h.b16 %v577
        %v783 = vunpack.c.l.b16 %v578
        %v784 = vunpack.c.l.b16 %v579
        %v785 = vunpack.c.h.b16 %v579
        %v786 = vunpack.c.l.b16 %v580
        %v787 = vunpack.c.l.b16 %v581
        %v788 = vunpack.c.h.b16 %v581
        %v789 = vunpack.c.l.b16 %v582
        %v790 = vunpack.c.l.b16 %v583
        %v791 = vunpack.c.h.b16 %v583
        %v792 = vunpack.c.l.b16 %v584
        %v793 = vunpack.c.l.b16 %v585
        %v794 = vunpack.c.h.b16 %v585
        %v795 = vunpack.c.l.b16 %v586
        %v796 = vunpack.c.l.b16 %v587
        %v797 = vunpack.c.h.b16 %v587
        %v798 = vunpack.c.l.b16 %v588
        %v799 = vunpack.c.l.b16 %v589
        %v800 = vunpack.c.h.b16 %v589
        %v801 = vunpack.c.l.b16 %v590
        %v802 = vunpack.c.l.b16 %v591
        %v803 = vunpack.c.h.b16 %v591
        %v804 = vunpack.c.l.b16 %v592
        %v805 = vunpack.c.l.b16 %v593
        %v806 = vunpack.c.h.b16 %v593
        %v807 = vunpack.c.l.b16 %v594
        %v808 = vunpack.c.l.b16 %v595
        %v809 = vunpack.c.h.b16 %v595
        %v810 = vunpack.c.l.b16 %v596
        %v811 = vunpack.c.l.b16 %v597
        %v812 = vunpack.c.h.b16 %v597
        %v813 = vunpack.c.l.b16 %v598
        %v814 = vunpack.c.l.b16 %v599
        %v815 = vunpack.c.h.b16 %v599
        %v816 = vunpack.c.l.b16 %v600
        %v817 = vunpack.c.l.b16 %v601
        %v818 = vunpack.c.h.b16 %v601
        %v819 = vunpack.c.l.b16 %v602
        %v820 = vpack.c.b16 %v775, %v772
        %v821 = vpack.c.b16 %v776, %v773
        %v822 = vpack.c.b16 %v777, %v774
        %v823 = vpack.c.b16 %v781, %v778
        %v824 = vpack.c.b16 %v782, %v779
        %v825 = vpack.c.b16 %v783, %v780
        %v826 = vpack.c.b16 %v787, %v784
        %v827 = vpack.c.b16 %v788, %v785
        %v828 = vpack.c.b16 %v789, %v786
        %v829 = vpack.c.b16 %v793, %v790
        %v830 = vpack.c.b16 %v794, %v791
        %v831 = vpack.c.b16 %v795, %v792
        %v832 = vpack.c.b16 %v799, %v796
        %v833 = vpack.c.b16 %v800, %v797
        %v834 = vpack.c.b16 %v801, %v798
        %v835 = vpack.c.b16 %v805, %v802
        %v836 = vpack.c.b16 %v806, %v803
        %v837 = vpack.c.b16 %v807, %v804
        %v838 = vpack.c.b16 %v811, %v808
        %v839 = vpack.c.b16 %v812, %v809
        %v840 = vpack.c.b16 %v813, %v810
        %v841 = vpack.c.b16 %v817, %v814
        %v842 = vpack.c.b16 %v818, %v815
        %v843 = vpack.c.b16 %v819, %v816
        %868 = vmatprep.subr.bf16.mxu0 %v821
        %869 = vmatpush1.bf16.msra.mxu0 %v820
        %870 = vmatprep.subr.bf16.mxu0 %v824
        %871 = vmatpush1.bf16.msra.mxu0 %v823
        %872 = vmatprep.subr.bf16.mxu0 %v827
        %873 = vmatpush1.bf16.msra.mxu0 %v826
        %874 = vmatprep.subr.bf16.mxu0 %v830
        %875 = vmatpush1.bf16.msra.mxu0 %v829
        %876 = vmatprep.subr.bf16.mxu0 %v833
        %877 = vmatpush1.bf16.msra.mxu0 %v832
        %878 = vmatprep.subr.bf16.mxu0 %v836
        %879 = vmatpush1.bf16.msra.mxu0 %v835
        %880 = vmatprep.subr.bf16.mxu0 %v839
        %881 = vmatpush1.bf16.msra.mxu0 %v838
        %882 = vmatprep.subr.bf16.mxu0 %v842
        %883 = vmatpush1.bf16.msra.mxu0 %v841
        %884 = vmatprep.subr.bf16.mxu0 0
        %885 = vmatpush1.bf16.msra.mxu0 0
        %886 = vmatprep.subr.bf16.mxu0 0
        %887 = vmatpush1.bf16.msra.mxu0 0
        %888 = vmatprep.subr.bf16.mxu0 0
        %889 = vmatpush1.bf16.msra.mxu0 0
        %890 = vmatprep.subr.bf16.mxu0 0
        %891 = vmatpush1.bf16.msra.mxu0 0
        %892 = vmatprep.subr.bf16.mxu0 0
        %893 = vmatpush1.bf16.msra.mxu0 0
        %894 = vmatprep.subr.bf16.mxu0 0
        %895 = vmatpush1.bf16.msra.mxu0 0
        %896 = vmatprep.subr.bf16.mxu0 0
        %897 = vmatpush1.bf16.msra.mxu0 0
        %898 = vmatprep.subr.bf16.mxu0 0
        %899 = vmatpush1.bf16.msra.mxu0 0
        %900 = vmatprep.mubr.bf16.mxu0 0
        %901 = vmatmul.mubr.bf16.gmra.mrb[0].mxu0 %v569
        %v902 = vpop.f32.mrb[0].mxu0
        %v903 = vadd.f32 %v728, %v902
        %v904 = vpop.f32.mrb[0].mxu0
        %v905 = vadd.f32 %v732, %v904
        %v906 = vpop.f32.mrb[0].mxu0
        %v907 = vpop.f32.mrb[0].mxu0
        %908 = vdwg.mxu0
        %909 = vmatprep.subr.bf16.mxu0 0
        %910 = vmatpush1.bf16.msra.mxu0 %v822
        %911 = vmatprep.subr.bf16.mxu0 0
        %912 = vmatpush1.bf16.msra.mxu0 %v825
        %913 = vmatprep.subr.bf16.mxu0 0
        %914 = vmatpush1.bf16.msra.mxu0 %v828
        %915 = vmatprep.subr.bf16.mxu0 0
        %916 = vmatpush1.bf16.msra.mxu0 %v831
        %917 = vmatprep.subr.bf16.mxu0 0
        %918 = vmatpush1.bf16.msra.mxu0 %v834
        %919 = vmatprep.subr.bf16.mxu0 0
        %920 = vmatpush1.bf16.msra.mxu0 %v837
        %921 = vmatprep.subr.bf16.mxu0 0
        %922 = vmatpush1.bf16.msra.mxu0 %v840
        %923 = vmatprep.subr.bf16.mxu0 0
        %924 = vmatpush1.bf16.msra.mxu0 %v843
        %925 = vmatprep.subr.bf16.mxu0 0
        %926 = vmatpush1.bf16.msra.mxu0 0
        %927 = vmatprep.subr.bf16.mxu0 0
        %928 = vmatpush1.bf16.msra.mxu0 0
        %929 = vmatprep.subr.bf16.mxu0 0
        %930 = vmatpush1.bf16.msra.mxu0 0
        %931 = vmatprep.subr.bf16.mxu0 0
        %932 = vmatpush1.bf16.msra.mxu0 0
        %933 = vmatprep.subr.bf16.mxu0 0
        %934 = vmatpush1.bf16.msra.mxu0 0
        %935 = vmatprep.subr.bf16.mxu0 0
        %936 = vmatpush1.bf16.msra.mxu0 0
        %937 = vmatprep.subr.bf16.mxu0 0
        %938 = vmatpush1.bf16.msra.mxu0 0
        %939 = vmatprep.subr.bf16.mxu0 0
        %940 = vmatpush1.bf16.msra.mxu0 0
        %941 = vmatprep.mubr.bf16.mxu0 0
        %942 = vmatmul.mubr.bf16.gmra.mrb[0].mxu0 %v569
        %v943 = vpop.f32.mrb[0].mxu0
        %v944 = vadd.f32 %v736, %v943
        %v945 = vpop.f32.mrb[0].mxu0
        %v946 = vpop.f32.mrb[0].mxu0
        %v947 = vpop.f32.mrb[0].mxu0
        %948 = vdwg.mxu0
        %v949 = vpack.c.bf16 %v903, %v903
        %v950 = vpack.c.bf16 %v905, %v905
        %v951 = vpack.c.bf16 %v944, %v944
        %v952 = vlaneseq
        %v953 = vand.u32 %v952, 127
        %vm954 = vcmp.ge.s32.totalorder %v953, 0
        %vm955 = vcmp.lt.s32.totalorder %v953, 64
        %vm956 = vmand %vm954, %vm955
        %v957 = vsel %vm956, 1, 0
        %v958 = vcvt.s32.f32 %v957
        %v959 = vpack.c.bf16 %v958, %v958
        %v960 = vmul.bf16 %v950, %v959
        %v962 = vlaneseq
        %v963 = vshrl.u32 %v962, 7
        %v964 = vsub.s32 0, %v963
        %v965 = vrot.slane %v570, %v964
        %967 = vmatprep.subr.bf16.mxu0 0
        %968 = vmatpush1.bf16.xpose.msra.mxu0 %v960
        %969 = vmatprep.subr.bf16.mxu0 0
        %970 = vmatpush1.bf16.xpose.msra.mxu0 0
        %971 = vmatprep.subr.bf16.mxu0 0
        %972 = vmatpush1.bf16.xpose.msra.mxu0 0
        %973 = vmatprep.subr.bf16.mxu0 0
        %974 = vmatpush1.bf16.xpose.msra.mxu0 0
        %975 = vmatprep.subr.bf16.mxu0 0
        %976 = vmatpush1.bf16.xpose.msra.mxu0 0
        %977 = vmatprep.subr.bf16.mxu0 0
        %978 = vmatpush1.bf16.xpose.msra.mxu0 0
        %979 = vmatprep.subr.bf16.mxu0 0
        %980 = vmatpush1.bf16.xpose.msra.mxu0 0
        %981 = vmatprep.subr.bf16.mxu0 0
        %982 = vmatpush1.bf16.xpose.msra.mxu0 0
        %983 = vmatprep.subr.bf16.mxu0 0
        %984 = vmatpush1.bf16.xpose.msra.mxu0 0
        %985 = vmatprep.subr.bf16.mxu0 0
        %986 = vmatpush1.bf16.xpose.msra.mxu0 0
        %987 = vmatprep.subr.bf16.mxu0 0
        %988 = vmatpush1.bf16.xpose.msra.mxu0 0
        %989 = vmatprep.subr.bf16.mxu0 0
        %990 = vmatpush1.bf16.xpose.msra.mxu0 0
        %991 = vmatprep.subr.bf16.mxu0 0
        %992 = vmatpush1.bf16.xpose.msra.mxu0 0
        %993 = vmatprep.subr.bf16.mxu0 0
        %994 = vmatpush1.bf16.xpose.msra.mxu0 0
        %995 = vmatprep.subr.bf16.mxu0 0
        %996 = vmatpush1.bf16.xpose.msra.mxu0 0
        %997 = vmatprep.subr.bf16.mxu0 0
        %998 = vmatpush1.bf16.xpose.msra.mxu0 0
        %999 = vmatprep.mubr.bf16.mxu0 0
        %1000 = vmatmul.mubr.bf16.gmra.mrb[0].mxu0 %v949
        %v1001 = vpop.f32.mrb[0].mxu0
        %v1002 = vadd.f32 %v965, %v1001
        %v1003 = vpop.f32.mrb[0].mxu0
        %v1004 = vpop.f32.mrb[0].mxu0
        %v1005 = vpop.f32.mrb[0].mxu0
        %1006 = vdwg.mxu0
        %vm1007 = vcmask 64512
        %v1008 = vsel %vm1007, %v1002, -inf
        %1009 = vmax.xlane.f32.xlu0 %v1008
        %v1010 = vpop.xlane.xlu0 %1009
        %v1011 = vsub.f32 %v1002, %v1010
        %v1012 = vmul.f32 %v1011, 1.442695
        %v1013 = vpow.pop %v1012
        %v1014 = vsel %vm1007, %v1013, 0.0
        %1015 = vadd.xlane.f32.xlu0 %v1014
        %v1016 = vpop.xlane.xlu0 %1015
        %v1017 = vrcp.pop %v1016
        %v1018 = vpack.c.bf16 %v1013, %v1013
        %v1019 = vmul.bf16 %v951, %v959
        %v1021 = vsel %vm1007, %v1018, 0
        %vm1023 = vcmask 1043456
        %v1025 = vsel %vm1023, %v1019, 0
        %1027 = vmatprep.subr.bf16.mxu0 0
        %1028 = vmatpush1.bf16.msra.mxu0 %v1025
        %1029 = vmatprep.subr.bf16.mxu0 0
        %1030 = vmatpush1.bf16.msra.mxu0 0
        %1031 = vmatprep.subr.bf16.mxu0 0
        %1032 = vmatpush1.bf16.msra.mxu0 0
        %1033 = vmatprep.subr.bf16.mxu0 0
        %1034 = vmatpush1.bf16.msra.mxu0 0
        %1035 = vmatprep.subr.bf16.mxu0 0
        %1036 = vmatpush1.bf16.msra.mxu0 0
        %1037 = vmatprep.subr.bf16.mxu0 0
        %1038 = vmatpush1.bf16.msra.mxu0 0
        %1039 = vmatprep.subr.bf16.mxu0 0
        %1040 = vmatpush1.bf16.msra.mxu0 0
        %1041 = vmatprep.subr.bf16.mxu0 0
        %1042 = vmatpush1.bf16.msra.mxu0 0
        %1043 = vmatprep.subr.bf16.mxu0 0
        %1044 = vmatpush1.bf16.msra.mxu0 0
        %1045 = vmatprep.subr.bf16.mxu0 0
        %1046 = vmatpush1.bf16.msra.mxu0 0
        %1047 = vmatprep.subr.bf16.mxu0 0
        %1048 = vmatpush1.bf16.msra.mxu0 0
        %1049 = vmatprep.subr.bf16.mxu0 0
        %1050 = vmatpush1.bf16.msra.mxu0 0
        %1051 = vmatprep.subr.bf16.mxu0 0
        %1052 = vmatpush1.bf16.msra.mxu0 0
        %1053 = vmatprep.subr.bf16.mxu0 0
        %1054 = vmatpush1.bf16.msra.mxu0 0
        %1055 = vmatprep.subr.bf16.mxu0 0
        %1056 = vmatpush1.bf16.msra.mxu0 0
        %1057 = vmatprep.subr.bf16.mxu0 0
        %1058 = vmatpush1.bf16.msra.mxu0 0
        %1059 = vmatprep.mubr.bf16.mxu0 0
        %1060 = vmatmul.mubr.bf16.gmra.mrb[0].mxu0 %v1021
        %v1061 = vpop.f32.mrb[0].mxu0
        %v1062 = vadd.f32 0.0, %v1061
        %v1063 = vpop.f32.mrb[0].mxu0
        %v1064 = vpop.f32.mrb[0].mxu0
        %v1065 = vpop.f32.mrb[0].mxu0
        %1066 = vdwg.mxu0
        %v1067 = vmul.f32 %v1062, %v1017
        %v1068 = vadd.f32 %v1067, 0.0
        %vm1069 = vcmp.ge.s32.totalorder %v953, 64
        %vm1070 = vcmp.lt.s32.totalorder %v953, 128
        %vm1071 = vmand %vm1069, %vm1070
        %v1072 = vsel %vm1071, 1, 0
        %v1073 = vcvt.s32.f32 %v1072
        %v1074 = vpack.c.bf16 %v1073, %v1073
        %v1075 = vmul.bf16 %v950, %v1074
        %1076 = vmatprep.subr.bf16.mxu0 0
        %1077 = vmatpush1.bf16.xpose.msra.mxu0 %v1075
        %1078 = vmatprep.subr.bf16.mxu0 0
        %1079 = vmatpush1.bf16.xpose.msra.mxu0 0
        %1080 = vmatprep.subr.bf16.mxu0 0
        %1081 = vmatpush1.bf16.xpose.msra.mxu0 0
        %1082 = vmatprep.subr.bf16.mxu0 0
        %1083 = vmatpush1.bf16.xpose.msra.mxu0 0
        %1084 = vmatprep.subr.bf16.mxu0 0
        %1085 = vmatpush1.bf16.xpose.msra.mxu0 0
        %1086 = vmatprep.subr.bf16.mxu0 0
        %1087 = vmatpush1.bf16.xpose.msra.mxu0 0
        %1088 = vmatprep.subr.bf16.mxu0 0
        %1089 = vmatpush1.bf16.xpose.msra.mxu0 0
        %1090 = vmatprep.subr.bf16.mxu0 0
        %1091 = vmatpush1.bf16.xpose.msra.mxu0 0
        %1092 = vmatprep.subr.bf16.mxu0 0
        %1093 = vmatpush1.bf16.xpose.msra.mxu0 0
        %1094 = vmatprep.subr.bf16.mxu0 0
        %1095 = vmatpush1.bf16.xpose.msra.mxu0 0
        %1096 = vmatprep.subr.bf16.mxu0 0
        %1097 = vmatpush1.bf16.xpose.msra.mxu0 0
        %1098 = vmatprep.subr.bf16.mxu0 0
        %1099 = vmatpush1.bf16.xpose.msra.mxu0 0
        %1100 = vmatprep.subr.bf16.mxu0 0
        %1101 = vmatpush1.bf16.xpose.msra.mxu0 0
        %1102 = vmatprep.subr.bf16.mxu0 0
        %1103 = vmatpush1.bf16.xpose.msra.mxu0 0
        %1104 = vmatprep.subr.bf16.mxu0 0
        %1105 = vmatpush1.bf16.xpose.msra.mxu0 0
        %1106 = vmatprep.subr.bf16.mxu0 0
        %1107 = vmatpush1.bf16.xpose.msra.mxu0 0
        %1108 = vmatprep.mubr.bf16.mxu0 0
        %1109 = vmatmul.mubr.bf16.gmra.mrb[0].mxu0 %v949
        %v1110 = vpop.f32.mrb[0].mxu0
        %v1111 = vadd.f32 %v965, %v1110
        %v1112 = vpop.f32.mrb[0].mxu0
        %v1113 = vpop.f32.mrb[0].mxu0
        %v1114 = vpop.f32.mrb[0].mxu0
        %1115 = vdwg.mxu0
        %v1116 = vsel %vm1007, %v1111, -inf
        %1117 = vmax.xlane.f32.xlu0 %v1116
        %v1118 = vpop.xlane.xlu0 %1117
        %v1119 = vsub.f32 %v1111, %v1118
        %v1120 = vmul.f32 %v1119, 1.442695
        %v1121 = vpow.pop %v1120
        %v1122 = vsel %vm1007, %v1121, 0.0
        %1123 = vadd.xlane.f32.xlu0 %v1122
        %v1124 = vpop.xlane.xlu0 %1123
        %v1125 = vrcp.pop %v1124
        %v1126 = vpack.c.bf16 %v1121, %v1121
        %v1127 = vmul.bf16 %v951, %v1074
        %v1129 = vsel %vm1007, %v1126, 0
        %v1132 = vsel %vm1023, %v1127, 0
        %1134 = vmatprep.subr.bf16.mxu0 0
        %1135 = vmatpush1.bf16.msra.mxu0 %v1132
        %1136 = vmatprep.subr.bf16.mxu0 0
        %1137 = vmatpush1.bf16.msra.mxu0 0
        %1138 = vmatprep.subr.bf16.mxu0 0
        %1139 = vmatpush1.bf16.msra.mxu0 0
        %1140 = vmatprep.subr.bf16.mxu0 0
        %1141 = vmatpush1.bf16.msra.mxu0 0
        %1142 = vmatprep.subr.bf16.mxu0 0
        %1143 = vmatpush1.bf16.msra.mxu0 0
        %1144 = vmatprep.subr.bf16.mxu0 0
        %1145 = vmatpush1.bf16.msra.mxu0 0
        %1146 = vmatprep.subr.bf16.mxu0 0
        %1147 = vmatpush1.bf16.msra.mxu0 0
        %1148 = vmatprep.subr.bf16.mxu0 0
        %1149 = vmatpush1.bf16.msra.mxu0 0
        %1150 = vmatprep.subr.bf16.mxu0 0
        %1151 = vmatpush1.bf16.msra.mxu0 0
        %1152 = vmatprep.subr.bf16.mxu0 0
        %1153 = vmatpush1.bf16.msra.mxu0 0
        %1154 = vmatprep.subr.bf16.mxu0 0
        %1155 = vmatpush1.bf16.msra.mxu0 0
        %1156 = vmatprep.subr.bf16.mxu0 0
        %1157 = vmatpush1.bf16.msra.mxu0 0
        %1158 = vmatprep.subr.bf16.mxu0 0
        %1159 = vmatpush1.bf16.msra.mxu0 0
        %1160 = vmatprep.subr.bf16.mxu0 0
        %1161 = vmatpush1.bf16.msra.mxu0 0
        %1162 = vmatprep.subr.bf16.mxu0 0
        %1163 = vmatpush1.bf16.msra.mxu0 0
        %1164 = vmatprep.subr.bf16.mxu0 0
        %1165 = vmatpush1.bf16.msra.mxu0 0
        %1166 = vmatprep.mubr.bf16.mxu0 0
        %1167 = vmatmul.mubr.bf16.gmra.mrb[0].mxu0 %v1129
        %v1168 = vpop.f32.mrb[0].mxu0
        %v1169 = vadd.f32 0.0, %v1168
        %v1170 = vpop.f32.mrb[0].mxu0
        %v1171 = vpop.f32.mrb[0].mxu0
        %v1172 = vpop.f32.mrb[0].mxu0
        %1173 = vdwg.mxu0
        %v1174 = vmul.f32 %v1169, %v1125
        %v1175 = vadd.f32 %v1068, %v1174
        %v1176 = vpack.c.bf16 %v1175, %v1175
        %v1178 = vlaneseq
        %v1179 = vshrl.u32 %v1178, 7
        %v1180 = vsub.s32 0, %v1179
        %v1181 = vrot.slane %v620, %v1180
        %v1199 = vunpack.c.l.b16 %v604
        %v1200 = vunpack.c.l.b16 %v605
        %v1201 = vunpack.c.l.b16 %v606
        %v1202 = vunpack.c.l.b16 %v607
        %v1203 = vunpack.c.l.b16 %v608
        %v1204 = vunpack.c.l.b16 %v609
        %v1205 = vunpack.c.l.b16 %v610
        %v1206 = vunpack.c.l.b16 %v611
        %v1207 = vunpack.c.l.b16 %v612
        %v1208 = vunpack.c.l.b16 %v613
        %v1209 = vunpack.c.l.b16 %v614
        %v1210 = vunpack.c.l.b16 %v615
        %v1211 = vunpack.c.l.b16 %v616
        %v1212 = vunpack.c.l.b16 %v617
        %v1213 = vunpack.c.l.b16 %v618
        %v1214 = vunpack.c.l.b16 %v619
        %v1215 = vpack.c.b16 %v1200, %v1199
        %v1216 = vpack.c.b16 %v1202, %v1201
        %v1217 = vpack.c.b16 %v1204, %v1203
        %v1218 = vpack.c.b16 %v1206, %v1205
        %v1219 = vpack.c.b16 %v1208, %v1207
        %v1220 = vpack.c.b16 %v1210, %v1209
        %v1221 = vpack.c.b16 %v1212, %v1211
        %v1222 = vpack.c.b16 %v1214, %v1213
        %1231 = vmatprep.subr.bf16.mxu0 0
        %1232 = vmatpush1.bf16.msra.mxu0 %v1215
        %1233 = vmatprep.subr.bf16.mxu0 0
        %1234 = vmatpush1.bf16.msra.mxu0 %v1216
        %1235 = vmatprep.subr.bf16.mxu0 0
        %1236 = vmatpush1.bf16.msra.mxu0 %v1217
        %1237 = vmatprep.subr.bf16.mxu0 0
        %1238 = vmatpush1.bf16.msra.mxu0 %v1218
        %1239 = vmatprep.subr.bf16.mxu0 0
        %1240 = vmatpush1.bf16.msra.mxu0 %v1219
        %1241 = vmatprep.subr.bf16.mxu0 0
        %1242 = vmatpush1.bf16.msra.mxu0 %v1220
        %1243 = vmatprep.subr.bf16.mxu0 0
        %1244 = vmatpush1.bf16.msra.mxu0 %v1221
        %1245 = vmatprep.subr.bf16.mxu0 0
        %1246 = vmatpush1.bf16.msra.mxu0 %v1222
        %1247 = vmatprep.subr.bf16.mxu0 0
        %1248 = vmatpush1.bf16.msra.mxu0 0
        %1249 = vmatprep.subr.bf16.mxu0 0
        %1250 = vmatpush1.bf16.msra.mxu0 0
        %1251 = vmatprep.subr.bf16.mxu0 0
        %1252 = vmatpush1.bf16.msra.mxu0 0
        %1253 = vmatprep.subr.bf16.mxu0 0
        %1254 = vmatpush1.bf16.msra.mxu0 0
        %1255 = vmatprep.subr.bf16.mxu0 0
        %1256 = vmatpush1.bf16.msra.mxu0 0
        %1257 = vmatprep.subr.bf16.mxu0 0
        %1258 = vmatpush1.bf16.msra.mxu0 0
        %1259 = vmatprep.subr.bf16.mxu0 0
        %1260 = vmatpush1.bf16.msra.mxu0 0
        %1261 = vmatprep.subr.bf16.mxu0 0
        %1262 = vmatpush1.bf16.msra.mxu0 0
        %1263 = vmatprep.mubr.bf16.mxu0 0
        %1264 = vmatmul.mubr.bf16.gmra.mrb[0].mxu0 %v1176
        %v1265 = vpop.f32.mrb[0].mxu0
        %v1266 = vadd.f32 %v1181, %v1265
        %v1267 = vpop.f32.mrb[0].mxu0
        %v1268 = vpop.f32.mrb[0].mxu0
        %v1269 = vpop.f32.mrb[0].mxu0
        %1270 = vdwg.mxu0
        %v1271 = vadd.f32 %v1266, %v723
        %1272 = vadd.xlane.f32.xlu0 %v1271
        %v1273 = vpop.xlane.xlu0 %1272
        %v1274 = vrcp.pop 128.0
        %v1275 = vmul.f32 %v1273, %v1274
        %v1276 = vsub.f32 %v1271, %v1275
        %v1277 = vmul.f32 %v1276, %v1276
        %1278 = vadd.xlane.f32.xlu0 %v1277
        %v1279 = vpop.xlane.xlu0 %1278
        %v1280 = vmul.f32 %v1279, %v1274
        %v1281 = vadd.f32 %v1280, 1e-12
        %v1282 = vrsqrt.pop %v1281
        %v1283 = vmul.f32 %v1276, %v1282
        %v1285 = vlaneseq
        %v1286 = vshrl.u32 %v1285, 7
        %v1287 = vsub.s32 0, %v1286
        %v1288 = vrot.slane %v621, %v1287
        %v1290 = vmul.f32 %v1283, %v1288
        %v1292 = vlaneseq
        %v1293 = vshrl.u32 %v1292, 7
        %v1294 = vsub.s32 0, %v1293
        %v1295 = vrot.slane %v622, %v1294
        %v1297 = vadd.f32 %v1290, %v1295
        %v1298 = vpack.c.bf16 %v1297, %v1297
        %v1300 = vlaneseq
        %v1301 = vshrl.u32 %v1300, 7
        %v1302 = vsub.s32 0, %v1301
        %v1303 = vrot.slane %v655, %v1302
        %v1304 = vlaneseq
        %v1305 = vshrl.u32 %v1304, 7
        %v1306 = vsub.s32 1, %v1305
        %v1307 = vrot.slane %v655, %v1306
        %v1308 = vlaneseq
        %v1309 = vshrl.u32 %v1308, 7
        %v1310 = vsub.s32 2, %v1309
        %v1311 = vrot.slane %v655, %v1310
        %v1312 = vlaneseq
        %v1313 = vshrl.u32 %v1312, 7
        %v1314 = vsub.s32 3, %v1313
        %v1315 = vrot.slane %v655, %v1314
        %v1352 = vunpack.c.l.b16 %v623
        %v1353 = vunpack.c.h.b16 %v623
        %v1354 = vunpack.c.l.b16 %v624
        %v1355 = vunpack.c.h.b16 %v624
        %v1356 = vunpack.c.l.b16 %v625
        %v1357 = vunpack.c.h.b16 %v625
        %v1358 = vunpack.c.l.b16 %v626
        %v1359 = vunpack.c.h.b16 %v626
        %v1360 = vunpack.c.l.b16 %v627
        %v1361 = vunpack.c.h.b16 %v627
        %v1362 = vunpack.c.l.b16 %v628
        %v1363 = vunpack.c.h.b16 %v628
        %v1364 = vunpack.c.l.b16 %v629
        %v1365 = vunpack.c.h.b16 %v629
        %v1366 = vunpack.c.l.b16 %v630
        %v1367 = vunpack.c.h.b16 %v630
        %v1368 = vunpack.c.l.b16 %v631
        %v1369 = vunpack.c.h.b16 %v631
        %v1370 = vunpack.c.l.b16 %v632
        %v1371 = vunpack.c.h.b16 %v632
        %v1372 = vunpack.c.l.b16 %v633
        %v1373 = vunpack.c.h.b16 %v633
        %v1374 = vunpack.c.l.b16 %v634
        %v1375 = vunpack.c.h.b16 %v634
        %v1376 = vunpack.c.l.b16 %v635
        %v1377 = vunpack.c.h.b16 %v635
        %v1378 = vunpack.c.l.b16 %v636
        %v1379 = vunpack.c.h.b16 %v636
        %v1380 = vunpack.c.l.b16 %v637
        %v1381 = vunpack.c.h.b16 %v637
        %v1382 = vunpack.c.l.b16 %v638
        %v1383 = vunpack.c.h.b16 %v638
        %v1384 = vunpack.c.l.b16 %v639
        %v1385 = vunpack.c.h.b16 %v639
        %v1386 = vunpack.c.l.b16 %v640
        %v1387 = vunpack.c.h.b16 %v640
        %v1388 = vunpack.c.l.b16 %v641
        %v1389 = vunpack.c.h.b16 %v641
        %v1390 = vunpack.c.l.b16 %v642
        %v1391 = vunpack.c.h.b16 %v642
        %v1392 = vunpack.c.l.b16 %v643
        %v1393 = vunpack.c.h.b16 %v643
        %v1394 = vunpack.c.l.b16 %v644
        %v1395 = vunpack.c.h.b16 %v644
        %v1396 = vunpack.c.l.b16 %v645
        %v1397 = vunpack.c.h.b16 %v645
        %v1398 = vunpack.c.l.b16 %v646
        %v1399 = vunpack.c.h.b16 %v646
        %v1400 = vunpack.c.l.b16 %v647
        %v1401 = vunpack.c.h.b16 %v647
        %v1402 = vunpack.c.l.b16 %v648
        %v1403 = vunpack.c.h.b16 %v648
        %v1404 = vunpack.c.l.b16 %v649
        %v1405 = vunpack.c.h.b16 %v649
        %v1406 = vunpack.c.l.b16 %v650
        %v1407 = vunpack.c.h.b16 %v650
        %v1408 = vunpack.c.l.b16 %v651
        %v1409 = vunpack.c.h.b16 %v651
        %v1410 = vunpack.c.l.b16 %v652
        %v1411 = vunpack.c.h.b16 %v652
        %v1412 = vunpack.c.l.b16 %v653
        %v1413 = vunpack.c.h.b16 %v653
        %v1414 = vunpack.c.l.b16 %v654
        %v1415 = vunpack.c.h.b16 %v654
        %v1416 = vpack.c.b16 %v1356, %v1352
        %v1417 = vpack.c.b16 %v1357, %v1353
        %v1418 = vpack.c.b16 %v1358, %v1354
        %v1419 = vpack.c.b16 %v1359, %v1355
        %v1420 = vpack.c.b16 %v1364, %v1360
        %v1421 = vpack.c.b16 %v1365, %v1361
        %v1422 = vpack.c.b16 %v1366, %v1362
        %v1423 = vpack.c.b16 %v1367, %v1363
        %v1424 = vpack.c.b16 %v1372, %v1368
        %v1425 = vpack.c.b16 %v1373, %v1369
        %v1426 = vpack.c.b16 %v1374, %v1370
        %v1427 = vpack.c.b16 %v1375, %v1371
        %v1428 = vpack.c.b16 %v1380, %v1376
        %v1429 = vpack.c.b16 %v1381, %v1377
        %v1430 = vpack.c.b16 %v1382, %v1378
        %v1431 = vpack.c.b16 %v1383, %v1379
        %v1432 = vpack.c.b16 %v1388, %v1384
        %v1433 = vpack.c.b16 %v1389, %v1385
        %v1434 = vpack.c.b16 %v1390, %v1386
        %v1435 = vpack.c.b16 %v1391, %v1387
        %v1436 = vpack.c.b16 %v1396, %v1392
        %v1437 = vpack.c.b16 %v1397, %v1393
        %v1438 = vpack.c.b16 %v1398, %v1394
        %v1439 = vpack.c.b16 %v1399, %v1395
        %v1440 = vpack.c.b16 %v1404, %v1400
        %v1441 = vpack.c.b16 %v1405, %v1401
        %v1442 = vpack.c.b16 %v1406, %v1402
        %v1443 = vpack.c.b16 %v1407, %v1403
        %v1444 = vpack.c.b16 %v1412, %v1408
        %v1445 = vpack.c.b16 %v1413, %v1409
        %v1446 = vpack.c.b16 %v1414, %v1410
        %v1447 = vpack.c.b16 %v1415, %v1411
        %1480 = vmatprep.subr.bf16.mxu0 %v1417
        %1481 = vmatpush1.bf16.msra.mxu0 %v1416
        %1482 = vmatprep.subr.bf16.mxu0 %v1421
        %1483 = vmatpush1.bf16.msra.mxu0 %v1420
        %1484 = vmatprep.subr.bf16.mxu0 %v1425
        %1485 = vmatpush1.bf16.msra.mxu0 %v1424
        %1486 = vmatprep.subr.bf16.mxu0 %v1429
        %1487 = vmatpush1.bf16.msra.mxu0 %v1428
        %1488 = vmatprep.subr.bf16.mxu0 %v1433
        %1489 = vmatpush1.bf16.msra.mxu0 %v1432
        %1490 = vmatprep.subr.bf16.mxu0 %v1437
        %1491 = vmatpush1.bf16.msra.mxu0 %v1436
        %1492 = vmatprep.subr.bf16.mxu0 %v1441
        %1493 = vmatpush1.bf16.msra.mxu0 %v1440
        %1494 = vmatprep.subr.bf16.mxu0 %v1445
        %1495 = vmatpush1.bf16.msra.mxu0 %v1444
        %1496 = vmatprep.subr.bf16.mxu0 0
        %1497 = vmatpush1.bf16.msra.mxu0 0
        %1498 = vmatprep.subr.bf16.mxu0 0
        %1499 = vmatpush1.bf16.msra.mxu0 0
        %1500 = vmatprep.subr.bf16.mxu0 0
        %1501 = vmatpush1.bf16.msra.mxu0 0
        %1502 = vmatprep.subr.bf16.mxu0 0
        %1503 = vmatpush1.bf16.msra.mxu0 0
        %1504 = vmatprep.subr.bf16.mxu0 0
        %1505 = vmatpush1.bf16.msra.mxu0 0
        %1506 = vmatprep.subr.bf16.mxu0 0
        %1507 = vmatpush1.bf16.msra.mxu0 0
        %1508 = vmatprep.subr.bf16.mxu0 0
        %1509 = vmatpush1.bf16.msra.mxu0 0
        %1510 = vmatprep.subr.bf16.mxu0 0
        %1511 = vmatpush1.bf16.msra.mxu0 0
        %1512 = vmatprep.mubr.bf16.mxu0 0
        %1513 = vmatmul.mubr.bf16.gmra.mrb[0].mxu0 %v1298
        %v1514 = vpop.f32.mrb[0].mxu0
        %v1515 = vadd.f32 %v1303, %v1514
        %v1516 = vpop.f32.mrb[0].mxu0
        %v1517 = vadd.f32 %v1307, %v1516
        %v1518 = vpop.f32.mrb[0].mxu0
        %v1519 = vpop.f32.mrb[0].mxu0
        %1520 = vdwg.mxu0
        %1521 = vmatprep.subr.bf16.mxu0 %v1419
        %1522 = vmatpush1.bf16.msra.mxu0 %v1418
        %1523 = vmatprep.subr.bf16.mxu0 %v1423
        %1524 = vmatpush1.bf16.msra.mxu0 %v1422
        %1525 = vmatprep.subr.bf16.mxu0 %v1427
        %1526 = vmatpush1.bf16.msra.mxu0 %v1426
        %1527 = vmatprep.subr.bf16.mxu0 %v1431
        %1528 = vmatpush1.bf16.msra.mxu0 %v1430
        %1529 = vmatprep.subr.bf16.mxu0 %v1435
        %1530 = vmatpush1.bf16.msra.mxu0 %v1434
        %1531 = vmatprep.subr.bf16.mxu0 %v1439
        %1532 = vmatpush1.bf16.msra.mxu0 %v1438
        %1533 = vmatprep.subr.bf16.mxu0 %v1443
        %1534 = vmatpush1.bf16.msra.mxu0 %v1442
        %1535 = vmatprep.subr.bf16.mxu0 %v1447
        %1536 = vmatpush1.bf16.msra.mxu0 %v1446
        %1537 = vmatprep.subr.bf16.mxu0 0
        %1538 = vmatpush1.bf16.msra.mxu0 0
        %1539 = vmatprep.subr.bf16.mxu0 0
        %1540 = vmatpush1.bf16.msra.mxu0 0
        %1541 = vmatprep.subr.bf16.mxu0 0
        %1542 = vmatpush1.bf16.msra.mxu0 0
        %1543 = vmatprep.subr.bf16.mxu0 0
        %1544 = vmatpush1.bf16.msra.mxu0 0
        %1545 = vmatprep.subr.bf16.mxu0 0
        %1546 = vmatpush1.bf16.msra.mxu0 0
        %1547 = vmatprep.subr.bf16.mxu0 0
        %1548 = vmatpush1.bf16.msra.mxu0 0
        %1549 = vmatprep.subr.bf16.mxu0 0
        %1550 = vmatpush1.bf16.msra.mxu0 0
        %1551 = vmatprep.subr.bf16.mxu0 0
        %1552 = vmatpush1.bf16.msra.mxu0 0
        %1553 = vmatprep.mubr.bf16.mxu0 0
        %1554 = vmatmul.mubr.bf16.gmra.mrb[0].mxu0 %v1298
        %v1555 = vpop.f32.mrb[0].mxu0
        %v1556 = vadd.f32 %v1311, %v1555
        %v1557 = vpop.f32.mrb[0].mxu0
        %v1558 = vadd.f32 %v1315, %v1557
        %v1559 = vpop.f32.mrb[0].mxu0
        %v1560 = vpop.f32.mrb[0].mxu0
        %1561 = vdwg.mxu0
        %v1562 = vmul.f32 %v1515, %v1515
        %v1563 = vmul.f32 %v1517, %v1517
        %v1564 = vmul.f32 %v1556, %v1556
        %v1565 = vmul.f32 %v1558, %v1558
        %v1566 = vmul.f32 %v1515, %v1562
        %v1567 = vmul.f32 %v1517, %v1563
        %v1568 = vmul.f32 %v1556, %v1564
        %v1569 = vmul.f32 %v1558, %v1565
        %v1570 = vmul.f32 %v1566, 0.044715
        %v1571 = vmul.f32 %v1567, 0.044715
        %v1572 = vmul.f32 %v1568, 0.044715
        %v1573 = vmul.f32 %v1569, 0.044715
        %v1574 = vadd.f32 %v1515, %v1570
        %v1575 = vadd.f32 %v1517, %v1571
        %v1576 = vadd.f32 %v1556, %v1572
        %v1577 = vadd.f32 %v1558, %v1573
        %v1578 = vmul.f32 %v1574, 0.7978846
        %v1579 = vmul.f32 %v1575, 0.7978846
        %v1580 = vmul.f32 %v1576, 0.7978846
        %v1581 = vmul.f32 %v1577, 0.7978846
        %v1582 = vtanh.pop %v1578
        %v1583 = vtanh.pop %v1579
        %v1584 = vtanh.pop %v1580
        %v1585 = vtanh.pop %v1581
        %v1586 = vadd.f32 %v1582, 1.0
        %v1587 = vadd.f32 %v1583, 1.0
        %v1588 = vadd.f32 %v1584, 1.0
        %v1589 = vadd.f32 %v1585, 1.0
        %v1590 = vmul.f32 %v1586, 0.5
        %v1591 = vmul.f32 %v1587, 0.5
        %v1592 = vmul.f32 %v1588, 0.5
        %v1593 = vmul.f32 %v1589, 0.5
        %v1594 = vmul.f32 %v1515, %v1590
        %v1595 = vmul.f32 %v1517, %v1591
        %v1596 = vmul.f32 %v1556, %v1592
        %v1597 = vmul.f32 %v1558, %v1593
        %v1598 = vpack.c.bf16 %v1594, %v1594
        %v1599 = vpack.c.bf16 %v1595, %v1595
        %v1600 = vpack.c.bf16 %v1596, %v1596
        %v1601 = vpack.c.bf16 %v1597, %v1597
        %v1603 = vlaneseq
        %v1604 = vshrl.u32 %v1603, 7
        %v1605 = vsub.s32 0, %v1604
        %v1606 = vrot.slane %v720, %v1605
        %v1672 = vunpack.c.l.b16 %v656
        %v1673 = vunpack.c.l.b16 %v657
        %v1674 = vunpack.c.l.b16 %v658
        %v1675 = vunpack.c.l.b16 %v659
        %v1676 = vunpack.c.l.b16 %v660
        %v1677 = vunpack.c.l.b16 %v661
        %v1678 = vunpack.c.l.b16 %v662
        %v1679 = vunpack.c.l.b16 %v663
        %v1680 = vunpack.c.l.b16 %v664
        %v1681 = vunpack.c.l.b16 %v665
        %v1682 = vunpack.c.l.b16 %v666
        %v1683 = vunpack.c.l.b16 %v667
        %v1684 = vunpack.c.l.b16 %v668
        %v1685 = vunpack.c.l.b16 %v669
        %v1686 = vunpack.c.l.b16 %v670
        %v1687 = vunpack.c.l.b16 %v671
        %v1688 = vunpack.c.l.b16 %v672
        %v1689 = vunpack.c.l.b16 %v673
        %v1690 = vunpack.c.l.b16 %v674
        %v1691 = vunpack.c.l.b16 %v675
        %v1692 = vunpack.c.l.b16 %v676
        %v1693 = vunpack.c.l.b16 %v677
        %v1694 = vunpack.c.l.b16 %v678
        %v1695 = vunpack.c.l.b16 %v679
        %v1696 = vunpack.c.l.b16 %v680
        %v1697 = vunpack.c.l.b16 %v681
        %v1698 = vunpack.c.l.b16 %v682
        %v1699 = vunpack.c.l.b16 %v683
        %v1700 = vunpack.c.l.b16 %v684
        %v1701 = vunpack.c.l.b16 %v685
        %v1702 = vunpack.c.l.b16 %v686
        %v1703 = vunpack.c.l.b16 %v687
        %v1704 = vunpack.c.l.b16 %v688
        %v1705 = vunpack.c.l.b16 %v689
        %v1706 = vunpack.c.l.b16 %v690
        %v1707 = vunpack.c.l.b16 %v691
        %v1708 = vunpack.c.l.b16 %v692
        %v1709 = vunpack.c.l.b16 %v693
        %v1710 = vunpack.c.l.b16 %v694
        %v1711 = vunpack.c.l.b16 %v695
        %v1712 = vunpack.c.l.b16 %v696
        %v1713 = vunpack.c.l.b16 %v697
        %v1714 = vunpack.c.l.b16 %v698
        %v1715 = vunpack.c.l.b16 %v699
        %v1716 = vunpack.c.l.b16 %v700
        %v1717 = vunpack.c.l.b16 %v701
        %v1718 = vunpack.c.l.b16 %v702
        %v1719 = vunpack.c.l.b16 %v703
        %v1720 = vunpack.c.l.b16 %v704
        %v1721 = vunpack.c.l.b16 %v705
        %v1722 = vunpack.c.l.b16 %v706
        %v1723 = vunpack.c.l.b16 %v707
        %v1724 = vunpack.c.l.b16 %v708
        %v1725 = vunpack.c.l.b16 %v709
        %v1726 = vunpack.c.l.b16 %v710
        %v1727 = vunpack.c.l.b16 %v711
        %v1728 = vunpack.c.l.b16 %v712
        %v1729 = vunpack.c.l.b16 %v713
        %v1730 = vunpack.c.l.b16 %v714
        %v1731 = vunpack.c.l.b16 %v715
        %v1732 = vunpack.c.l.b16 %v716
        %v1733 = vunpack.c.l.b16 %v717
        %v1734 = vunpack.c.l.b16 %v718
        %v1735 = vunpack.c.l.b16 %v719
        %v1736 = vpack.c.b16 %v1673, %v1672
        %v1737 = vpack.c.b16 %v1675, %v1674
        %v1738 = vpack.c.b16 %v1677, %v1676
        %v1739 = vpack.c.b16 %v1679, %v1678
        %v1740 = vpack.c.b16 %v1681, %v1680
        %v1741 = vpack.c.b16 %v1683, %v1682
        %v1742 = vpack.c.b16 %v1685, %v1684
        %v1743 = vpack.c.b16 %v1687, %v1686
        %v1744 = vpack.c.b16 %v1689, %v1688
        %v1745 = vpack.c.b16 %v1691, %v1690
        %v1746 = vpack.c.b16 %v1693, %v1692
        %v1747 = vpack.c.b16 %v1695, %v1694
        %v1748 = vpack.c.b16 %v1697, %v1696
        %v1749 = vpack.c.b16 %v1699, %v1698
        %v1750 = vpack.c.b16 %v1701, %v1700
        %v1751 = vpack.c.b16 %v1703, %v1702
        %v1752 = vpack.c.b16 %v1705, %v1704
        %v1753 = vpack.c.b16 %v1707, %v1706
        %v1754 = vpack.c.b16 %v1709, %v1708
        %v1755 = vpack.c.b16 %v1711, %v1710
        %v1756 = vpack.c.b16 %v1713, %v1712
        %v1757 = vpack.c.b16 %v1715, %v1714
        %v1758 = vpack.c.b16 %v1717, %v1716
        %v1759 = vpack.c.b16 %v1719, %v1718
        %v1760 = vpack.c.b16 %v1721, %v1720
        %v1761 = vpack.c.b16 %v1723, %v1722
        %v1762 = vpack.c.b16 %v1725, %v1724
        %v1763 = vpack.c.b16 %v1727, %v1726
        %v1764 = vpack.c.b16 %v1729, %v1728
        %v1765 = vpack.c.b16 %v1731, %v1730
        %v1766 = vpack.c.b16 %v1733, %v1732
        %v1767 = vpack.c.b16 %v1735, %v1734
        %1800 = vmatprep.subr.bf16.mxu0 0
        %1801 = vmatpush1.bf16.msra.mxu0 %v1736
        %1802 = vmatprep.subr.bf16.mxu0 0
        %1803 = vmatpush1.bf16.msra.mxu0 %v1737
        %1804 = vmatprep.subr.bf16.mxu0 0
        %1805 = vmatpush1.bf16.msra.mxu0 %v1738
        %1806 = vmatprep.subr.bf16.mxu0 0
        %1807 = vmatpush1.bf16.msra.mxu0 %v1739
        %1808 = vmatprep.subr.bf16.mxu0 0
        %1809 = vmatpush1.bf16.msra.mxu0 %v1740
        %1810 = vmatprep.subr.bf16.mxu0 0
        %1811 = vmatpush1.bf16.msra.mxu0 %v1741
        %1812 = vmatprep.subr.bf16.mxu0 0
        %1813 = vmatpush1.bf16.msra.mxu0 %v1742
        %1814 = vmatprep.subr.bf16.mxu0 0
        %1815 = vmatpush1.bf16.msra.mxu0 %v1743
        %1816 = vmatprep.subr.bf16.mxu0 0
        %1817 = vmatpush1.bf16.msra.mxu0 %v1744
        %1818 = vmatprep.subr.bf16.mxu0 0
        %1819 = vmatpush1.bf16.msra.mxu0 %v1745
        %1820 = vmatprep.subr.bf16.mxu0 0
        %1821 = vmatpush1.bf16.msra.mxu0 %v1746
        %1822 = vmatprep.subr.bf16.mxu0 0
        %1823 = vmatpush1.bf16.msra.mxu0 %v1747
        %1824 = vmatprep.subr.bf16.mxu0 0
        %1825 = vmatpush1.bf16.msra.mxu0 %v1748
        %1826 = vmatprep.subr.bf16.mxu0 0
        %1827 = vmatpush1.bf16.msra.mxu0 %v1749
        %1828 = vmatprep.subr.bf16.mxu0 0
        %1829 = vmatpush1.bf16.msra.mxu0 %v1750
        %1830 = vmatprep.subr.bf16.mxu0 0
        %1831 = vmatpush1.bf16.msra.mxu0 %v1751
        %1832 = vmatprep.mubr.bf16.mxu0 %v1599
        %1833 = vmatmul.mubr.bf16.gmra.mrb[0].mxu0 %v1598
        %v1834 = vpop.f32.mrb[0].mxu0
        %v1835 = vadd.f32 %v1606, %v1834
        %v1836 = vpop.f32.mrb[0].mxu0
        %v1837 = vpop.f32.mrb[0].mxu0
        %v1838 = vpop.f32.mrb[0].mxu0
        %1839 = vdwg.mxu0
        %1840 = vmatprep.subr.bf16.mxu0 0
        %1841 = vmatpush1.bf16.msra.mxu0 %v1752
        %1842 = vmatprep.subr.bf16.mxu0 0
        %1843 = vmatpush1.bf16.msra.mxu0 %v1753
        %1844 = vmatprep.subr.bf16.mxu0 0
        %1845 = vmatpush1.bf16.msra.mxu0 %v1754
        %1846 = vmatprep.subr.bf16.mxu0 0
        %1847 = vmatpush1.bf16.msra.mxu0 %v1755
        %1848 = vmatprep.subr.bf16.mxu0 0
        %1849 = vmatpush1.bf16.msra.mxu0 %v1756
        %1850 = vmatprep.subr.bf16.mxu0 0
        %1851 = vmatpush1.bf16.msra.mxu0 %v1757
        %1852 = vmatprep.subr.bf16.mxu0 0
        %1853 = vmatpush1.bf16.msra.mxu0 %v1758
        %1854 = vmatprep.subr.bf16.mxu0 0
        %1855 = vmatpush1.bf16.msra.mxu0 %v1759
        %1856 = vmatprep.subr.bf16.mxu0 0
        %1857 = vmatpush1.bf16.msra.mxu0 %v1760
        %1858 = vmatprep.subr.bf16.mxu0 0
        %1859 = vmatpush1.bf16.msra.mxu0 %v1761
        %1860 = vmatprep.subr.bf16.mxu0 0
        %1861 = vmatpush1.bf16.msra.mxu0 %v1762
        %1862 = vmatprep.subr.bf16.mxu0 0
        %1863 = vmatpush1.bf16.msra.mxu0 %v1763
        %1864 = vmatprep.subr.bf16.mxu0 0
        %1865 = vmatpush1.bf16.msra.mxu0 %v1764
        %1866 = vmatprep.subr.bf16.mxu0 0
        %1867 = vmatpush1.bf16.msra.mxu0 %v1765
        %1868 = vmatprep.subr.bf16.mxu0 0
        %1869 = vmatpush1.bf16.msra.mxu0 %v1766
        %1870 = vmatprep.subr.bf16.mxu0 0
        %1871 = vmatpush1.bf16.msra.mxu0 %v1767
        %1872 = vmatprep.mubr.bf16.mxu0 %v1601
        %1873 = vmatmul.mubr.bf16.gmra.mrb[0].mxu0 %v1600
        %v1874 = vpop.f32.mrb[0].mxu0
        %v1875 = vadd.f32 %v1835, %v1874
        %v1876 = vpop.f32.mrb[0].mxu0
        %v1877 = vpop.f32.mrb[0].mxu0
        %v1878 = vpop.f32.mrb[0].mxu0
        %1879 = vdwg.mxu0
        %v1880 = vadd.f32 %v1875, %v1297
        %1881 = vadd.xlane.f32.xlu0 %v1880
        %v1882 = vpop.xlane.xlu0 %1881
        %v1883 = vmul.f32 %v1882, %v1274
        %v1884 = vsub.f32 %v1880, %v1883
        %v1885 = vmul.f32 %v1884, %v1884
        %1886 = vadd.xlane.f32.xlu0 %v1885
        %v1887 = vpop.xlane.xlu0 %1886
        %v1888 = vmul.f32 %v1887, %v1274
        %v1889 = vadd.f32 %v1888, 1e-12
        %v1890 = vrsqrt.pop %v1889
        %v1891 = vmul.f32 %v1884, %v1890
        %v1893 = vlaneseq
        %v1894 = vshrl.u32 %v1893, 7
        %v1895 = vsub.s32 0, %v1894
        %v1896 = vrot.slane %v721, %v1895
        %v1898 = vmul.f32 %v1891, %v1896
        %v1900 = vlaneseq
        %v1901 = vshrl.u32 %v1900, 7
        %v1902 = vsub.s32 0, %v1901
        %v1903 = vrot.slane %v722, %v1902
        %v1905 = vadd.f32 %v1898, %v1903
        %v1906 = vpack.c.bf16 %v1905, %v1905
        %v1907 = vld [vmem:[%s14] sm:$0xf]
        %v1908 = vld [vmem:[%s14 + $0x4] sm:$0xf]
        %v1909 = vld [vmem:[%s14 + $0x8] sm:$0xf]
        %v1910 = vld [vmem:[%s14 + $0xc] sm:$0xf]
        %v1911 = vld [vmem:[%s14 + $0x10] sm:$0xf]
        %v1912 = vld [vmem:[%s14 + $0x14] sm:$0xf]
        %v1913 = vld [vmem:[%s14 + $0x18] sm:$0xf]
        %v1914 = vld [vmem:[%s14 + $0x1c] sm:$0xf]
        %v1915 = vld [vmem:[%s14 + $0x20] sm:$0xf]
        %v1916 = vld [vmem:[%s14 + $0x24] sm:$0xf]
        %v1917 = vld [vmem:[%s14 + $0x28] sm:$0xf]
        %v1918 = vld [vmem:[%s14 + $0x2c] sm:$0xf]
        %v1919 = vld [vmem:[%s14 + $0x30] sm:$0xf]
        %v1920 = vld [vmem:[%s14 + $0x34] sm:$0xf]
        %v1921 = vld [vmem:[%s14 + $0x38] sm:$0xf]
        %v1922 = vld [vmem:[%s14 + $0x3c] sm:$0xf]
        %v1923 = vld [vmem:[#allocation7] sm:$0x1]
        %v1940 = vunpack.c.l.b16 %v1907
        %v1941 = vunpack.c.l.b16 %v1908
        %v1942 = vunpack.c.l.b16 %v1909
        %v1943 = vunpack.c.l.b16 %v1910
        %v1944 = vunpack.c.l.b16 %v1911
        %v1945 = vunpack.c.l.b16 %v1912
        %v1946 = vunpack.c.l.b16 %v1913
        %v1947 = vunpack.c.l.b16 %v1914
        %v1948 = vunpack.c.l.b16 %v1915
        %v1949 = vunpack.c.l.b16 %v1916
        %v1950 = vunpack.c.l.b16 %v1917
        %v1951 = vunpack.c.l.b16 %v1918
        %v1952 = vunpack.c.l.b16 %v1919
        %v1953 = vunpack.c.l.b16 %v1920
        %v1954 = vunpack.c.l.b16 %v1921
        %v1955 = vunpack.c.l.b16 %v1922
        %v1956 = vpack.c.b16 %v1941, %v1940
        %v1957 = vpack.c.b16 %v1943, %v1942
        %v1958 = vpack.c.b16 %v1945, %v1944
        %v1959 = vpack.c.b16 %v1947, %v1946
        %v1960 = vpack.c.b16 %v1949, %v1948
        %v1961 = vpack.c.b16 %v1951, %v1950
        %v1962 = vpack.c.b16 %v1953, %v1952
        %v1963 = vpack.c.b16 %v1955, %v1954
        %1972 = vmatprep.subr.bf16.mxu0 0
        %1973 = vmatpush1.bf16.msra.mxu0 %v1956
        %1974 = vmatprep.subr.bf16.mxu0 0
        %1975 = vmatpush1.bf16.msra.mxu0 %v1957
        %1976 = vmatprep.subr.bf16.mxu0 0
        %1977 = vmatpush1.bf16.msra.mxu0 %v1958
        %1978 = vmatprep.subr.bf16.mxu0 0
        %1979 = vmatpush1.bf16.msra.mxu0 %v1959
        %1980 = vmatprep.subr.bf16.mxu0 0
        %1981 = vmatpush1.bf16.msra.mxu0 %v1960
        %1982 = vmatprep.subr.bf16.mxu0 0
        %1983 = vmatpush1.bf16.msra.mxu0 %v1961
        %1984 = vmatprep.subr.bf16.mxu0 0
        %1985 = vmatpush1.bf16.msra.mxu0 %v1962
        %1986 = vmatprep.subr.bf16.mxu0 0
        %1987 = vmatpush1.bf16.msra.mxu0 %v1963
        %1988 = vmatprep.subr.bf16.mxu0 0
        %1989 = vmatpush1.bf16.msra.mxu0 0
        %1990 = vmatprep.subr.bf16.mxu0 0
        %1991 = vmatpush1.bf16.msra.mxu0 0
        %1992 = vmatprep.subr.bf16.mxu0 0
        %1993 = vmatpush1.bf16.msra.mxu0 0
        %1994 = vmatprep.subr.bf16.mxu0 0
        %1995 = vmatpush1.bf16.msra.mxu0 0
        %1996 = vmatprep.subr.bf16.mxu0 0
        %1997 = vmatpush1.bf16.msra.mxu0 0
        %1998 = vmatprep.subr.bf16.mxu0 0
        %1999 = vmatpush1.bf16.msra.mxu0 0
        %2000 = vmatprep.subr.bf16.mxu0 0
        %2001 = vmatpush1.bf16.msra.mxu0 0
        %2002 = vmatprep.subr.bf16.mxu0 0
        %2003 = vmatpush1.bf16.msra.mxu0 0
        %2004 = vmatprep.mubr.bf16.mxu0 0
        %2005 = vmatmul.mubr.bf16.gmra.mrb[0].mxu0 %v1906
        %v2006 = vpop.f32.mrb[0].mxu0
        %v2007 = vadd.f32 %v1923, %v2006
        %v2008 = vpop.f32.mrb[0].mxu0
        %v2009 = vpop.f32.mrb[0].mxu0
        %v2010 = vpop.f32.mrb[0].mxu0
        %2011 = vdwg.mxu0
        %2012 = vst [vmem:[%s560] sm:$0x1] %v2007
        %s2013 = sand.u32 %s386, 1
        %s2014 = scalar_lea.sflag [#allocation4], %s2013
        %s2015 = sand.u32 %s386, 1
        %s2016 = scalar_lea.vmem [#allocation8], %s2015
        // Predicated region
        $region97: #{bert_class_forward.5} parent=83 // pred_check
          %p2017 = pneg %p396
        $region98: #{bert_class_forward.5} parent=83 // pred_check_branch
          %2019 = sbr.rel (%p2017) target = $region100
        $region99: #{bert_class_forward.5} parent=83 // pred_region
          %s2021 = ssub.s32 16, 16
          %2022 = vsyncadd %s2014, %s2021
          %s2023 = smul.addr %s32, 16
          %s2024 = scalar_lea.hbm %s16, %s2023
          %s2026 = sshll.u32 %s2016, 4
          %s2027 = int_to_ptr.vmem [resolvable:$true] %s2026
          %2029 = dma.vmem_to_hbm [thread:$0]  %s2027, 16, %s2024, %s2014
        $region100: #{bert_class_forward.5} parent=83 // pred_fallthru
          _
      $region84: #{bert_class_forward.5} parent=5 // pred_fallthru
        _
      %p2030 = scmp.le.s32.totalorder 2, %s27
      // Predicated region
      $region101: #{bert_class_forward.5} parent=5 // pred_check
        %p2031 = pneg %p2030
      $region102: #{bert_class_forward.5} parent=5 // pred_check_branch
        %2033 = sbr.rel (%p2031) target = $region104
      $region103: #{bert_class_forward.5} parent=5 // pred_region
        %s2034 = ssub.s32 %s27, 2
        // Predicated region
        $region105: #{bert_class_forward.5} parent=103 // pred_check
          %p2035 = pneg %p402
        $region106: #{bert_class_forward.5} parent=103 // pred_check_branch
          %2037 = sbr.rel (%p2035) target = $region108
        $region107: #{bert_class_forward.5} parent=103 // pred_region
          %s2038 = sand.u32 %s387, 1
          %s2039 = scalar_lea.sflag [#allocation4], %s2038
          %s2040 = sand.u32 %s387, 1
          %s2041 = scalar_lea.vmem [#allocation8], %s2040
          %2042 = dma.done %s2039, 16
        $region108: #{bert_class_forward.5} parent=103 // pred_fallthru
          _
      $region104: #{bert_class_forward.5} parent=5 // pred_fallthru
        _
    $region6: #{bert_class_forward.5} parent=1 // loop_footer
      %s31 = sadd.s32 1, %s27
    $region7: #{bert_class_forward.5} parent=1 // loop_footer_branch
      %26 = sbr.rel target = $region3
    $region8: #{bert_class_forward.5} parent=1 // loop_exit
      _
    %2043 = vsyncpa [#allocation3], 1
    %s2044 = scalar_lea.sflag [#allocation3], 1
    %2045 = vsyncpa %s2044, 1
    %2046 = vsyncpa [#allocation6], 1
    %2047 = vsyncpa [#allocation4], 1
    %s2048 = scalar_lea.sflag [#allocation4], 1
    %2049 = vsyncpa %s2048, 1

</llo_original>
